<compile_context>
chip_gen: v5e
topology: v5e:2x2
jax: 0.10.0
libtpu: 0.0.40
codegen_flags: <defaults>
</compile_context>

<pallas_src>
import functools

import jax
import jax.numpy as jnp
from jax.experimental import pallas as pl
from jax.experimental.pallas import tpu as pltpu

_WEIGHT = 0.6     # ChamferDistanceL2.weight in the reference module
_COORD_PAD = 8    # pad xyz coords 3 -> 8 (zero-filled) for an aligned MXU K dim


def _round_up(x, m):
    return (x + m - 1) // m * m


def _chamfer_kernel(x_ref, yt_ref, d1_ref, d2_ref, d1_acc, d2_acc, *,
                    tn, tm, n_points, m_points, mask_rows, mask_cols):
    i = pl.program_id(1)            # N-tile index
    j = pl.program_id(2)            # M-tile index (innermost reduction axis)
    ni = pl.num_programs(1)
    nj = pl.num_programs(2)

    x = x_ref[0]                    # (tn, 8)  points on sublanes, coords on lanes
    yt = yt_ref[0]                  # (8, tm)  coords on sublanes, points on lanes

    # Squared norms (padded coords are zero, so the sums are exact).
    x2 = jnp.sum(x * x, axis=1, keepdims=True)      # (tn, 1)
    y2 = jnp.sum(yt * yt, axis=0, keepdims=True)    # (1, tm)

    # Cross term on the MXU; fold the -2 into the small LHS tile.
    cross = jnp.dot(x * (-2.0), yt,
                    preferred_element_type=jnp.float32,
                    precision=jax.lax.Precision.HIGHEST)      # (tn, tm)
    # Clamp: cancellation in ||x||^2 + ||y||^2 - 2x.y can go slightly negative.
    sq = jnp.maximum(cross + x2 + y2, 0.0)

    # ---- init accumulators -------------------------------------------------
    @pl.when(j == 0)
    def _():
        d1_acc[...] = jnp.full(d1_acc.shape, jnp.inf, d1_acc.dtype)

    @pl.when((i == 0) & (j == 0))
    def _():
        d2_acc[...] = jnp.full(d2_acc.shape, jnp.inf, d2_acc.dtype)

    # ---- dist1: running min over all M (mask padded columns) ---------------
    sq1 = sq
    if mask_cols:
        col = j * tm + jax.lax.broadcasted_iota(jnp.int32, (1, tm), 1)
        sq1 = jnp.where(col < m_points, sq, jnp.inf)
    d1_acc[...] = jnp.minimum(d1_acc[...], jnp.min(sq1, axis=1, keepdims=True))

    # ---- dist2: running min over all N (mask padded rows) ------------------
    sq2 = sq
    if mask_rows:
        row = i * tn + jax.lax.broadcasted_iota(jnp.int32, (tn, 1), 0)
        sq2 = jnp.where(row < n_points, sq, jnp.inf)
    col_min = jnp.min(sq2, axis=0, keepdims=True)             # (1, tm) lane-dense
    col0 = pl.multiple_of(j * tm, tm)
    d2_acc[:, pl.ds(col0, tm)] = jnp.minimum(d2_acc[:, pl.ds(col0, tm)], col_min)

    # ---- finalize -----------------------------------------------------------
    @pl.when(j == nj - 1)
    def _():
        d1_ref[0] = d1_acc[...]                               # (tn, 1)

    @pl.when((i == ni - 1) & (j == nj - 1))
    def _():
        d2_ref[0] = d2_acc[...]                               # (1, M_pad)


@functools.partial(jax.jit, static_argnames=("return_raw",))
def chamfer_distance_l2(xyz1, xyz2, return_raw=False):
    """Forward of ChamferDistanceL2 (ignore_zeros=False path)."""
    # TODO(synk): ignore_zeros branch (batch==1 zero-point filtering) produces
    # data-dependent shapes and is not implemented here.
    # TODO(synk): for B==1 on v7x, shard the N-tile axis across the 2 cores via
    # per-core partial dist2 outputs combined in the wrapper.
    B, N, D = xyz1.shape
    B2, M, D2 = xyz2.shape
    assert B == B2 and D == 3 and D2 == 3

    C = _COORD_PAD
    tn = min(256, _round_up(N, 8))       # ~0.5 MiB f32 score tile at 256x512:
    tm = min(512, _round_up(M, 128))     # safe on v7x (64 MiB VMEM) and v5e/v6e
    n_pad = _round_up(N, tn)
    m_pad = _round_up(M, tm)
    ni, nj = n_pad // tn, m_pad // tm

    # xyz1 channel-last (points on sublanes), xyz2 channel-first (points on lanes).
    x = jnp.pad(xyz1.astype(jnp.float32),
                ((0, 0), (0, n_pad - N), (0, C - D)))                  # (B, n_pad, 8)
    yt = jnp.pad(xyz2.astype(jnp.float32),
                 ((0, 0), (0, m_pad - M), (0, C - D))).transpose(0, 2, 1)  # (B, 8, m_pad)

    kernel = functools.partial(
        _chamfer_kernel, tn=tn, tm=tm, n_points=N, m_points=M,
        mask_rows=(n_pad != N), mask_cols=(m_pad != M))

    flops = B * n_pad * m_pad * (2 * C + 6)
    bytes_accessed = 4 * B * (n_pad * C + ni * C * m_pad + n_pad + m_pad)

    d1, d2 = pl.pallas_call(
        kernel,
        out_shape=(
            jax.ShapeDtypeStruct((B, n_pad, 1), jnp.float32),
            jax.ShapeDtypeStruct((B, 1, m_pad), jnp.float32),
        ),
        grid=(B, ni, nj),
        in_specs=[
            pl.BlockSpec((1, tn, C), lambda b, i, j: (b, i, 0)),   # x tile
            pl.BlockSpec((1, C, tm), lambda b, i, j: (b, 0, j)),   # y tile (channel-first)
        ],
        out_specs=(
            pl.BlockSpec((1, tn, 1), lambda b, i, j: (b, i, 0)),        # dist1
            pl.BlockSpec((1, 1, m_pad), lambda b, i, j: (b, 0, 0)),     # dist2
        ),
        scratch_shapes=[
            pltpu.VMEM((tn, 1), jnp.float32),      # dist1 running min (per N-tile)
            pltpu.VMEM((1, m_pad), jnp.float32),   # dist2 running min (per batch)
        ],
        compiler_params=pltpu.CompilerParams(
            dimension_semantics=("parallel", "arbitrary", "arbitrary"),
            vmem_limit_bytes=32 * 1024 * 1024,
        ),
        cost_estimate=pl.CostEstimate(
            flops=flops, transcendentals=0, bytes_accessed=bytes_accessed),
    )(x, yt)

    dist1 = d1[:, :N, 0] * _WEIGHT      # (B, N) squared NN distances * weight
    dist2 = d2[:, 0, :M] * _WEIGHT      # (B, M)

    if return_raw:
        return dist1, dist2
    return (jnp.mean(dist1) + jnp.mean(dist2)) / 2


def _reference(xyz1, xyz2):
    # pure-JAX reference (squared distances — L2 variant, no sqrt)
    diff = xyz1[:, :, None, :] - xyz2[:, None, :, :]          # (B, N, M, 3)
    sq = jnp.sum(diff * diff, axis=-1)                        # (B, N, M)
    d1 = jnp.min(sq, axis=2) * _WEIGHT
    d2 = jnp.min(sq, axis=1) * _WEIGHT
    return (jnp.mean(d1) + jnp.mean(d2)) / 2


if __name__ == "__main__":
    key = jax.random.PRNGKey(0)
    k1, k2 = jax.random.split(key)
    # Small point clouds: B=2, 300 and 700 points, 3 coords.
    # Exercises a multi-tile grid (2 N-tiles x 2 M-tiles) plus both padding masks.
    xyz1 = jax.random.normal(k1, (2, 300, 3), dtype=jnp.float32)
    xyz2 = jax.random.normal(k2, (2, 700, 3), dtype=jnp.float32)

    out = chamfer_distance_l2(xyz1, xyz2)
    out = jax.block_until_ready(out)

    ref = _reference(xyz1, xyz2)
    assert jnp.allclose(out, ref, atol=1e-5, rtol=1e-4), (out, ref)

    d1_raw, d2_raw = chamfer_distance_l2(xyz1, xyz2, return_raw=True)
    jax.block_until_ready((d1_raw, d2_raw))
    assert d1_raw.shape == (2, 300) and d2_raw.shape == (2, 700)

    print("KERNEL_OK")
</pallas_src>

<mosaic_0001>
module attributes {stable_mosaic.version = 11 : i64} {
  func.func @_chamfer_kernel(%arg0: i32, %arg1: i32, %arg2: i32, %arg3: memref<1x256x8xf32, #tpu.memory_space<vmem>>, %arg4: memref<1x8x512xf32, #tpu.memory_space<vmem>>, %arg5: memref<1x256x1xf32, #tpu.memory_space<vmem>>, %arg6: memref<1x1x1024xf32, #tpu.memory_space<vmem>>, %arg7: memref<256x1xf32, #tpu.memory_space<vmem>>, %arg8: memref<1x1024xf32, #tpu.memory_space<vmem>>) attributes {dimension_semantics = [#tpu.dimension_semantics<parallel>, #tpu.dimension_semantics<arbitrary>, #tpu.dimension_semantics<arbitrary>], iteration_bounds = array<i64: 2, 2, 2>, scalar_prefetch = 0 : i64, scratch_operands = 2 : i64, tpu.core_type = #tpu.core_type<tc>, window_params = [{transform_indices = @transform_0, window_bounds = array<i64: 1, 256, 8>}, {transform_indices = @transform_1, window_bounds = array<i64: 1, 8, 512>}, {transform_indices = @transform_2, window_bounds = array<i64: 1, 256, 1>}, {transform_indices = @transform_3, window_bounds = array<i64: 1, 1, 1024>}]} {
    %c0 = arith.constant 0 : index
    %c0_0 = arith.constant 0 : index
    %c0_1 = arith.constant 0 : index
    %0 = vector.load %arg3[%c0, %c0_0, %c0_1] : memref<1x256x8xf32, #tpu.memory_space<vmem>>, vector<1x256x8xf32>
    %1 = vector.shape_cast %0 : vector<1x256x8xf32> to vector<256x8xf32>
    %c0_2 = arith.constant 0 : index
    %c0_3 = arith.constant 0 : index
    %c0_4 = arith.constant 0 : index
    %2 = vector.load %arg4[%c0_2, %c0_3, %c0_4] : memref<1x8x512xf32, #tpu.memory_space<vmem>>, vector<1x8x512xf32>
    %3 = vector.shape_cast %2 : vector<1x8x512xf32> to vector<8x512xf32>
    %4 = arith.mulf %1, %1 : vector<256x8xf32>
    %cst = arith.constant dense<0.000000e+00> : vector<256xf32>
    %5 = vector.multi_reduction <add>, %4, %cst [1] : vector<256x8xf32> to vector<256xf32>
    %6 = vector.shape_cast %5 : vector<256xf32> to vector<256x1xf32>
    %7 = arith.mulf %3, %3 : vector<8x512xf32>
    %cst_5 = arith.constant dense<0.000000e+00> : vector<512xf32>
    %8 = vector.multi_reduction <add>, %7, %cst_5 [0] : vector<8x512xf32> to vector<512xf32>
    %9 = vector.shape_cast %8 : vector<512xf32> to vector<1x512xf32>
    %cst_6 = arith.constant -2.000000e+00 : f32
    %10 = vector.broadcast %cst_6 : f32 to vector<256x8xf32>
    %11 = arith.mulf %1, %10 : vector<256x8xf32>
    %cst_7 = arith.constant dense<0.000000e+00> : vector<256x512xf32>
    %12 = tpu.matmul %11, %3, %cst_7 {dimension_numbers = #tpu.dot_dimension_numbers<[1], [0], [0], [1], [0, 0, 1, 1], [], []>, precision = #tpu.contract_precision<fp32>} : vector<256x8xf32>, vector<8x512xf32>, vector<256x512xf32> -> vector<256x512xf32>
    %13 = vector.broadcast %6 : vector<256x1xf32> to vector<256x512xf32>
    %14 = arith.addf %12, %13 : vector<256x512xf32>
    %15 = vector.broadcast %9 : vector<1x512xf32> to vector<256x512xf32>
    %16 = arith.addf %14, %15 : vector<256x512xf32>
    %cst_8 = arith.constant 0.000000e+00 : f32
    %17 = vector.broadcast %cst_8 : f32 to vector<256x512xf32>
    %18 = arith.maximumf %16, %17 : vector<256x512xf32>
    %c0_i32 = arith.constant 0 : i32
    %19 = arith.cmpi eq, %arg2, %c0_i32 : i32
    %20 = arith.extui %19 : i1 to i32
    %c0_i32_9 = arith.constant 0 : i32
    %21 = arith.cmpi ne, %20, %c0_i32_9 : i32
    scf.if %21 {
      %cst_28 = arith.constant 0x7F800000 : f32
      %69 = vector.broadcast %cst_28 : f32 to vector<256x1xf32>
      %c0_29 = arith.constant 0 : index
      %c0_30 = arith.constant 0 : index
      %70 = vector.load %arg7[%c0_29, %c0_30] : memref<256x1xf32, #tpu.memory_space<vmem>>, vector<256x1xf32>
      tpu.vector_store %arg7[%c0_29, %c0_30], %69 {strides = array<i32>} : memref<256x1xf32, #tpu.memory_space<vmem>>, vector<256x1xf32>,
    } else {
    }
    %c0_i32_10 = arith.constant 0 : i32
    %22 = arith.cmpi eq, %arg1, %c0_i32_10 : i32
    %c0_i32_11 = arith.constant 0 : i32
    %23 = arith.cmpi eq, %arg2, %c0_i32_11 : i32
    %24 = arith.andi %22, %23 : i1
    %25 = arith.extui %24 : i1 to i32
    %c0_i32_12 = arith.constant 0 : i32
    %26 = arith.cmpi ne, %25, %c0_i32_12 : i32
    scf.if %26 {
      %cst_28 = arith.constant 0x7F800000 : f32
      %69 = vector.broadcast %cst_28 : f32 to vector<1x1024xf32>
      %c0_29 = arith.constant 0 : index
      %c0_30 = arith.constant 0 : index
      %70 = vector.load %arg8[%c0_29, %c0_30] : memref<1x1024xf32, #tpu.memory_space<vmem>>, vector<1x1024xf32>
      tpu.vector_store %arg8[%c0_29, %c0_30], %69 {strides = array<i32>} : memref<1x1024xf32, #tpu.memory_space<vmem>>, vector<1x1024xf32>,
    } else {
    }
    %c512_i32 = arith.constant 512 : i32
    %27 = arith.muli %arg2, %c512_i32 : i32
    %28 = tpu.iota {dimensions = array<i32: 1>} : vector<1x512xi32>
    %29 = vector.broadcast %27 : i32 to vector<1x512xi32>
    %30 = arith.addi %29, %28 : vector<1x512xi32>
    %c700_i32 = arith.constant 700 : i32
    %31 = vector.broadcast %c700_i32 : i32 to vector<1x512xi32>
    %32 = arith.cmpi slt, %30, %31 : vector<1x512xi32>
    %cst_13 = arith.constant 0x7F800000 : f32
    %33 = vector.shape_cast %32 : vector<1x512xi1> to vector<1x512xi1>
    %34 = vector.broadcast %33 : vector<1x512xi1> to vector<256x512xi1>
    %35 = vector.broadcast %cst_13 : f32 to vector<256x512xf32>
    %36 = arith.select %34, %18, %35 : vector<256x512xi1>, vector<256x512xf32>
    %c0_14 = arith.constant 0 : index
    %c0_15 = arith.constant 0 : index
    %37 = vector.load %arg7[%c0_14, %c0_15] : memref<256x1xf32, #tpu.memory_space<vmem>>, vector<256x1xf32>
    %cst_16 = arith.constant dense<0x7F800000> : vector<256xf32>
    %38 = vector.multi_reduction <minimumf>, %36, %cst_16 [1] : vector<256x512xf32> to vector<256xf32>
    %39 = vector.shape_cast %38 : vector<256xf32> to vector<256x1xf32>
    %40 = arith.minimumf %37, %39 : vector<256x1xf32>
    %c0_17 = arith.constant 0 : index
    %c0_18 = arith.constant 0 : index
    %41 = vector.load %arg7[%c0_17, %c0_18] : memref<256x1xf32, #tpu.memory_space<vmem>>, vector<256x1xf32>
    tpu.vector_store %arg7[%c0_17, %c0_18], %40 {strides = array<i32>} : memref<256x1xf32, #tpu.memory_space<vmem>>, vector<256x1xf32>,
    %c256_i32 = arith.constant 256 : i32
    %42 = arith.muli %arg1, %c256_i32 : i32
    %43 = tpu.iota {dimensions = array<i32: 0>} : vector<256x1xi32>
    %44 = vector.broadcast %42 : i32 to vector<256x1xi32>
    %45 = arith.addi %44, %43 : vector<256x1xi32>
    %c300_i32 = arith.constant 300 : i32
    %46 = vector.broadcast %c300_i32 : i32 to vector<256x1xi32>
    %47 = arith.cmpi slt, %45, %46 : vector<256x1xi32>
    %cst_19 = arith.constant 0x7F800000 : f32
    %48 = vector.shape_cast %47 : vector<256x1xi1> to vector<256x1xi1>
    %49 = vector.broadcast %48 : vector<256x1xi1> to vector<256x512xi1>
    %50 = vector.broadcast %cst_19 : f32 to vector<256x512xf32>
    %51 = arith.select %49, %18, %50 : vector<256x512xi1>, vector<256x512xf32>
    %cst_20 = arith.constant dense<0x7F800000> : vector<512xf32>
    %52 = vector.multi_reduction <minimumf>, %51, %cst_20 [0] : vector<256x512xf32> to vector<512xf32>
    %53 = vector.shape_cast %52 : vector<512xf32> to vector<1x512xf32>
    %c512_i32_21 = arith.constant 512 : i32
    %54 = arith.muli %arg2, %c512_i32_21 : i32
    %55 = tpu.assume_multiple %54, 512 : i32
    %c0_22 = arith.constant 0 : index
    %56 = arith.index_cast %55 : i32 to index
    %57 = vector.load %arg8[%c0_22, %56] : memref<1x1024xf32, #tpu.memory_space<vmem>>, vector<1x512xf32>
    %58 = arith.minimumf %57, %53 : vector<1x512xf32>
    %c0_23 = arith.constant 0 : index
    %59 = arith.index_cast %55 : i32 to index
    %60 = vector.load %arg8[%c0_23, %59] : memref<1x1024xf32, #tpu.memory_space<vmem>>, vector<1x512xf32>
    tpu.vector_store %arg8[%c0_23, %59], %58 {strides = array<i32>} : memref<1x1024xf32, #tpu.memory_space<vmem>>, vector<1x512xf32>,
    %c1_i32 = arith.constant 1 : i32
    %61 = arith.cmpi eq, %arg2, %c1_i32 : i32
    %62 = arith.extui %61 : i1 to i32
    %c0_i32_24 = arith.constant 0 : i32
    %63 = arith.cmpi ne, %62, %c0_i32_24 : i32
    scf.if %63 {
      %c0_28 = arith.constant 0 : index
      %c0_29 = arith.constant 0 : index
      %69 = vector.load %arg7[%c0_28, %c0_29] : memref<256x1xf32, #tpu.memory_space<vmem>>, vector<256x1xf32>
      %c0_30 = arith.constant 0 : index
      %c0_31 = arith.constant 0 : index
      %c0_32 = arith.constant 0 : index
      %70 = vector.load %arg5[%c0_30, %c0_31, %c0_32] : memref<1x256x1xf32, #tpu.memory_space<vmem>>, vector<1x256x1xf32>
      %71 = vector.shape_cast %70 : vector<1x256x1xf32> to vector<256x1xf32>
      %72 = vector.shape_cast %69 : vector<256x1xf32> to vector<1x256x1xf32>
      tpu.vector_store %arg5[%c0_30, %c0_31, %c0_32], %72 {strides = array<i32>} : memref<1x256x1xf32, #tpu.memory_space<vmem>>, vector<1x256x1xf32>,
    } else {
    }
    %c1_i32_25 = arith.constant 1 : i32
    %64 = arith.cmpi eq, %arg1, %c1_i32_25 : i32
    %c1_i32_26 = arith.constant 1 : i32
    %65 = arith.cmpi eq, %arg2, %c1_i32_26 : i32
    %66 = arith.andi %64, %65 : i1
    %67 = arith.extui %66 : i1 to i32
    %c0_i32_27 = arith.constant 0 : i32
    %68 = arith.cmpi ne, %67, %c0_i32_27 : i32
    scf.if %68 {
      %c0_28 = arith.constant 0 : index
      %c0_29 = arith.constant 0 : index
      %69 = vector.load %arg8[%c0_28, %c0_29] : memref<1x1024xf32, #tpu.memory_space<vmem>>, vector<1x1024xf32>
      %c0_30 = arith.constant 0 : index
      %c0_31 = arith.constant 0 : index
      %c0_32 = arith.constant 0 : index
      %70 = vector.load %arg6[%c0_30, %c0_31, %c0_32] : memref<1x1x1024xf32, #tpu.memory_space<vmem>>, vector<1x1x1024xf32>
      %71 = vector.shape_cast %70 : vector<1x1x1024xf32> to vector<1x1024xf32>
      %72 = vector.shape_cast %69 : vector<1x1024xf32> to vector<1x1x1024xf32>
      tpu.vector_store %arg6[%c0_30, %c0_31, %c0_32], %72 {strides = array<i32>} : memref<1x1x1024xf32, #tpu.memory_space<vmem>>, vector<1x1x1024xf32>,
    } else {
    }
    return
  }
  func.func @transform_0(%arg0: i32, %arg1: i32, %arg2: i32) -> (i32, i32, i32) {
    %c0_i32 = arith.constant 0 : i32
    %c0_i32_0 = arith.constant 0 : i32
    return %arg0, %arg1, %c0_i32 : i32, i32, i32
  }
  func.func @transform_1(%arg0: i32, %arg1: i32, %arg2: i32) -> (i32, i32, i32) {
    %c0_i32 = arith.constant 0 : i32
    %c0_i32_0 = arith.constant 0 : i32
    return %arg0, %c0_i32, %arg2 : i32, i32, i32
  }
  func.func @transform_2(%arg0: i32, %arg1: i32, %arg2: i32) -> (i32, i32, i32) {
    %c0_i32 = arith.constant 0 : i32
    %c0_i32_0 = arith.constant 0 : i32
    return %arg0, %arg1, %c0_i32 : i32, i32, i32
  }
  func.func @transform_3(%arg0: i32, %arg1: i32, %arg2: i32) -> (i32, i32, i32) {
    %c0_i32 = arith.constant 0 : i32
    %c0_i32_0 = arith.constant 0 : i32
    %c0_i32_1 = arith.constant 0 : i32
    return %arg0, %c0_i32, %c0_i32_0 : i32, i32, i32
  }
}

</mosaic_0001>

<llo_original>
// kernel: chamfer_distance_l2.1
$region0: #{chamfer_distance_l2.1}
  #allocation0 [shape = 'u32[]', space=smem, size = 0x4, offset = 0x4, fixed_abs, tag = 'smem constant byte address 0x4 - core index']
  #allocation1 [shape = 'u32[72,128]{1,0:T(1,128)}', space=vmem, size = 0x9000, scoped, tag = 'internal scratch']
  #allocation2 [shape = 'f32[256,1]{1,0:T(8,128)}', space=vmem, size = 0x20000, scoped, tag = 'scratch operand']
  #allocation3 [shape = 'f32[1,1024]{1,0:T(1,128)}', space=vmem, size = 0x1000, scoped, tag = 'scratch operand']
  %s0 = inlined_call_operand.vmem [shape: f32[2,512,8], index: 0, kind: input, shape index: {}]
  %s1 = inlined_call_operand.vmem [shape: f32[2,8,1024], index: 1, kind: input, shape index: {}]
  %s2 = inlined_call_operand.vmem [shape: f32[2,512,1], index: 2, kind: output, shape index: {0}]
  %s3 = inlined_call_operand.vmem [shape: f32[2,1,1024], index: 3, kind: output, shape index: {1}]
  %4 = xla_tuple %s2, %s3
  %s5 = sld [smem:[#allocation0]]
  $region65: #{chamfer_distance_l2.1} parent=0
    _
  %s7 = ssub.s32 1, %s5
  %s8 = scalar_select 0, %s7, %s5
  loop: start=0, step=1, limit=10
  $region2: #{chamfer_distance_l2.1} parent=0 // loop_pre_header
    _
  $region3: #{chamfer_distance_l2.1} parent=0 // loop_header
    %s10 = sphi 0, %s14
    %p11 = scmp.ge.s32.totalorder %s10, 10
    %s17 = sphi 0, %s36
    %s18 = sphi 0, %s32
    %s19 = sphi 0, %s28
    %s20 = sphi 0, %s17
    %s21 = sphi 0, %s18
    %s22 = sphi 0, %s19
    %s23 = sphi 0, %s20
    %s24 = sphi 0, %s21
    %s25 = sphi 0, %s22
    %s41 = sphi 0, %s43
    %s44 = sphi 0, %s41
    %s45 = sphi 0, %s44
    %s61 = sphi 0, %s45
    %s69 = sphi 0, %s71
    %s72 = sphi 0, %s69
    %s73 = sphi 0, %s72
    %s89 = sphi 0, %s73
    %s97 = sphi 0, %s99
    %s100 = sphi 0, %s97
    %s101 = sphi 0, %s100
    %s117 = sphi 0, %s101
    %s123 = sphi 0, %s125
    %s126 = sphi 0, %s123
    %s127 = sphi 0, %s126
    %s143 = sphi 0, %s127
  $region4: #{chamfer_distance_l2.1} parent=0 // loop_header_branch
    %13 = sbr.rel (%p11) target = $region8
  $region5: #{chamfer_distance_l2.1} parent=0 // loop_body
    %s15 = ssub.s32 %s10, 1
    %s16 = ssub.s32 %s10, 2
    %s26 = sadd.s32 1, %s19
    %p27 = scmp.ge.s32.totalorder %s26, 2
    %s28 = scalar_select %p27, 0, %s26
    %s29 = sadd.s32 1, %s18
    %s30 = scalar_select %p27, %s29, %s18
    %p31 = scmp.ge.s32.totalorder %s30, 2
    %s32 = scalar_select %p31, 0, %s30
    %s33 = sadd.s32 1, %s17
    %s34 = scalar_select %p31, %s33, %s17
    %p35 = scmp.ge.s32.totalorder %s34, 2
    %s36 = scalar_select %p35, 0, %s34
    %s37 = ssub.s32 %s17, %s36
    %s38 = ssub.s32 %s18, %s32
    %s39 = sor.u32 %s37, %s38
    %p40 = scmp.eq.s32.totalorder %s39, 0
    %s42 = sadd.s32 %s41, 1
    %s43 = scalar_select %p40, %s41, %s42
    %p46 = pneg %p40
    %p47 = scmp.eq.s32.totalorder %s10, 7
    %p48 = por %p46, %p47
    %p49 = scmp.ne.s32.totalorder %s41, %s44
    %p50 = scmp.eq.s32.totalorder %s10, 0
    %p51 = por %p49, %p50
    %p52 = scmp.ne.s32.totalorder %s41, %s44
    %p53 = scmp.eq.s32.totalorder %s15, 7
    %p54 = por %p52, %p53
    %p55 = scmp.ne.s32.totalorder %s44, %s45
    %p56 = scmp.eq.s32.totalorder %s15, 0
    %p57 = por %p55, %p56
    %p58 = scmp.ne.s32.totalorder %s44, %s45
    %p59 = scmp.eq.s32.totalorder %s16, 7
    %p60 = por %p58, %p59
    %p62 = scmp.ne.s32.totalorder %s45, %s61
    %p63 = scmp.eq.s32.totalorder %s16, 0
    %p64 = por %p62, %p63
    %s65 = ssub.s32 %s17, %s36
    %s66 = ssub.s32 %s19, %s28
    %s67 = sor.u32 %s65, %s66
    %p68 = scmp.eq.s32.totalorder %s67, 0
    %s70 = sadd.s32 %s69, 1
    %s71 = scalar_select %p68, %s69, %s70
    %p74 = pneg %p68
    %p75 = scmp.eq.s32.totalorder %s10, 7
    %p76 = por %p74, %p75
    %p77 = scmp.ne.s32.totalorder %s69, %s72
    %p78 = scmp.eq.s32.totalorder %s10, 0
    %p79 = por %p77, %p78
    %p80 = scmp.ne.s32.totalorder %s69, %s72
    %p81 = scmp.eq.s32.totalorder %s15, 7
    %p82 = por %p80, %p81
    %p83 = scmp.ne.s32.totalorder %s72, %s73
    %p84 = scmp.eq.s32.totalorder %s15, 0
    %p85 = por %p83, %p84
    %p86 = scmp.ne.s32.totalorder %s72, %s73
    %p87 = scmp.eq.s32.totalorder %s16, 7
    %p88 = por %p86, %p87
    %p90 = scmp.ne.s32.totalorder %s73, %s89
    %p91 = scmp.eq.s32.totalorder %s16, 0
    %p92 = por %p90, %p91
    %s93 = ssub.s32 %s17, %s36
    %s94 = ssub.s32 %s18, %s32
    %s95 = sor.u32 %s93, %s94
    %p96 = scmp.eq.s32.totalorder %s95, 0
    %s98 = sadd.s32 %s97, 1
    %s99 = scalar_select %p96, %s97, %s98
    %p102 = pneg %p96
    %p103 = scmp.eq.s32.totalorder %s10, 7
    %p104 = por %p102, %p103
    %p105 = scmp.ne.s32.totalorder %s97, %s100
    %p106 = scmp.eq.s32.totalorder %s10, 0
    %p107 = por %p105, %p106
    %p108 = scmp.ne.s32.totalorder %s97, %s100
    %p109 = scmp.eq.s32.totalorder %s15, 7
    %p110 = por %p108, %p109
    %p111 = scmp.ne.s32.totalorder %s100, %s101
    %p112 = scmp.eq.s32.totalorder %s15, 0
    %p113 = por %p111, %p112
    %p114 = scmp.ne.s32.totalorder %s100, %s101
    %p115 = scmp.eq.s32.totalorder %s16, 7
    %p116 = por %p114, %p115
    %p118 = scmp.ne.s32.totalorder %s101, %s117
    %p119 = scmp.eq.s32.totalorder %s16, 0
    %p120 = por %p118, %p119
    %s121 = ssub.s32 %s17, %s36
    %p122 = scmp.eq.s32.totalorder %s121, 0
    %s124 = sadd.s32 %s123, 1
    %s125 = scalar_select %p122, %s123, %s124
    %p128 = pneg %p122
    %p129 = scmp.eq.s32.totalorder %s10, 7
    %p130 = por %p128, %p129
    %p131 = scmp.ne.s32.totalorder %s123, %s126
    %p132 = scmp.eq.s32.totalorder %s10, 0
    %p133 = por %p131, %p132
    %p134 = scmp.ne.s32.totalorder %s123, %s126
    %p135 = scmp.eq.s32.totalorder %s15, 7
    %p136 = por %p134, %p135
    %p137 = scmp.ne.s32.totalorder %s126, %s127
    %p138 = scmp.eq.s32.totalorder %s15, 0
    %p139 = por %p137, %p138
    %p140 = scmp.ne.s32.totalorder %s126, %s127
    %p141 = scmp.eq.s32.totalorder %s16, 7
    %p142 = por %p140, %p141
    %p144 = scmp.ne.s32.totalorder %s127, %s143
    %p145 = scmp.eq.s32.totalorder %s16, 0
    %p146 = por %p144, %p145
    %p147 = scmp.le.s32.totalorder 1, %s10
    %p148 = scmp.lt.s32.totalorder %s10, 9
    %p149 = pnand %p147, %p148
    %p150 = pneg %p149
    // Predicated region
    $region9: #{chamfer_distance_l2.1} parent=5 // pred_check
      _
    $region10: #{chamfer_distance_l2.1} parent=5 // pred_check_branch
      %152 = sbr.rel (%p149) target = $region12
    $region11: #{chamfer_distance_l2.1} parent=5 // pred_region
      %s153 = ssub.s32 %s10, 1
    $region12: #{chamfer_distance_l2.1} parent=5 // pred_fallthru
      _
    %p154 = scmp.lt.s32.totalorder %s10, 8
    // Predicated region
    $region13: #{chamfer_distance_l2.1} parent=5 // pred_check
      %p155 = pneg %p154
    $region14: #{chamfer_distance_l2.1} parent=5 // pred_check_branch
      %157 = sbr.rel (%p155) target = $region16
    $region15: #{chamfer_distance_l2.1} parent=5 // pred_region
      // Predicated region
      $region17: #{chamfer_distance_l2.1} parent=15 // pred_check
        %p158 = pneg %p51
      $region18: #{chamfer_distance_l2.1} parent=15 // pred_check_branch
        %160 = sbr.rel (%p158) target = $region20
      $region19: #{chamfer_distance_l2.1} parent=15 // pred_region
        %s161 = smul.u32 32, %s18
        %p162 = scmp.lt.s32.totalorder %s17, 1
        %s163 = scalar_select %p162, %s17, 1
        %p164 = scmp.lt.s32.totalorder %s161, 63
        %s165 = scalar_select %p164, %s161, 63
        %s166 = smul.addr %s163, 64
        %s167 = sadd.s32 %s165, %s166
        %s168 = smul.addr %s167, 8
        %s169 = scalar_lea.vmem %s0, %s168
        %s170 = smul.u32 32, %s18
      $region20: #{chamfer_distance_l2.1} parent=15 // pred_fallthru
        _
      // Predicated region
      $region21: #{chamfer_distance_l2.1} parent=15 // pred_check
        %p171 = pneg %p79
      $region22: #{chamfer_distance_l2.1} parent=15 // pred_check_branch
        %173 = sbr.rel (%p171) target = $region24
      $region23: #{chamfer_distance_l2.1} parent=15 // pred_region
        %s174 = smul.u32 4, %s19
        %p175 = scmp.lt.s32.totalorder %s17, 1
        %s176 = scalar_select %p175, %s17, 1
        %p177 = scmp.lt.s32.totalorder %s174, 7
        %s178 = scalar_select %p177, %s174, 7
        %s179 = smul.addr %s176, 8
        %s180 = sadd.s32 %s178, %s179
        %s181 = smul.addr %s180, 8
        %s182 = scalar_lea.vmem %s1, %s181
        %s183 = smul.u32 4, %s19
      $region24: #{chamfer_distance_l2.1} parent=15 // pred_fallthru
        _
    $region16: #{chamfer_distance_l2.1} parent=5 // pred_fallthru
      _
    %p184 = scmp.le.s32.totalorder 1, %s10
    %p185 = scmp.lt.s32.totalorder %s10, 9
    %p186 = pnand %p184, %p185
    %p187 = pneg %p186
    // Predicated region
    $region25: #{chamfer_distance_l2.1} parent=5 // pred_check
      _
    $region26: #{chamfer_distance_l2.1} parent=5 // pred_check_branch
      %189 = sbr.rel (%p186) target = $region28
    $region27: #{chamfer_distance_l2.1} parent=5 // pred_region
      %s190 = ssub.s32 %s10, 1
      %s191 = smul.u32 32, %s21
      %p192 = scmp.lt.s32.totalorder %s20, 1
      %s193 = scalar_select %p192, %s20, 1
      %p194 = scmp.lt.s32.totalorder %s191, 63
      %s195 = scalar_select %p194, %s191, 63
      %s196 = smul.addr %s193, 64
      %s197 = sadd.s32 %s195, %s196
      %s198 = smul.addr %s197, 8
      %s199 = scalar_lea.vmem %s0, %s198
      %p200 = pneg %p57
      %p201 = pneg %p54
      %s202 = smul.u32 4, %s22
      %p203 = scmp.lt.s32.totalorder %s20, 1
      %s204 = scalar_select %p203, %s20, 1
      %p205 = scmp.lt.s32.totalorder %s202, 7
      %s206 = scalar_select %p205, %s202, 7
      %s207 = smul.addr %s204, 8
      %s208 = sadd.s32 %s206, %s207
      %s209 = smul.addr %s208, 8
      %s210 = scalar_lea.vmem %s1, %s209
      %p211 = pneg %p85
      %p212 = pneg %p82
      %p213 = pneg %p113
      %p214 = pneg %p110
      %s215 = smul.u32 32, %s21
      %p216 = scmp.lt.s32.totalorder %s20, 1
      %s217 = scalar_select %p216, %s20, 1
      %p218 = scmp.lt.s32.totalorder %s215, 63
      %s219 = scalar_select %p218, %s215, 63
      %s220 = smul.addr %s217, 64
      %s221 = sadd.s32 %s219, %s220
      %s222 = smul.addr %s221, 8
      %s223 = scalar_lea.vmem %s2, %s222
      %p224 = pneg %p139
      %p225 = pneg %p136
      %p226 = scmp.lt.s32.totalorder %s20, 1
      %s227 = scalar_select %p226, %s20, 1
      %s228 = smul.addr %s227, 8
      %s229 = scalar_lea.vmem %s3, %s228
      %s230 = smul.u32 32, %s21
      %p231 = scmp.lt.s32.totalorder %s20, 1
      %s232 = scalar_select %p231, %s20, 1
      %p233 = scmp.lt.s32.totalorder %s230, 63
      %s234 = scalar_select %p233, %s230, 63
      %s235 = smul.addr %s232, 64
      %s236 = sadd.s32 %s234, %s235
      %s237 = smul.addr %s236, 8
      %s238 = scalar_lea.vmem %s0, %s237
      %s239 = smul.u32 32, %s21
      %s240 = smul.u32 4, %s22
      %p241 = scmp.lt.s32.totalorder %s20, 1
      %s242 = scalar_select %p241, %s20, 1
      %p243 = scmp.lt.s32.totalorder %s240, 7
      %s244 = scalar_select %p243, %s240, 7
      %s245 = smul.addr %s242, 8
      %s246 = sadd.s32 %s244, %s245
      %s247 = smul.addr %s246, 8
      %s248 = scalar_lea.vmem %s1, %s247
      %s249 = smul.u32 4, %s22
      %s250 = smul.u32 32, %s21
      %p251 = scmp.lt.s32.totalorder %s20, 1
      %s252 = scalar_select %p251, %s20, 1
      %p253 = scmp.lt.s32.totalorder %s250, 63
      %s254 = scalar_select %p253, %s250, 63
      %s255 = smul.addr %s252, 64
      %s256 = sadd.s32 %s254, %s255
      %s257 = smul.addr %s256, 8
      %s258 = scalar_lea.vmem %s2, %s257
      %s259 = smul.u32 32, %s21
      %p260 = scmp.lt.s32.totalorder %s20, 1
      %s261 = scalar_select %p260, %s20, 1
      %s262 = smul.addr %s261, 8
      %s263 = scalar_lea.vmem %s3, %s262
      %v264 = vld [vmem:[%s238] sm:$0xff]
      %v265 = vld [vmem:[%s238 + $0x8] sm:$0xff]
      %v266 = vld [vmem:[%s238 + $0x10] sm:$0xff]
      %v267 = vld [vmem:[%s238 + $0x18] sm:$0xff]
      %v268 = vld [vmem:[%s238 + $0x20] sm:$0xff]
      %v269 = vld [vmem:[%s238 + $0x28] sm:$0xff]
      %v270 = vld [vmem:[%s238 + $0x30] sm:$0xff]
      %v271 = vld [vmem:[%s238 + $0x38] sm:$0xff]
      %v272 = vld [vmem:[%s238 + $0x40] sm:$0xff]
      %v273 = vld [vmem:[%s238 + $0x48] sm:$0xff]
      %v274 = vld [vmem:[%s238 + $0x50] sm:$0xff]
      %v275 = vld [vmem:[%s238 + $0x58] sm:$0xff]
      %v276 = vld [vmem:[%s238 + $0x60] sm:$0xff]
      %v277 = vld [vmem:[%s238 + $0x68] sm:$0xff]
      %v278 = vld [vmem:[%s238 + $0x70] sm:$0xff]
      %v279 = vld [vmem:[%s238 + $0x78] sm:$0xff]
      %v280 = vld [vmem:[%s238 + $0x80] sm:$0xff]
      %v281 = vld [vmem:[%s238 + $0x88] sm:$0xff]
      %v282 = vld [vmem:[%s238 + $0x90] sm:$0xff]
      %v283 = vld [vmem:[%s238 + $0x98] sm:$0xff]
      %v284 = vld [vmem:[%s238 + $0xa0] sm:$0xff]
      %v285 = vld [vmem:[%s238 + $0xa8] sm:$0xff]
      %v286 = vld [vmem:[%s238 + $0xb0] sm:$0xff]
      %v287 = vld [vmem:[%s238 + $0xb8] sm:$0xff]
      %v288 = vld [vmem:[%s238 + $0xc0] sm:$0xff]
      %v289 = vld [vmem:[%s238 + $0xc8] sm:$0xff]
      %v290 = vld [vmem:[%s238 + $0xd0] sm:$0xff]
      %v291 = vld [vmem:[%s238 + $0xd8] sm:$0xff]
      %v292 = vld [vmem:[%s238 + $0xe0] sm:$0xff]
      %v293 = vld [vmem:[%s238 + $0xe8] sm:$0xff]
      %v294 = vld [vmem:[%s238 + $0xf0] sm:$0xff]
      %v295 = vld [vmem:[%s238 + $0xf8] sm:$0xff]
      %v296 = vld [vmem:[%s248] sm:$0xff]
      %v297 = vld [vmem:[%s248 + $0x8] sm:$0xff]
      %v298 = vld [vmem:[%s248 + $0x10] sm:$0xff]
      %v299 = vld [vmem:[%s248 + $0x18] sm:$0xff]
      %v300 = vmul.f32 %v264, %v264
      %v301 = vmul.f32 %v265, %v265
      %v302 = vmul.f32 %v266, %v266
      %v303 = vmul.f32 %v267, %v267
      %v304 = vmul.f32 %v268, %v268
      %v305 = vmul.f32 %v269, %v269
      %v306 = vmul.f32 %v270, %v270
      %v307 = vmul.f32 %v271, %v271
      %v308 = vmul.f32 %v272, %v272
      %v309 = vmul.f32 %v273, %v273
      %v310 = vmul.f32 %v274, %v274
      %v311 = vmul.f32 %v275, %v275
      %v312 = vmul.f32 %v276, %v276
      %v313 = vmul.f32 %v277, %v277
      %v314 = vmul.f32 %v278, %v278
      %v315 = vmul.f32 %v279, %v279
      %v316 = vmul.f32 %v280, %v280
      %v317 = vmul.f32 %v281, %v281
      %v318 = vmul.f32 %v282, %v282
      %v319 = vmul.f32 %v283, %v283
      %v320 = vmul.f32 %v284, %v284
      %v321 = vmul.f32 %v285, %v285
      %v322 = vmul.f32 %v286, %v286
      %v323 = vmul.f32 %v287, %v287
      %v324 = vmul.f32 %v288, %v288
      %v325 = vmul.f32 %v289, %v289
      %v326 = vmul.f32 %v290, %v290
      %v327 = vmul.f32 %v291, %v291
      %v328 = vmul.f32 %v292, %v292
      %v329 = vmul.f32 %v293, %v293
      %v330 = vmul.f32 %v294, %v294
      %v331 = vmul.f32 %v295, %v295
      %vm332 = vcmask 64512
      %v333 = vsel %vm332, %v300, 0.0
      %334 = vadd.xlane.f32.xlu0 %v333
      %v335 = vpop.xlane.xlu0 %334
      %v336 = vsel %vm332, %v301, 0.0
      %337 = vadd.xlane.f32.xlu0 %v336
      %v338 = vpop.xlane.xlu0 %337
      %v339 = vsel %vm332, %v302, 0.0
      %340 = vadd.xlane.f32.xlu0 %v339
      %v341 = vpop.xlane.xlu0 %340
      %v342 = vsel %vm332, %v303, 0.0
      %343 = vadd.xlane.f32.xlu0 %v342
      %v344 = vpop.xlane.xlu0 %343
      %v345 = vsel %vm332, %v304, 0.0
      %346 = vadd.xlane.f32.xlu0 %v345
      %v347 = vpop.xlane.xlu0 %346
      %v348 = vsel %vm332, %v305, 0.0
      %349 = vadd.xlane.f32.xlu0 %v348
      %v350 = vpop.xlane.xlu0 %349
      %v351 = vsel %vm332, %v306, 0.0
      %352 = vadd.xlane.f32.xlu0 %v351
      %v353 = vpop.xlane.xlu0 %352
      %v354 = vsel %vm332, %v307, 0.0
      %355 = vadd.xlane.f32.xlu0 %v354
      %v356 = vpop.xlane.xlu0 %355
      %v357 = vsel %vm332, %v308, 0.0
      %358 = vadd.xlane.f32.xlu0 %v357
      %v359 = vpop.xlane.xlu0 %358
      %v360 = vsel %vm332, %v309, 0.0
      %361 = vadd.xlane.f32.xlu0 %v360
      %v362 = vpop.xlane.xlu0 %361
      %v363 = vsel %vm332, %v310, 0.0
      %364 = vadd.xlane.f32.xlu0 %v363
      %v365 = vpop.xlane.xlu0 %364
      %v366 = vsel %vm332, %v311, 0.0
      %367 = vadd.xlane.f32.xlu0 %v366
      %v368 = vpop.xlane.xlu0 %367
      %v369 = vsel %vm332, %v312, 0.0
      %370 = vadd.xlane.f32.xlu0 %v369
      %v371 = vpop.xlane.xlu0 %370
      %v372 = vsel %vm332, %v313, 0.0
      %373 = vadd.xlane.f32.xlu0 %v372
      %v374 = vpop.xlane.xlu0 %373
      %v375 = vsel %vm332, %v314, 0.0
      %376 = vadd.xlane.f32.xlu0 %v375
      %v377 = vpop.xlane.xlu0 %376
      %v378 = vsel %vm332, %v315, 0.0
      %379 = vadd.xlane.f32.xlu0 %v378
      %v380 = vpop.xlane.xlu0 %379
      %v381 = vsel %vm332, %v316, 0.0
      %382 = vadd.xlane.f32.xlu0 %v381
      %v383 = vpop.xlane.xlu0 %382
      %v384 = vsel %vm332, %v317, 0.0
      %385 = vadd.xlane.f32.xlu0 %v384
      %v386 = vpop.xlane.xlu0 %385
      %v387 = vsel %vm332, %v318, 0.0
      %388 = vadd.xlane.f32.xlu0 %v387
      %v389 = vpop.xlane.xlu0 %388
      %v390 = vsel %vm332, %v319, 0.0
      %391 = vadd.xlane.f32.xlu0 %v390
      %v392 = vpop.xlane.xlu0 %391
      %v393 = vsel %vm332, %v320, 0.0
      %394 = vadd.xlane.f32.xlu0 %v393
      %v395 = vpop.xlane.xlu0 %394
      %v396 = vsel %vm332, %v321, 0.0
      %397 = vadd.xlane.f32.xlu0 %v396
      %v398 = vpop.xlane.xlu0 %397
      %v399 = vsel %vm332, %v322, 0.0
      %400 = vadd.xlane.f32.xlu0 %v399
      %v401 = vpop.xlane.xlu0 %400
      %v402 = vsel %vm332, %v323, 0.0
      %403 = vadd.xlane.f32.xlu0 %v402
      %v404 = vpop.xlane.xlu0 %403
      %v405 = vsel %vm332, %v324, 0.0
      %406 = vadd.xlane.f32.xlu0 %v405
      %v407 = vpop.xlane.xlu0 %406
      %v408 = vsel %vm332, %v325, 0.0
      %409 = vadd.xlane.f32.xlu0 %v408
      %v410 = vpop.xlane.xlu0 %409
      %v411 = vsel %vm332, %v326, 0.0
      %412 = vadd.xlane.f32.xlu0 %v411
      %v413 = vpop.xlane.xlu0 %412
      %v414 = vsel %vm332, %v327, 0.0
      %415 = vadd.xlane.f32.xlu0 %v414
      %v416 = vpop.xlane.xlu0 %415
      %v417 = vsel %vm332, %v328, 0.0
      %418 = vadd.xlane.f32.xlu0 %v417
      %v419 = vpop.xlane.xlu0 %418
      %v420 = vsel %vm332, %v329, 0.0
      %421 = vadd.xlane.f32.xlu0 %v420
      %v422 = vpop.xlane.xlu0 %421
      %v423 = vsel %vm332, %v330, 0.0
      %424 = vadd.xlane.f32.xlu0 %v423
      %v425 = vpop.xlane.xlu0 %424
      %v426 = vsel %vm332, %v331, 0.0
      %427 = vadd.xlane.f32.xlu0 %v426
      %v428 = vpop.xlane.xlu0 %427
      %v429 = vmul.f32 %v296, %v296
      %v430 = vmul.f32 %v297, %v297
      %v431 = vmul.f32 %v298, %v298
      %v432 = vmul.f32 %v299, %v299
      %v433 = vrot.slane %v429, 4
      %v434 = vadd.f32 %v429, %v433
      %v435 = vrot.slane %v434, 2
      %v436 = vadd.f32 %v434, %v435
      %v437 = vrot.slane %v436, 1
      %v438 = vadd.f32 %v436, %v437
      %v439 = vrot.slane %v430, 4
      %v440 = vadd.f32 %v430, %v439
      %v441 = vrot.slane %v440, 2
      %v442 = vadd.f32 %v440, %v441
      %v443 = vrot.slane %v442, 1
      %v444 = vadd.f32 %v442, %v443
      %v445 = vrot.slane %v431, 4
      %v446 = vadd.f32 %v431, %v445
      %v447 = vrot.slane %v446, 2
      %v448 = vadd.f32 %v446, %v447
      %v449 = vrot.slane %v448, 1
      %v450 = vadd.f32 %v448, %v449
      %v451 = vrot.slane %v432, 4
      %v452 = vadd.f32 %v432, %v451
      %v453 = vrot.slane %v452, 2
      %v454 = vadd.f32 %v452, %v453
      %v455 = vrot.slane %v454, 1
      %v456 = vadd.f32 %v454, %v455
      %v457 = vmul.f32 %v264, -2.0
      %v458 = vmul.f32 %v265, -2.0
      %v459 = vmul.f32 %v266, -2.0
      %v460 = vmul.f32 %v267, -2.0
      %v461 = vmul.f32 %v268, -2.0
      %v462 = vmul.f32 %v269, -2.0
      %v463 = vmul.f32 %v270, -2.0
      %v464 = vmul.f32 %v271, -2.0
      %v465 = vmul.f32 %v272, -2.0
      %v466 = vmul.f32 %v273, -2.0
      %v467 = vmul.f32 %v274, -2.0
      %v468 = vmul.f32 %v275, -2.0
      %v469 = vmul.f32 %v276, -2.0
      %v470 = vmul.f32 %v277, -2.0
      %v471 = vmul.f32 %v278, -2.0
      %v472 = vmul.f32 %v279, -2.0
      %v473 = vmul.f32 %v280, -2.0
      %v474 = vmul.f32 %v281, -2.0
      %v475 = vmul.f32 %v282, -2.0
      %v476 = vmul.f32 %v283, -2.0
      %v477 = vmul.f32 %v284, -2.0
      %v478 = vmul.f32 %v285, -2.0
      %v479 = vmul.f32 %v286, -2.0
      %v480 = vmul.f32 %v287, -2.0
      %v481 = vmul.f32 %v288, -2.0
      %v482 = vmul.f32 %v289, -2.0
      %v483 = vmul.f32 %v290, -2.0
      %v484 = vmul.f32 %v291, -2.0
      %v485 = vmul.f32 %v292, -2.0
      %v486 = vmul.f32 %v293, -2.0
      %v487 = vmul.f32 %v294, -2.0
      %v488 = vmul.f32 %v295, -2.0
      %v490 = vsel %vm332, %v457, 0
      %v493 = vsel %vm332, %v458, 0
      %v496 = vsel %vm332, %v459, 0
      %v499 = vsel %vm332, %v460, 0
      %v502 = vsel %vm332, %v461, 0
      %v505 = vsel %vm332, %v462, 0
      %v508 = vsel %vm332, %v463, 0
      %v511 = vsel %vm332, %v464, 0
      %v514 = vsel %vm332, %v465, 0
      %v517 = vsel %vm332, %v466, 0
      %v520 = vsel %vm332, %v467, 0
      %v523 = vsel %vm332, %v468, 0
      %v526 = vsel %vm332, %v469, 0
      %v529 = vsel %vm332, %v470, 0
      %v532 = vsel %vm332, %v471, 0
      %v535 = vsel %vm332, %v472, 0
      %v538 = vsel %vm332, %v473, 0
      %v541 = vsel %vm332, %v474, 0
      %v544 = vsel %vm332, %v475, 0
      %v547 = vsel %vm332, %v476, 0
      %v550 = vsel %vm332, %v477, 0
      %v553 = vsel %vm332, %v478, 0
      %v556 = vsel %vm332, %v479, 0
      %v559 = vsel %vm332, %v480, 0
      %v562 = vsel %vm332, %v481, 0
      %v565 = vsel %vm332, %v482, 0
      %v568 = vsel %vm332, %v483, 0
      %v571 = vsel %vm332, %v484, 0
      %v574 = vsel %vm332, %v485, 0
      %v577 = vsel %vm332, %v486, 0
      %v580 = vsel %vm332, %v487, 0
      %v583 = vsel %vm332, %v488, 0
      %585 = vmatpush.msra.mxu0 0.0
      %586 = vmatpush.msra.mxu0 0.0
      %587 = vmatpush.msra.mxu0 0.0
      %588 = vmatpush.msra.mxu0 0.0
      %589 = vmatpush.msra.mxu0 0.0
      %590 = vmatpush.msra.mxu0 0.0
      %591 = vmatpush.msra.mxu0 0.0
      %592 = vmatpush.msra.mxu0 0.0
      %593 = vmatpush.msra.mxu0 0.0
      %594 = vmatpush.msra.mxu0 0.0
      %595 = vmatpush.msra.mxu0 0.0
      %596 = vmatpush.msra.mxu0 0.0
      %597 = vmatpush.msra.mxu0 0.0
      %598 = vmatpush.msra.mxu0 0.0
      %599 = vmatpush.msra.mxu0 0.0
      %v600 = vand.u32 %v296, 4294901760
      %601 = vmatpush.msra.mxu0 %v600
      %v602 = vand.u32 %v490, 4294901760
      %v603 = vsub.f32 %v490, %v602
      %v604 = vand.u32 %v603, 4294901760
      %v605 = vsub.f32 %v603, %v604
      %v606 = vand.u32 %v605, 4294901760
      %607 = vmatmul.f32.gmra.mxu0 %v606
      %v608 = vpop.f32.mrf.mxu0
      %v609 = vadd.f32 %v335, %v608
      %v610 = vand.u32 %v493, 4294901760
      %v611 = vsub.f32 %v493, %v610
      %v612 = vand.u32 %v611, 4294901760
      %v613 = vsub.f32 %v611, %v612
      %v614 = vand.u32 %v613, 4294901760
      %615 = vmatmul.f32.gmra.mxu0 %v614
      %v616 = vpop.f32.mrf.mxu0
      %v617 = vadd.f32 %v338, %v616
      %v618 = vand.u32 %v496, 4294901760
      %v619 = vsub.f32 %v496, %v618
      %v620 = vand.u32 %v619, 4294901760
      %v621 = vsub.f32 %v619, %v620
      %v622 = vand.u32 %v621, 4294901760
      %623 = vmatmul.f32.gmra.mxu0 %v622
      %v624 = vpop.f32.mrf.mxu0
      %v625 = vadd.f32 %v341, %v624
      %v626 = vand.u32 %v499, 4294901760
      %v627 = vsub.f32 %v499, %v626
      %v628 = vand.u32 %v627, 4294901760
      %v629 = vsub.f32 %v627, %v628
      %v630 = vand.u32 %v629, 4294901760
      %631 = vmatmul.f32.gmra.mxu0 %v630
      %v632 = vpop.f32.mrf.mxu0
      %v633 = vadd.f32 %v344, %v632
      %v634 = vand.u32 %v502, 4294901760
      %v635 = vsub.f32 %v502, %v634
      %v636 = vand.u32 %v635, 4294901760
      %v637 = vsub.f32 %v635, %v636
      %v638 = vand.u32 %v637, 4294901760
      %639 = vmatmul.f32.gmra.mxu0 %v638
      %v640 = vpop.f32.mrf.mxu0
      %v641 = vadd.f32 %v347, %v640
      %v642 = vand.u32 %v505, 4294901760
      %v643 = vsub.f32 %v505, %v642
      %v644 = vand.u32 %v643, 4294901760
      %v645 = vsub.f32 %v643, %v644
      %v646 = vand.u32 %v645, 4294901760
      %647 = vmatmul.f32.gmra.mxu0 %v646
      %v648 = vpop.f32.mrf.mxu0
      %v649 = vadd.f32 %v350, %v648
      %v650 = vand.u32 %v508, 4294901760
      %v651 = vsub.f32 %v508, %v650
      %v652 = vand.u32 %v651, 4294901760
      %v653 = vsub.f32 %v651, %v652
      %v654 = vand.u32 %v653, 4294901760
      %655 = vmatmul.f32.gmra.mxu0 %v654
      %v656 = vpop.f32.mrf.mxu0
      %v657 = vadd.f32 %v353, %v656
      %v658 = vand.u32 %v511, 4294901760
      %v659 = vsub.f32 %v511, %v658
      %v660 = vand.u32 %v659, 4294901760
      %v661 = vsub.f32 %v659, %v660
      %v662 = vand.u32 %v661, 4294901760
      %663 = vmatmul.f32.gmra.mxu0 %v662
      %v664 = vpop.f32.mrf.mxu0
      %v665 = vadd.f32 %v356, %v664
      %v666 = vand.u32 %v514, 4294901760
      %v667 = vsub.f32 %v514, %v666
      %v668 = vand.u32 %v667, 4294901760
      %v669 = vsub.f32 %v667, %v668
      %v670 = vand.u32 %v669, 4294901760
      %671 = vmatmul.f32.gmra.mxu0 %v670
      %v672 = vpop.f32.mrf.mxu0
      %v673 = vadd.f32 %v359, %v672
      %v674 = vand.u32 %v517, 4294901760
      %v675 = vsub.f32 %v517, %v674
      %v676 = vand.u32 %v675, 4294901760
      %v677 = vsub.f32 %v675, %v676
      %v678 = vand.u32 %v677, 4294901760
      %679 = vmatmul.f32.gmra.mxu0 %v678
      %v680 = vpop.f32.mrf.mxu0
      %v681 = vadd.f32 %v362, %v680
      %v682 = vand.u32 %v520, 4294901760
      %v683 = vsub.f32 %v520, %v682
      %v684 = vand.u32 %v683, 4294901760
      %v685 = vsub.f32 %v683, %v684
      %v686 = vand.u32 %v685, 4294901760
      %687 = vmatmul.f32.gmra.mxu0 %v686
      %v688 = vpop.f32.mrf.mxu0
      %v689 = vadd.f32 %v365, %v688
      %v690 = vand.u32 %v523, 4294901760
      %v691 = vsub.f32 %v523, %v690
      %v692 = vand.u32 %v691, 4294901760
      %v693 = vsub.f32 %v691, %v692
      %v694 = vand.u32 %v693, 4294901760
      %695 = vmatmul.f32.gmra.mxu0 %v694
      %v696 = vpop.f32.mrf.mxu0
      %v697 = vadd.f32 %v368, %v696
      %v698 = vand.u32 %v526, 4294901760
      %v699 = vsub.f32 %v526, %v698
      %v700 = vand.u32 %v699, 4294901760
      %v701 = vsub.f32 %v699, %v700
      %v702 = vand.u32 %v701, 4294901760
      %703 = vmatmul.f32.gmra.mxu0 %v702
      %v704 = vpop.f32.mrf.mxu0
      %v705 = vadd.f32 %v371, %v704
      %v706 = vand.u32 %v529, 4294901760
      %v707 = vsub.f32 %v529, %v706
      %v708 = vand.u32 %v707, 4294901760
      %v709 = vsub.f32 %v707, %v708
      %v710 = vand.u32 %v709, 4294901760
      %711 = vmatmul.f32.gmra.mxu0 %v710
      %v712 = vpop.f32.mrf.mxu0
      %v713 = vadd.f32 %v374, %v712
      %v714 = vand.u32 %v532, 4294901760
      %v715 = vsub.f32 %v532, %v714
      %v716 = vand.u32 %v715, 4294901760
      %v717 = vsub.f32 %v715, %v716
      %v718 = vand.u32 %v717, 4294901760
      %719 = vmatmul.f32.gmra.mxu0 %v718
      %v720 = vpop.f32.mrf.mxu0
      %v721 = vadd.f32 %v377, %v720
      %v722 = vand.u32 %v535, 4294901760
      %v723 = vsub.f32 %v535, %v722
      %v724 = vand.u32 %v723, 4294901760
      %v725 = vsub.f32 %v723, %v724
      %v726 = vand.u32 %v725, 4294901760
      %727 = vmatmul.f32.gmra.mxu0 %v726
      %v728 = vpop.f32.mrf.mxu0
      %v729 = vadd.f32 %v380, %v728
      %v730 = vand.u32 %v538, 4294901760
      %v731 = vsub.f32 %v538, %v730
      %v732 = vand.u32 %v731, 4294901760
      %v733 = vsub.f32 %v731, %v732
      %v734 = vand.u32 %v733, 4294901760
      %735 = vmatmul.f32.gmra.mxu0 %v734
      %v736 = vpop.f32.mrf.mxu0
      %v737 = vadd.f32 %v383, %v736
      %v738 = vand.u32 %v541, 4294901760
      %v739 = vsub.f32 %v541, %v738
      %v740 = vand.u32 %v739, 4294901760
      %v741 = vsub.f32 %v739, %v740
      %v742 = vand.u32 %v741, 4294901760
      %743 = vmatmul.f32.gmra.mxu0 %v742
      %v744 = vpop.f32.mrf.mxu0
      %v745 = vadd.f32 %v386, %v744
      %v746 = vand.u32 %v544, 4294901760
      %v747 = vsub.f32 %v544, %v746
      %v748 = vand.u32 %v747, 4294901760
      %v749 = vsub.f32 %v747, %v748
      %v750 = vand.u32 %v749, 4294901760
      %751 = vmatmul.f32.gmra.mxu0 %v750
      %v752 = vpop.f32.mrf.mxu0
      %v753 = vadd.f32 %v389, %v752
      %v754 = vand.u32 %v547, 4294901760
      %v755 = vsub.f32 %v547, %v754
      %v756 = vand.u32 %v755, 4294901760
      %v757 = vsub.f32 %v755, %v756
      %v758 = vand.u32 %v757, 4294901760
      %759 = vmatmul.f32.gmra.mxu0 %v758
      %v760 = vpop.f32.mrf.mxu0
      %v761 = vadd.f32 %v392, %v760
      %v762 = vand.u32 %v550, 4294901760
      %v763 = vsub.f32 %v550, %v762
      %v764 = vand.u32 %v763, 4294901760
      %v765 = vsub.f32 %v763, %v764
      %v766 = vand.u32 %v765, 4294901760
      %767 = vmatmul.f32.gmra.mxu0 %v766
      %v768 = vpop.f32.mrf.mxu0
      %v769 = vadd.f32 %v395, %v768
      %v770 = vand.u32 %v553, 4294901760
      %v771 = vsub.f32 %v553, %v770
      %v772 = vand.u32 %v771, 4294901760
      %v773 = vsub.f32 %v771, %v772
      %v774 = vand.u32 %v773, 4294901760
      %775 = vmatmul.f32.gmra.mxu0 %v774
      %v776 = vpop.f32.mrf.mxu0
      %v777 = vadd.f32 %v398, %v776
      %v778 = vand.u32 %v556, 4294901760
      %v779 = vsub.f32 %v556, %v778
      %v780 = vand.u32 %v779, 4294901760
      %v781 = vsub.f32 %v779, %v780
      %v782 = vand.u32 %v781, 4294901760
      %783 = vmatmul.f32.gmra.mxu0 %v782
      %v784 = vpop.f32.mrf.mxu0
      %v785 = vadd.f32 %v401, %v784
      %v786 = vand.u32 %v559, 4294901760
      %v787 = vsub.f32 %v559, %v786
      %v788 = vand.u32 %v787, 4294901760
      %v789 = vsub.f32 %v787, %v788
      %v790 = vand.u32 %v789, 4294901760
      %791 = vmatmul.f32.gmra.mxu0 %v790
      %v792 = vpop.f32.mrf.mxu0
      %v793 = vadd.f32 %v404, %v792
      %v794 = vand.u32 %v562, 4294901760
      %v795 = vsub.f32 %v562, %v794
      %v796 = vand.u32 %v795, 4294901760
      %v797 = vsub.f32 %v795, %v796
      %v798 = vand.u32 %v797, 4294901760
      %799 = vmatmul.f32.gmra.mxu0 %v798
      %v800 = vpop.f32.mrf.mxu0
      %v801 = vadd.f32 %v407, %v800
      %v802 = vand.u32 %v565, 4294901760
      %v803 = vsub.f32 %v565, %v802
      %v804 = vand.u32 %v803, 4294901760
      %v805 = vsub.f32 %v803, %v804
      %v806 = vand.u32 %v805, 4294901760
      %807 = vmatmul.f32.gmra.mxu0 %v806
      %v808 = vpop.f32.mrf.mxu0
      %v809 = vadd.f32 %v410, %v808
      %v810 = vand.u32 %v568, 4294901760
      %v811 = vsub.f32 %v568, %v810
      %v812 = vand.u32 %v811, 4294901760
      %v813 = vsub.f32 %v811, %v812
      %v814 = vand.u32 %v813, 4294901760
      %815 = vmatmul.f32.gmra.mxu0 %v814
      %v816 = vpop.f32.mrf.mxu0
      %v817 = vadd.f32 %v413, %v816
      %v818 = vand.u32 %v571, 4294901760
      %v819 = vsub.f32 %v571, %v818
      %v820 = vand.u32 %v819, 4294901760
      %v821 = vsub.f32 %v819, %v820
      %v822 = vand.u32 %v821, 4294901760
      %823 = vmatmul.f32.gmra.mxu0 %v822
      %v824 = vpop.f32.mrf.mxu0
      %v825 = vadd.f32 %v416, %v824
      %v826 = vand.u32 %v574, 4294901760
      %v827 = vsub.f32 %v574, %v826
      %v828 = vand.u32 %v827, 4294901760
      %v829 = vsub.f32 %v827, %v828
      %v830 = vand.u32 %v829, 4294901760
      %831 = vmatmul.f32.gmra.mxu0 %v830
      %v832 = vpop.f32.mrf.mxu0
      %v833 = vadd.f32 %v419, %v832
      %v834 = vand.u32 %v577, 4294901760
      %v835 = vsub.f32 %v577, %v834
      %v836 = vand.u32 %v835, 4294901760
      %v837 = vsub.f32 %v835, %v836
      %v838 = vand.u32 %v837, 4294901760
      %839 = vmatmul.f32.gmra.mxu0 %v838
      %v840 = vpop.f32.mrf.mxu0
      %v841 = vadd.f32 %v422, %v840
      %v842 = vand.u32 %v580, 4294901760
      %v843 = vsub.f32 %v580, %v842
      %v844 = vand.u32 %v843, 4294901760
      %v845 = vsub.f32 %v843, %v844
      %v846 = vand.u32 %v845, 4294901760
      %847 = vmatmul.f32.gmra.mxu0 %v846
      %v848 = vpop.f32.mrf.mxu0
      %v849 = vadd.f32 %v425, %v848
      %v850 = vand.u32 %v583, 4294901760
      %v851 = vsub.f32 %v583, %v850
      %v852 = vand.u32 %v851, 4294901760
      %v853 = vsub.f32 %v851, %v852
      %v854 = vand.u32 %v853, 4294901760
      %855 = vmatmul.f32.gmra.mxu0 %v854
      %v856 = vpop.f32.mrf.mxu0
      %v857 = vadd.f32 %v428, %v856
      %858 = vdwg.mxu0
      %859 = vmatpush.msra.mxu0 0.0
      %860 = vmatpush.msra.mxu0 0.0
      %861 = vmatpush.msra.mxu0 0.0
      %862 = vmatpush.msra.mxu0 0.0
      %863 = vmatpush.msra.mxu0 0.0
      %864 = vmatpush.msra.mxu0 0.0
      %865 = vmatpush.msra.mxu0 0.0
      %866 = vmatpush.msra.mxu0 0.0
      %867 = vmatpush.msra.mxu0 0.0
      %868 = vmatpush.msra.mxu0 0.0
      %869 = vmatpush.msra.mxu0 0.0
      %870 = vmatpush.msra.mxu0 0.0
      %871 = vmatpush.msra.mxu0 0.0
      %872 = vmatpush.msra.mxu0 0.0
      %873 = vmatpush.msra.mxu0 0.0
      %v874 = vand.u32 %v296, 4294901760
      %v875 = vsub.f32 %v296, %v874
      %v876 = vand.u32 %v875, 4294901760
      %v877 = vsub.f32 %v875, %v876
      %v878 = vand.u32 %v877, 4294901760
      %879 = vmatpush.msra.mxu0 %v878
      %v880 = vand.u32 %v490, 4294901760
      %881 = vmatmul.f32.gmra.mxu0 %v880
      %v882 = vpop.f32.mrf.mxu0
      %v883 = vadd.f32 %v609, %v882
      %v884 = vand.u32 %v493, 4294901760
      %885 = vmatmul.f32.gmra.mxu0 %v884
      %v886 = vpop.f32.mrf.mxu0
      %v887 = vadd.f32 %v617, %v886
      %v888 = vand.u32 %v496, 4294901760
      %889 = vmatmul.f32.gmra.mxu0 %v888
      %v890 = vpop.f32.mrf.mxu0
      %v891 = vadd.f32 %v625, %v890
      %v892 = vand.u32 %v499, 4294901760
      %893 = vmatmul.f32.gmra.mxu0 %v892
      %v894 = vpop.f32.mrf.mxu0
      %v895 = vadd.f32 %v633, %v894
      %v896 = vand.u32 %v502, 4294901760
      %897 = vmatmul.f32.gmra.mxu0 %v896
      %v898 = vpop.f32.mrf.mxu0
      %v899 = vadd.f32 %v641, %v898
      %v900 = vand.u32 %v505, 4294901760
      %901 = vmatmul.f32.gmra.mxu0 %v900
      %v902 = vpop.f32.mrf.mxu0
      %v903 = vadd.f32 %v649, %v902
      %v904 = vand.u32 %v508, 4294901760
      %905 = vmatmul.f32.gmra.mxu0 %v904
      %v906 = vpop.f32.mrf.mxu0
      %v907 = vadd.f32 %v657, %v906
      %v908 = vand.u32 %v511, 4294901760
      %909 = vmatmul.f32.gmra.mxu0 %v908
      %v910 = vpop.f32.mrf.mxu0
      %v911 = vadd.f32 %v665, %v910
      %v912 = vand.u32 %v514, 4294901760
      %913 = vmatmul.f32.gmra.mxu0 %v912
      %v914 = vpop.f32.mrf.mxu0
      %v915 = vadd.f32 %v673, %v914
      %v916 = vand.u32 %v517, 4294901760
      %917 = vmatmul.f32.gmra.mxu0 %v916
      %v918 = vpop.f32.mrf.mxu0
      %v919 = vadd.f32 %v681, %v918
      %v920 = vand.u32 %v520, 4294901760
      %921 = vmatmul.f32.gmra.mxu0 %v920
      %v922 = vpop.f32.mrf.mxu0
      %v923 = vadd.f32 %v689, %v922
      %v924 = vand.u32 %v523, 4294901760
      %925 = vmatmul.f32.gmra.mxu0 %v924
      %v926 = vpop.f32.mrf.mxu0
      %v927 = vadd.f32 %v697, %v926
      %v928 = vand.u32 %v526, 4294901760
      %929 = vmatmul.f32.gmra.mxu0 %v928
      %v930 = vpop.f32.mrf.mxu0
      %v931 = vadd.f32 %v705, %v930
      %v932 = vand.u32 %v529, 4294901760
      %933 = vmatmul.f32.gmra.mxu0 %v932
      %v934 = vpop.f32.mrf.mxu0
      %v935 = vadd.f32 %v713, %v934
      %v936 = vand.u32 %v532, 4294901760
      %937 = vmatmul.f32.gmra.mxu0 %v936
      %v938 = vpop.f32.mrf.mxu0
      %v939 = vadd.f32 %v721, %v938
      %v940 = vand.u32 %v535, 4294901760
      %941 = vmatmul.f32.gmra.mxu0 %v940
      %v942 = vpop.f32.mrf.mxu0
      %v943 = vadd.f32 %v729, %v942
      %v944 = vand.u32 %v538, 4294901760
      %945 = vmatmul.f32.gmra.mxu0 %v944
      %v946 = vpop.f32.mrf.mxu0
      %v947 = vadd.f32 %v737, %v946
      %v948 = vand.u32 %v541, 4294901760
      %949 = vmatmul.f32.gmra.mxu0 %v948
      %v950 = vpop.f32.mrf.mxu0
      %v951 = vadd.f32 %v745, %v950
      %v952 = vand.u32 %v544, 4294901760
      %953 = vmatmul.f32.gmra.mxu0 %v952
      %v954 = vpop.f32.mrf.mxu0
      %v955 = vadd.f32 %v753, %v954
      %v956 = vand.u32 %v547, 4294901760
      %957 = vmatmul.f32.gmra.mxu0 %v956
      %v958 = vpop.f32.mrf.mxu0
      %v959 = vadd.f32 %v761, %v958
      %v960 = vand.u32 %v550, 4294901760
      %961 = vmatmul.f32.gmra.mxu0 %v960
      %v962 = vpop.f32.mrf.mxu0
      %v963 = vadd.f32 %v769, %v962
      %v964 = vand.u32 %v553, 4294901760
      %965 = vmatmul.f32.gmra.mxu0 %v964
      %v966 = vpop.f32.mrf.mxu0
      %v967 = vadd.f32 %v777, %v966
      %v968 = vand.u32 %v556, 4294901760
      %969 = vmatmul.f32.gmra.mxu0 %v968
      %v970 = vpop.f32.mrf.mxu0
      %v971 = vadd.f32 %v785, %v970
      %v972 = vand.u32 %v559, 4294901760
      %973 = vmatmul.f32.gmra.mxu0 %v972
      %v974 = vpop.f32.mrf.mxu0
      %v975 = vadd.f32 %v793, %v974
      %v976 = vand.u32 %v562, 4294901760
      %977 = vmatmul.f32.gmra.mxu0 %v976
      %v978 = vpop.f32.mrf.mxu0
      %v979 = vadd.f32 %v801, %v978
      %v980 = vand.u32 %v565, 4294901760
      %981 = vmatmul.f32.gmra.mxu0 %v980
      %v982 = vpop.f32.mrf.mxu0
      %v983 = vadd.f32 %v809, %v982
      %v984 = vand.u32 %v568, 4294901760
      %985 = vmatmul.f32.gmra.mxu0 %v984
      %v986 = vpop.f32.mrf.mxu0
      %v987 = vadd.f32 %v817, %v986
      %v988 = vand.u32 %v571, 4294901760
      %989 = vmatmul.f32.gmra.mxu0 %v988
      %v990 = vpop.f32.mrf.mxu0
      %v991 = vadd.f32 %v825, %v990
      %v992 = vand.u32 %v574, 4294901760
      %993 = vmatmul.f32.gmra.mxu0 %v992
      %v994 = vpop.f32.mrf.mxu0
      %v995 = vadd.f32 %v833, %v994
      %v996 = vand.u32 %v577, 4294901760
      %997 = vmatmul.f32.gmra.mxu0 %v996
      %v998 = vpop.f32.mrf.mxu0
      %v999 = vadd.f32 %v841, %v998
      %v1000 = vand.u32 %v580, 4294901760
      %1001 = vmatmul.f32.gmra.mxu0 %v1000
      %v1002 = vpop.f32.mrf.mxu0
      %v1003 = vadd.f32 %v849, %v1002
      %v1004 = vand.u32 %v583, 4294901760
      %1005 = vmatmul.f32.gmra.mxu0 %v1004
      %v1006 = vpop.f32.mrf.mxu0
      %v1007 = vadd.f32 %v857, %v1006
      %1008 = vdwg.mxu0
      %1009 = vmatpush.msra.mxu0 0.0
      %1010 = vmatpush.msra.mxu0 0.0
      %1011 = vmatpush.msra.mxu0 0.0
      %1012 = vmatpush.msra.mxu0 0.0
      %1013 = vmatpush.msra.mxu0 0.0
      %1014 = vmatpush.msra.mxu0 0.0
      %1015 = vmatpush.msra.mxu0 0.0
      %1016 = vmatpush.msra.mxu0 0.0
      %1017 = vmatpush.msra.mxu0 0.0
      %1018 = vmatpush.msra.mxu0 0.0
      %1019 = vmatpush.msra.mxu0 0.0
      %1020 = vmatpush.msra.mxu0 0.0
      %1021 = vmatpush.msra.mxu0 0.0
      %1022 = vmatpush.msra.mxu0 0.0
      %1023 = vmatpush.msra.mxu0 0.0
      %v1024 = vand.u32 %v296, 4294901760
      %v1025 = vsub.f32 %v296, %v1024
      %1026 = vmatpush.msra.mxu0 %v1025
      %v1027 = vand.u32 %v490, 4294901760
      %v1028 = vsub.f32 %v490, %v1027
      %1029 = vmatmul.f32.gmra.mxu0 %v1028
      %v1030 = vpop.f32.mrf.mxu0
      %v1031 = vadd.f32 %v883, %v1030
      %v1032 = vand.u32 %v493, 4294901760
      %v1033 = vsub.f32 %v493, %v1032
      %1034 = vmatmul.f32.gmra.mxu0 %v1033
      %v1035 = vpop.f32.mrf.mxu0
      %v1036 = vadd.f32 %v887, %v1035
      %v1037 = vand.u32 %v496, 4294901760
      %v1038 = vsub.f32 %v496, %v1037
      %1039 = vmatmul.f32.gmra.mxu0 %v1038
      %v1040 = vpop.f32.mrf.mxu0
      %v1041 = vadd.f32 %v891, %v1040
      %v1042 = vand.u32 %v499, 4294901760
      %v1043 = vsub.f32 %v499, %v1042
      %1044 = vmatmul.f32.gmra.mxu0 %v1043
      %v1045 = vpop.f32.mrf.mxu0
      %v1046 = vadd.f32 %v895, %v1045
      %v1047 = vand.u32 %v502, 4294901760
      %v1048 = vsub.f32 %v502, %v1047
      %1049 = vmatmul.f32.gmra.mxu0 %v1048
      %v1050 = vpop.f32.mrf.mxu0
      %v1051 = vadd.f32 %v899, %v1050
      %v1052 = vand.u32 %v505, 4294901760
      %v1053 = vsub.f32 %v505, %v1052
      %1054 = vmatmul.f32.gmra.mxu0 %v1053
      %v1055 = vpop.f32.mrf.mxu0
      %v1056 = vadd.f32 %v903, %v1055
      %v1057 = vand.u32 %v508, 4294901760
      %v1058 = vsub.f32 %v508, %v1057
      %1059 = vmatmul.f32.gmra.mxu0 %v1058
      %v1060 = vpop.f32.mrf.mxu0
      %v1061 = vadd.f32 %v907, %v1060
      %v1062 = vand.u32 %v511, 4294901760
      %v1063 = vsub.f32 %v511, %v1062
      %1064 = vmatmul.f32.gmra.mxu0 %v1063
      %v1065 = vpop.f32.mrf.mxu0
      %v1066 = vadd.f32 %v911, %v1065
      %v1067 = vand.u32 %v514, 4294901760
      %v1068 = vsub.f32 %v514, %v1067
      %1069 = vmatmul.f32.gmra.mxu0 %v1068
      %v1070 = vpop.f32.mrf.mxu0
      %v1071 = vadd.f32 %v915, %v1070
      %v1072 = vand.u32 %v517, 4294901760
      %v1073 = vsub.f32 %v517, %v1072
      %1074 = vmatmul.f32.gmra.mxu0 %v1073
      %v1075 = vpop.f32.mrf.mxu0
      %v1076 = vadd.f32 %v919, %v1075
      %v1077 = vand.u32 %v520, 4294901760
      %v1078 = vsub.f32 %v520, %v1077
      %1079 = vmatmul.f32.gmra.mxu0 %v1078
      %v1080 = vpop.f32.mrf.mxu0
      %v1081 = vadd.f32 %v923, %v1080
      %v1082 = vand.u32 %v523, 4294901760
      %v1083 = vsub.f32 %v523, %v1082
      %1084 = vmatmul.f32.gmra.mxu0 %v1083
      %v1085 = vpop.f32.mrf.mxu0
      %v1086 = vadd.f32 %v927, %v1085
      %v1087 = vand.u32 %v526, 4294901760
      %v1088 = vsub.f32 %v526, %v1087
      %1089 = vmatmul.f32.gmra.mxu0 %v1088
      %v1090 = vpop.f32.mrf.mxu0
      %v1091 = vadd.f32 %v931, %v1090
      %v1092 = vand.u32 %v529, 4294901760
      %v1093 = vsub.f32 %v529, %v1092
      %1094 = vmatmul.f32.gmra.mxu0 %v1093
      %v1095 = vpop.f32.mrf.mxu0
      %v1096 = vadd.f32 %v935, %v1095
      %v1097 = vand.u32 %v532, 4294901760
      %v1098 = vsub.f32 %v532, %v1097
      %1099 = vmatmul.f32.gmra.mxu0 %v1098
      %v1100 = vpop.f32.mrf.mxu0
      %v1101 = vadd.f32 %v939, %v1100
      %v1102 = vand.u32 %v535, 4294901760
      %v1103 = vsub.f32 %v535, %v1102
      %1104 = vmatmul.f32.gmra.mxu0 %v1103
      %v1105 = vpop.f32.mrf.mxu0
      %v1106 = vadd.f32 %v943, %v1105
      %v1107 = vand.u32 %v538, 4294901760
      %v1108 = vsub.f32 %v538, %v1107
      %1109 = vmatmul.f32.gmra.mxu0 %v1108
      %v1110 = vpop.f32.mrf.mxu0
      %v1111 = vadd.f32 %v947, %v1110
      %v1112 = vand.u32 %v541, 4294901760
      %v1113 = vsub.f32 %v541, %v1112
      %1114 = vmatmul.f32.gmra.mxu0 %v1113
      %v1115 = vpop.f32.mrf.mxu0
      %v1116 = vadd.f32 %v951, %v1115
      %v1117 = vand.u32 %v544, 4294901760
      %v1118 = vsub.f32 %v544, %v1117
      %1119 = vmatmul.f32.gmra.mxu0 %v1118
      %v1120 = vpop.f32.mrf.mxu0
      %v1121 = vadd.f32 %v955, %v1120
      %v1122 = vand.u32 %v547, 4294901760
      %v1123 = vsub.f32 %v547, %v1122
      %1124 = vmatmul.f32.gmra.mxu0 %v1123
      %v1125 = vpop.f32.mrf.mxu0
      %v1126 = vadd.f32 %v959, %v1125
      %v1127 = vand.u32 %v550, 4294901760
      %v1128 = vsub.f32 %v550, %v1127
      %1129 = vmatmul.f32.gmra.mxu0 %v1128
      %v1130 = vpop.f32.mrf.mxu0
      %v1131 = vadd.f32 %v963, %v1130
      %v1132 = vand.u32 %v553, 4294901760
      %v1133 = vsub.f32 %v553, %v1132
      %1134 = vmatmul.f32.gmra.mxu0 %v1133
      %v1135 = vpop.f32.mrf.mxu0
      %v1136 = vadd.f32 %v967, %v1135
      %v1137 = vand.u32 %v556, 4294901760
      %v1138 = vsub.f32 %v556, %v1137
      %1139 = vmatmul.f32.gmra.mxu0 %v1138
      %v1140 = vpop.f32.mrf.mxu0
      %v1141 = vadd.f32 %v971, %v1140
      %v1142 = vand.u32 %v559, 4294901760
      %v1143 = vsub.f32 %v559, %v1142
      %1144 = vmatmul.f32.gmra.mxu0 %v1143
      %v1145 = vpop.f32.mrf.mxu0
      %v1146 = vadd.f32 %v975, %v1145
      %v1147 = vand.u32 %v562, 4294901760
      %v1148 = vsub.f32 %v562, %v1147
      %1149 = vmatmul.f32.gmra.mxu0 %v1148
      %v1150 = vpop.f32.mrf.mxu0
      %v1151 = vadd.f32 %v979, %v1150
      %v1152 = vand.u32 %v565, 4294901760
      %v1153 = vsub.f32 %v565, %v1152
      %1154 = vmatmul.f32.gmra.mxu0 %v1153
      %v1155 = vpop.f32.mrf.mxu0
      %v1156 = vadd.f32 %v983, %v1155
      %v1157 = vand.u32 %v568, 4294901760
      %v1158 = vsub.f32 %v568, %v1157
      %1159 = vmatmul.f32.gmra.mxu0 %v1158
      %v1160 = vpop.f32.mrf.mxu0
      %v1161 = vadd.f32 %v987, %v1160
      %v1162 = vand.u32 %v571, 4294901760
      %v1163 = vsub.f32 %v571, %v1162
      %1164 = vmatmul.f32.gmra.mxu0 %v1163
      %v1165 = vpop.f32.mrf.mxu0
      %v1166 = vadd.f32 %v991, %v1165
      %v1167 = vand.u32 %v574, 4294901760
      %v1168 = vsub.f32 %v574, %v1167
      %1169 = vmatmul.f32.gmra.mxu0 %v1168
      %v1170 = vpop.f32.mrf.mxu0
      %v1171 = vadd.f32 %v995, %v1170
      %v1172 = vand.u32 %v577, 4294901760
      %v1173 = vsub.f32 %v577, %v1172
      %1174 = vmatmul.f32.gmra.mxu0 %v1173
      %v1175 = vpop.f32.mrf.mxu0
      %v1176 = vadd.f32 %v999, %v1175
      %v1177 = vand.u32 %v580, 4294901760
      %v1178 = vsub.f32 %v580, %v1177
      %1179 = vmatmul.f32.gmra.mxu0 %v1178
      %v1180 = vpop.f32.mrf.mxu0
      %v1181 = vadd.f32 %v1003, %v1180
      %v1182 = vand.u32 %v583, 4294901760
      %v1183 = vsub.f32 %v583, %v1182
      %1184 = vmatmul.f32.gmra.mxu0 %v1183
      %v1185 = vpop.f32.mrf.mxu0
      %v1186 = vadd.f32 %v1007, %v1185
      %1187 = vdwg.mxu0
      %1188 = vmatpush.msra.mxu0 0.0
      %1189 = vmatpush.msra.mxu0 0.0
      %1190 = vmatpush.msra.mxu0 0.0
      %1191 = vmatpush.msra.mxu0 0.0
      %1192 = vmatpush.msra.mxu0 0.0
      %1193 = vmatpush.msra.mxu0 0.0
      %1194 = vmatpush.msra.mxu0 0.0
      %1195 = vmatpush.msra.mxu0 0.0
      %1196 = vmatpush.msra.mxu0 0.0
      %1197 = vmatpush.msra.mxu0 0.0
      %1198 = vmatpush.msra.mxu0 0.0
      %1199 = vmatpush.msra.mxu0 0.0
      %1200 = vmatpush.msra.mxu0 0.0
      %1201 = vmatpush.msra.mxu0 0.0
      %1202 = vmatpush.msra.mxu0 0.0
      %v1203 = vand.u32 %v296, 4294901760
      %1204 = vmatpush.msra.mxu0 %v1203
      %v1205 = vand.u32 %v490, 4294901760
      %v1206 = vsub.f32 %v490, %v1205
      %v1207 = vand.u32 %v1206, 4294901760
      %1208 = vmatmul.f32.gmra.mxu0 %v1207
      %v1209 = vpop.f32.mrf.mxu0
      %v1210 = vadd.f32 %v1031, %v1209
      %v1211 = vand.u32 %v493, 4294901760
      %v1212 = vsub.f32 %v493, %v1211
      %v1213 = vand.u32 %v1212, 4294901760
      %1214 = vmatmul.f32.gmra.mxu0 %v1213
      %v1215 = vpop.f32.mrf.mxu0
      %v1216 = vadd.f32 %v1036, %v1215
      %v1217 = vand.u32 %v496, 4294901760
      %v1218 = vsub.f32 %v496, %v1217
      %v1219 = vand.u32 %v1218, 4294901760
      %1220 = vmatmul.f32.gmra.mxu0 %v1219
      %v1221 = vpop.f32.mrf.mxu0
      %v1222 = vadd.f32 %v1041, %v1221
      %v1223 = vand.u32 %v499, 4294901760
      %v1224 = vsub.f32 %v499, %v1223
      %v1225 = vand.u32 %v1224, 4294901760
      %1226 = vmatmul.f32.gmra.mxu0 %v1225
      %v1227 = vpop.f32.mrf.mxu0
      %v1228 = vadd.f32 %v1046, %v1227
      %v1229 = vand.u32 %v502, 4294901760
      %v1230 = vsub.f32 %v502, %v1229
      %v1231 = vand.u32 %v1230, 4294901760
      %1232 = vmatmul.f32.gmra.mxu0 %v1231
      %v1233 = vpop.f32.mrf.mxu0
      %v1234 = vadd.f32 %v1051, %v1233
      %v1235 = vand.u32 %v505, 4294901760
      %v1236 = vsub.f32 %v505, %v1235
      %v1237 = vand.u32 %v1236, 4294901760
      %1238 = vmatmul.f32.gmra.mxu0 %v1237
      %v1239 = vpop.f32.mrf.mxu0
      %v1240 = vadd.f32 %v1056, %v1239
      %v1241 = vand.u32 %v508, 4294901760
      %v1242 = vsub.f32 %v508, %v1241
      %v1243 = vand.u32 %v1242, 4294901760
      %1244 = vmatmul.f32.gmra.mxu0 %v1243
      %v1245 = vpop.f32.mrf.mxu0
      %v1246 = vadd.f32 %v1061, %v1245
      %v1247 = vand.u32 %v511, 4294901760
      %v1248 = vsub.f32 %v511, %v1247
      %v1249 = vand.u32 %v1248, 4294901760
      %1250 = vmatmul.f32.gmra.mxu0 %v1249
      %v1251 = vpop.f32.mrf.mxu0
      %v1252 = vadd.f32 %v1066, %v1251
      %v1253 = vand.u32 %v514, 4294901760
      %v1254 = vsub.f32 %v514, %v1253
      %v1255 = vand.u32 %v1254, 4294901760
      %1256 = vmatmul.f32.gmra.mxu0 %v1255
      %v1257 = vpop.f32.mrf.mxu0
      %v1258 = vadd.f32 %v1071, %v1257
      %v1259 = vand.u32 %v517, 4294901760
      %v1260 = vsub.f32 %v517, %v1259
      %v1261 = vand.u32 %v1260, 4294901760
      %1262 = vmatmul.f32.gmra.mxu0 %v1261
      %v1263 = vpop.f32.mrf.mxu0
      %v1264 = vadd.f32 %v1076, %v1263
      %v1265 = vand.u32 %v520, 4294901760
      %v1266 = vsub.f32 %v520, %v1265
      %v1267 = vand.u32 %v1266, 4294901760
      %1268 = vmatmul.f32.gmra.mxu0 %v1267
      %v1269 = vpop.f32.mrf.mxu0
      %v1270 = vadd.f32 %v1081, %v1269
      %v1271 = vand.u32 %v523, 4294901760
      %v1272 = vsub.f32 %v523, %v1271
      %v1273 = vand.u32 %v1272, 4294901760
      %1274 = vmatmul.f32.gmra.mxu0 %v1273
      %v1275 = vpop.f32.mrf.mxu0
      %v1276 = vadd.f32 %v1086, %v1275
      %v1277 = vand.u32 %v526, 4294901760
      %v1278 = vsub.f32 %v526, %v1277
      %v1279 = vand.u32 %v1278, 4294901760
      %1280 = vmatmul.f32.gmra.mxu0 %v1279
      %v1281 = vpop.f32.mrf.mxu0
      %v1282 = vadd.f32 %v1091, %v1281
      %v1283 = vand.u32 %v529, 4294901760
      %v1284 = vsub.f32 %v529, %v1283
      %v1285 = vand.u32 %v1284, 4294901760
      %1286 = vmatmul.f32.gmra.mxu0 %v1285
      %v1287 = vpop.f32.mrf.mxu0
      %v1288 = vadd.f32 %v1096, %v1287
      %v1289 = vand.u32 %v532, 4294901760
      %v1290 = vsub.f32 %v532, %v1289
      %v1291 = vand.u32 %v1290, 4294901760
      %1292 = vmatmul.f32.gmra.mxu0 %v1291
      %v1293 = vpop.f32.mrf.mxu0
      %v1294 = vadd.f32 %v1101, %v1293
      %v1295 = vand.u32 %v535, 4294901760
      %v1296 = vsub.f32 %v535, %v1295
      %v1297 = vand.u32 %v1296, 4294901760
      %1298 = vmatmul.f32.gmra.mxu0 %v1297
      %v1299 = vpop.f32.mrf.mxu0
      %v1300 = vadd.f32 %v1106, %v1299
      %v1301 = vand.u32 %v538, 4294901760
      %v1302 = vsub.f32 %v538, %v1301
      %v1303 = vand.u32 %v1302, 4294901760
      %1304 = vmatmul.f32.gmra.mxu0 %v1303
      %v1305 = vpop.f32.mrf.mxu0
      %v1306 = vadd.f32 %v1111, %v1305
      %v1307 = vand.u32 %v541, 4294901760
      %v1308 = vsub.f32 %v541, %v1307
      %v1309 = vand.u32 %v1308, 4294901760
      %1310 = vmatmul.f32.gmra.mxu0 %v1309
      %v1311 = vpop.f32.mrf.mxu0
      %v1312 = vadd.f32 %v1116, %v1311
      %v1313 = vand.u32 %v544, 4294901760
      %v1314 = vsub.f32 %v544, %v1313
      %v1315 = vand.u32 %v1314, 4294901760
      %1316 = vmatmul.f32.gmra.mxu0 %v1315
      %v1317 = vpop.f32.mrf.mxu0
      %v1318 = vadd.f32 %v1121, %v1317
      %v1319 = vand.u32 %v547, 4294901760
      %v1320 = vsub.f32 %v547, %v1319
      %v1321 = vand.u32 %v1320, 4294901760
      %1322 = vmatmul.f32.gmra.mxu0 %v1321
      %v1323 = vpop.f32.mrf.mxu0
      %v1324 = vadd.f32 %v1126, %v1323
      %v1325 = vand.u32 %v550, 4294901760
      %v1326 = vsub.f32 %v550, %v1325
      %v1327 = vand.u32 %v1326, 4294901760
      %1328 = vmatmul.f32.gmra.mxu0 %v1327
      %v1329 = vpop.f32.mrf.mxu0
      %v1330 = vadd.f32 %v1131, %v1329
      %v1331 = vand.u32 %v553, 4294901760
      %v1332 = vsub.f32 %v553, %v1331
      %v1333 = vand.u32 %v1332, 4294901760
      %1334 = vmatmul.f32.gmra.mxu0 %v1333
      %v1335 = vpop.f32.mrf.mxu0
      %v1336 = vadd.f32 %v1136, %v1335
      %v1337 = vand.u32 %v556, 4294901760
      %v1338 = vsub.f32 %v556, %v1337
      %v1339 = vand.u32 %v1338, 4294901760
      %1340 = vmatmul.f32.gmra.mxu0 %v1339
      %v1341 = vpop.f32.mrf.mxu0
      %v1342 = vadd.f32 %v1141, %v1341
      %v1343 = vand.u32 %v559, 4294901760
      %v1344 = vsub.f32 %v559, %v1343
      %v1345 = vand.u32 %v1344, 4294901760
      %1346 = vmatmul.f32.gmra.mxu0 %v1345
      %v1347 = vpop.f32.mrf.mxu0
      %v1348 = vadd.f32 %v1146, %v1347
      %v1349 = vand.u32 %v562, 4294901760
      %v1350 = vsub.f32 %v562, %v1349
      %v1351 = vand.u32 %v1350, 4294901760
      %1352 = vmatmul.f32.gmra.mxu0 %v1351
      %v1353 = vpop.f32.mrf.mxu0
      %v1354 = vadd.f32 %v1151, %v1353
      %v1355 = vand.u32 %v565, 4294901760
      %v1356 = vsub.f32 %v565, %v1355
      %v1357 = vand.u32 %v1356, 4294901760
      %1358 = vmatmul.f32.gmra.mxu0 %v1357
      %v1359 = vpop.f32.mrf.mxu0
      %v1360 = vadd.f32 %v1156, %v1359
      %v1361 = vand.u32 %v568, 4294901760
      %v1362 = vsub.f32 %v568, %v1361
      %v1363 = vand.u32 %v1362, 4294901760
      %1364 = vmatmul.f32.gmra.mxu0 %v1363
      %v1365 = vpop.f32.mrf.mxu0
      %v1366 = vadd.f32 %v1161, %v1365
      %v1367 = vand.u32 %v571, 4294901760
      %v1368 = vsub.f32 %v571, %v1367
      %v1369 = vand.u32 %v1368, 4294901760
      %1370 = vmatmul.f32.gmra.mxu0 %v1369
      %v1371 = vpop.f32.mrf.mxu0
      %v1372 = vadd.f32 %v1166, %v1371
      %v1373 = vand.u32 %v574, 4294901760
      %v1374 = vsub.f32 %v574, %v1373
      %v1375 = vand.u32 %v1374, 4294901760
      %1376 = vmatmul.f32.gmra.mxu0 %v1375
      %v1377 = vpop.f32.mrf.mxu0
      %v1378 = vadd.f32 %v1171, %v1377
      %v1379 = vand.u32 %v577, 4294901760
      %v1380 = vsub.f32 %v577, %v1379
      %v1381 = vand.u32 %v1380, 4294901760
      %1382 = vmatmul.f32.gmra.mxu0 %v1381
      %v1383 = vpop.f32.mrf.mxu0
      %v1384 = vadd.f32 %v1176, %v1383
      %v1385 = vand.u32 %v580, 4294901760
      %v1386 = vsub.f32 %v580, %v1385
      %v1387 = vand.u32 %v1386, 4294901760
      %1388 = vmatmul.f32.gmra.mxu0 %v1387
      %v1389 = vpop.f32.mrf.mxu0
      %v1390 = vadd.f32 %v1181, %v1389
      %v1391 = vand.u32 %v583, 4294901760
      %v1392 = vsub.f32 %v583, %v1391
      %v1393 = vand.u32 %v1392, 4294901760
      %1394 = vmatmul.f32.gmra.mxu0 %v1393
      %v1395 = vpop.f32.mrf.mxu0
      %v1396 = vadd.f32 %v1186, %v1395
      %1397 = vdwg.mxu0
      %1398 = vmatpush.msra.mxu0 0.0
      %1399 = vmatpush.msra.mxu0 0.0
      %1400 = vmatpush.msra.mxu0 0.0
      %1401 = vmatpush.msra.mxu0 0.0
      %1402 = vmatpush.msra.mxu0 0.0
      %1403 = vmatpush.msra.mxu0 0.0
      %1404 = vmatpush.msra.mxu0 0.0
      %1405 = vmatpush.msra.mxu0 0.0
      %1406 = vmatpush.msra.mxu0 0.0
      %1407 = vmatpush.msra.mxu0 0.0
      %1408 = vmatpush.msra.mxu0 0.0
      %1409 = vmatpush.msra.mxu0 0.0
      %1410 = vmatpush.msra.mxu0 0.0
      %1411 = vmatpush.msra.mxu0 0.0
      %1412 = vmatpush.msra.mxu0 0.0
      %v1413 = vand.u32 %v296, 4294901760
      %v1414 = vsub.f32 %v296, %v1413
      %v1415 = vand.u32 %v1414, 4294901760
      %1416 = vmatpush.msra.mxu0 %v1415
      %v1417 = vand.u32 %v490, 4294901760
      %1418 = vmatmul.f32.gmra.mxu0 %v1417
      %v1419 = vpop.f32.mrf.mxu0
      %v1420 = vadd.f32 %v1210, %v1419
      %v1421 = vand.u32 %v493, 4294901760
      %1422 = vmatmul.f32.gmra.mxu0 %v1421
      %v1423 = vpop.f32.mrf.mxu0
      %v1424 = vadd.f32 %v1216, %v1423
      %v1425 = vand.u32 %v496, 4294901760
      %1426 = vmatmul.f32.gmra.mxu0 %v1425
      %v1427 = vpop.f32.mrf.mxu0
      %v1428 = vadd.f32 %v1222, %v1427
      %v1429 = vand.u32 %v499, 4294901760
      %1430 = vmatmul.f32.gmra.mxu0 %v1429
      %v1431 = vpop.f32.mrf.mxu0
      %v1432 = vadd.f32 %v1228, %v1431
      %v1433 = vand.u32 %v502, 4294901760
      %1434 = vmatmul.f32.gmra.mxu0 %v1433
      %v1435 = vpop.f32.mrf.mxu0
      %v1436 = vadd.f32 %v1234, %v1435
      %v1437 = vand.u32 %v505, 4294901760
      %1438 = vmatmul.f32.gmra.mxu0 %v1437
      %v1439 = vpop.f32.mrf.mxu0
      %v1440 = vadd.f32 %v1240, %v1439
      %v1441 = vand.u32 %v508, 4294901760
      %1442 = vmatmul.f32.gmra.mxu0 %v1441
      %v1443 = vpop.f32.mrf.mxu0
      %v1444 = vadd.f32 %v1246, %v1443
      %v1445 = vand.u32 %v511, 4294901760
      %1446 = vmatmul.f32.gmra.mxu0 %v1445
      %v1447 = vpop.f32.mrf.mxu0
      %v1448 = vadd.f32 %v1252, %v1447
      %v1449 = vand.u32 %v514, 4294901760
      %1450 = vmatmul.f32.gmra.mxu0 %v1449
      %v1451 = vpop.f32.mrf.mxu0
      %v1452 = vadd.f32 %v1258, %v1451
      %v1453 = vand.u32 %v517, 4294901760
      %1454 = vmatmul.f32.gmra.mxu0 %v1453
      %v1455 = vpop.f32.mrf.mxu0
      %v1456 = vadd.f32 %v1264, %v1455
      %v1457 = vand.u32 %v520, 4294901760
      %1458 = vmatmul.f32.gmra.mxu0 %v1457
      %v1459 = vpop.f32.mrf.mxu0
      %v1460 = vadd.f32 %v1270, %v1459
      %v1461 = vand.u32 %v523, 4294901760
      %1462 = vmatmul.f32.gmra.mxu0 %v1461
      %v1463 = vpop.f32.mrf.mxu0
      %v1464 = vadd.f32 %v1276, %v1463
      %v1465 = vand.u32 %v526, 4294901760
      %1466 = vmatmul.f32.gmra.mxu0 %v1465
      %v1467 = vpop.f32.mrf.mxu0
      %v1468 = vadd.f32 %v1282, %v1467
      %v1469 = vand.u32 %v529, 4294901760
      %1470 = vmatmul.f32.gmra.mxu0 %v1469
      %v1471 = vpop.f32.mrf.mxu0
      %v1472 = vadd.f32 %v1288, %v1471
      %v1473 = vand.u32 %v532, 4294901760
      %1474 = vmatmul.f32.gmra.mxu0 %v1473
      %v1475 = vpop.f32.mrf.mxu0
      %v1476 = vadd.f32 %v1294, %v1475
      %v1477 = vand.u32 %v535, 4294901760
      %1478 = vmatmul.f32.gmra.mxu0 %v1477
      %v1479 = vpop.f32.mrf.mxu0
      %v1480 = vadd.f32 %v1300, %v1479
      %v1481 = vand.u32 %v538, 4294901760
      %1482 = vmatmul.f32.gmra.mxu0 %v1481
      %v1483 = vpop.f32.mrf.mxu0
      %v1484 = vadd.f32 %v1306, %v1483
      %v1485 = vand.u32 %v541, 4294901760
      %1486 = vmatmul.f32.gmra.mxu0 %v1485
      %v1487 = vpop.f32.mrf.mxu0
      %v1488 = vadd.f32 %v1312, %v1487
      %v1489 = vand.u32 %v544, 4294901760
      %1490 = vmatmul.f32.gmra.mxu0 %v1489
      %v1491 = vpop.f32.mrf.mxu0
      %v1492 = vadd.f32 %v1318, %v1491
      %v1493 = vand.u32 %v547, 4294901760
      %1494 = vmatmul.f32.gmra.mxu0 %v1493
      %v1495 = vpop.f32.mrf.mxu0
      %v1496 = vadd.f32 %v1324, %v1495
      %v1497 = vand.u32 %v550, 4294901760
      %1498 = vmatmul.f32.gmra.mxu0 %v1497
      %v1499 = vpop.f32.mrf.mxu0
      %v1500 = vadd.f32 %v1330, %v1499
      %v1501 = vand.u32 %v553, 4294901760
      %1502 = vmatmul.f32.gmra.mxu0 %v1501
      %v1503 = vpop.f32.mrf.mxu0
      %v1504 = vadd.f32 %v1336, %v1503
      %v1505 = vand.u32 %v556, 4294901760
      %1506 = vmatmul.f32.gmra.mxu0 %v1505
      %v1507 = vpop.f32.mrf.mxu0
      %v1508 = vadd.f32 %v1342, %v1507
      %v1509 = vand.u32 %v559, 4294901760
      %1510 = vmatmul.f32.gmra.mxu0 %v1509
      %v1511 = vpop.f32.mrf.mxu0
      %v1512 = vadd.f32 %v1348, %v1511
      %v1513 = vand.u32 %v562, 4294901760
      %1514 = vmatmul.f32.gmra.mxu0 %v1513
      %v1515 = vpop.f32.mrf.mxu0
      %v1516 = vadd.f32 %v1354, %v1515
      %v1517 = vand.u32 %v565, 4294901760
      %1518 = vmatmul.f32.gmra.mxu0 %v1517
      %v1519 = vpop.f32.mrf.mxu0
      %v1520 = vadd.f32 %v1360, %v1519
      %v1521 = vand.u32 %v568, 4294901760
      %1522 = vmatmul.f32.gmra.mxu0 %v1521
      %v1523 = vpop.f32.mrf.mxu0
      %v1524 = vadd.f32 %v1366, %v1523
      %v1525 = vand.u32 %v571, 4294901760
      %1526 = vmatmul.f32.gmra.mxu0 %v1525
      %v1527 = vpop.f32.mrf.mxu0
      %v1528 = vadd.f32 %v1372, %v1527
      %v1529 = vand.u32 %v574, 4294901760
      %1530 = vmatmul.f32.gmra.mxu0 %v1529
      %v1531 = vpop.f32.mrf.mxu0
      %v1532 = vadd.f32 %v1378, %v1531
      %v1533 = vand.u32 %v577, 4294901760
      %1534 = vmatmul.f32.gmra.mxu0 %v1533
      %v1535 = vpop.f32.mrf.mxu0
      %v1536 = vadd.f32 %v1384, %v1535
      %v1537 = vand.u32 %v580, 4294901760
      %1538 = vmatmul.f32.gmra.mxu0 %v1537
      %v1539 = vpop.f32.mrf.mxu0
      %v1540 = vadd.f32 %v1390, %v1539
      %v1541 = vand.u32 %v583, 4294901760
      %1542 = vmatmul.f32.gmra.mxu0 %v1541
      %v1543 = vpop.f32.mrf.mxu0
      %v1544 = vadd.f32 %v1396, %v1543
      %1545 = vdwg.mxu0
      %1546 = vmatpush.msra.mxu0 0.0
      %1547 = vmatpush.msra.mxu0 0.0
      %1548 = vmatpush.msra.mxu0 0.0
      %1549 = vmatpush.msra.mxu0 0.0
      %1550 = vmatpush.msra.mxu0 0.0
      %1551 = vmatpush.msra.mxu0 0.0
      %1552 = vmatpush.msra.mxu0 0.0
      %1553 = vmatpush.msra.mxu0 0.0
      %1554 = vmatpush.msra.mxu0 0.0
      %1555 = vmatpush.msra.mxu0 0.0
      %1556 = vmatpush.msra.mxu0 0.0
      %1557 = vmatpush.msra.mxu0 0.0
      %1558 = vmatpush.msra.mxu0 0.0
      %1559 = vmatpush.msra.mxu0 0.0
      %1560 = vmatpush.msra.mxu0 0.0
      %v1561 = vand.u32 %v296, 4294901760
      %1562 = vmatpush.msra.mxu0 %v1561
      %v1563 = vand.u32 %v490, 4294901760
      %1564 = vmatmul.f32.gmra.mxu0 %v1563
      %v1565 = vpop.f32.mrf.mxu0
      %v1566 = vadd.f32 %v1420, %v1565
      %v1567 = vand.u32 %v493, 4294901760
      %1568 = vmatmul.f32.gmra.mxu0 %v1567
      %v1569 = vpop.f32.mrf.mxu0
      %v1570 = vadd.f32 %v1424, %v1569
      %v1571 = vand.u32 %v496, 4294901760
      %1572 = vmatmul.f32.gmra.mxu0 %v1571
      %v1573 = vpop.f32.mrf.mxu0
      %v1574 = vadd.f32 %v1428, %v1573
      %v1575 = vand.u32 %v499, 4294901760
      %1576 = vmatmul.f32.gmra.mxu0 %v1575
      %v1577 = vpop.f32.mrf.mxu0
      %v1578 = vadd.f32 %v1432, %v1577
      %v1579 = vand.u32 %v502, 4294901760
      %1580 = vmatmul.f32.gmra.mxu0 %v1579
      %v1581 = vpop.f32.mrf.mxu0
      %v1582 = vadd.f32 %v1436, %v1581
      %v1583 = vand.u32 %v505, 4294901760
      %1584 = vmatmul.f32.gmra.mxu0 %v1583
      %v1585 = vpop.f32.mrf.mxu0
      %v1586 = vadd.f32 %v1440, %v1585
      %v1587 = vand.u32 %v508, 4294901760
      %1588 = vmatmul.f32.gmra.mxu0 %v1587
      %v1589 = vpop.f32.mrf.mxu0
      %v1590 = vadd.f32 %v1444, %v1589
      %v1591 = vand.u32 %v511, 4294901760
      %1592 = vmatmul.f32.gmra.mxu0 %v1591
      %v1593 = vpop.f32.mrf.mxu0
      %v1594 = vadd.f32 %v1448, %v1593
      %v1595 = vand.u32 %v514, 4294901760
      %1596 = vmatmul.f32.gmra.mxu0 %v1595
      %v1597 = vpop.f32.mrf.mxu0
      %v1598 = vadd.f32 %v1452, %v1597
      %v1599 = vand.u32 %v517, 4294901760
      %1600 = vmatmul.f32.gmra.mxu0 %v1599
      %v1601 = vpop.f32.mrf.mxu0
      %v1602 = vadd.f32 %v1456, %v1601
      %v1603 = vand.u32 %v520, 4294901760
      %1604 = vmatmul.f32.gmra.mxu0 %v1603
      %v1605 = vpop.f32.mrf.mxu0
      %v1606 = vadd.f32 %v1460, %v1605
      %v1607 = vand.u32 %v523, 4294901760
      %1608 = vmatmul.f32.gmra.mxu0 %v1607
      %v1609 = vpop.f32.mrf.mxu0
      %v1610 = vadd.f32 %v1464, %v1609
      %v1611 = vand.u32 %v526, 4294901760
      %1612 = vmatmul.f32.gmra.mxu0 %v1611
      %v1613 = vpop.f32.mrf.mxu0
      %v1614 = vadd.f32 %v1468, %v1613
      %v1615 = vand.u32 %v529, 4294901760
      %1616 = vmatmul.f32.gmra.mxu0 %v1615
      %v1617 = vpop.f32.mrf.mxu0
      %v1618 = vadd.f32 %v1472, %v1617
      %v1619 = vand.u32 %v532, 4294901760
      %1620 = vmatmul.f32.gmra.mxu0 %v1619
      %v1621 = vpop.f32.mrf.mxu0
      %v1622 = vadd.f32 %v1476, %v1621
      %v1623 = vand.u32 %v535, 4294901760
      %1624 = vmatmul.f32.gmra.mxu0 %v1623
      %v1625 = vpop.f32.mrf.mxu0
      %v1626 = vadd.f32 %v1480, %v1625
      %v1627 = vand.u32 %v538, 4294901760
      %1628 = vmatmul.f32.gmra.mxu0 %v1627
      %v1629 = vpop.f32.mrf.mxu0
      %v1630 = vadd.f32 %v1484, %v1629
      %v1631 = vand.u32 %v541, 4294901760
      %1632 = vmatmul.f32.gmra.mxu0 %v1631
      %v1633 = vpop.f32.mrf.mxu0
      %v1634 = vadd.f32 %v1488, %v1633
      %v1635 = vand.u32 %v544, 4294901760
      %1636 = vmatmul.f32.gmra.mxu0 %v1635
      %v1637 = vpop.f32.mrf.mxu0
      %v1638 = vadd.f32 %v1492, %v1637
      %v1639 = vand.u32 %v547, 4294901760
      %1640 = vmatmul.f32.gmra.mxu0 %v1639
      %v1641 = vpop.f32.mrf.mxu0
      %v1642 = vadd.f32 %v1496, %v1641
      %v1643 = vand.u32 %v550, 4294901760
      %1644 = vmatmul.f32.gmra.mxu0 %v1643
      %v1645 = vpop.f32.mrf.mxu0
      %v1646 = vadd.f32 %v1500, %v1645
      %v1647 = vand.u32 %v553, 4294901760
      %1648 = vmatmul.f32.gmra.mxu0 %v1647
      %v1649 = vpop.f32.mrf.mxu0
      %v1650 = vadd.f32 %v1504, %v1649
      %v1651 = vand.u32 %v556, 4294901760
      %1652 = vmatmul.f32.gmra.mxu0 %v1651
      %v1653 = vpop.f32.mrf.mxu0
      %v1654 = vadd.f32 %v1508, %v1653
      %v1655 = vand.u32 %v559, 4294901760
      %1656 = vmatmul.f32.gmra.mxu0 %v1655
      %v1657 = vpop.f32.mrf.mxu0
      %v1658 = vadd.f32 %v1512, %v1657
      %v1659 = vand.u32 %v562, 4294901760
      %1660 = vmatmul.f32.gmra.mxu0 %v1659
      %v1661 = vpop.f32.mrf.mxu0
      %v1662 = vadd.f32 %v1516, %v1661
      %v1663 = vand.u32 %v565, 4294901760
      %1664 = vmatmul.f32.gmra.mxu0 %v1663
      %v1665 = vpop.f32.mrf.mxu0
      %v1666 = vadd.f32 %v1520, %v1665
      %v1667 = vand.u32 %v568, 4294901760
      %1668 = vmatmul.f32.gmra.mxu0 %v1667
      %v1669 = vpop.f32.mrf.mxu0
      %v1670 = vadd.f32 %v1524, %v1669
      %v1671 = vand.u32 %v571, 4294901760
      %1672 = vmatmul.f32.gmra.mxu0 %v1671
      %v1673 = vpop.f32.mrf.mxu0
      %v1674 = vadd.f32 %v1528, %v1673
      %v1675 = vand.u32 %v574, 4294901760
      %1676 = vmatmul.f32.gmra.mxu0 %v1675
      %v1677 = vpop.f32.mrf.mxu0
      %v1678 = vadd.f32 %v1532, %v1677
      %v1679 = vand.u32 %v577, 4294901760
      %1680 = vmatmul.f32.gmra.mxu0 %v1679
      %v1681 = vpop.f32.mrf.mxu0
      %v1682 = vadd.f32 %v1536, %v1681
      %v1683 = vand.u32 %v580, 4294901760
      %1684 = vmatmul.f32.gmra.mxu0 %v1683
      %v1685 = vpop.f32.mrf.mxu0
      %v1686 = vadd.f32 %v1540, %v1685
      %v1687 = vand.u32 %v583, 4294901760
      %1688 = vmatmul.f32.gmra.mxu0 %v1687
      %v1689 = vpop.f32.mrf.mxu0
      %v1690 = vadd.f32 %v1544, %v1689
      %1691 = vdwg.mxu0
      %1692 = vmatpush.msra.mxu0 0.0
      %1693 = vmatpush.msra.mxu0 0.0
      %1694 = vmatpush.msra.mxu0 0.0
      %1695 = vmatpush.msra.mxu0 0.0
      %1696 = vmatpush.msra.mxu0 0.0
      %1697 = vmatpush.msra.mxu0 0.0
      %1698 = vmatpush.msra.mxu0 0.0
      %1699 = vmatpush.msra.mxu0 0.0
      %1700 = vmatpush.msra.mxu0 0.0
      %1701 = vmatpush.msra.mxu0 0.0
      %1702 = vmatpush.msra.mxu0 0.0
      %1703 = vmatpush.msra.mxu0 0.0
      %1704 = vmatpush.msra.mxu0 0.0
      %1705 = vmatpush.msra.mxu0 0.0
      %1706 = vmatpush.msra.mxu0 0.0
      %v1707 = vand.u32 %v297, 4294901760
      %1708 = vmatpush.msra.mxu0 %v1707
      %v1709 = vand.u32 %v490, 4294901760
      %v1710 = vsub.f32 %v490, %v1709
      %v1711 = vand.u32 %v1710, 4294901760
      %v1712 = vsub.f32 %v1710, %v1711
      %v1713 = vand.u32 %v1712, 4294901760
      %1714 = vmatmul.f32.gmra.mxu0 %v1713
      %v1715 = vpop.f32.mrf.mxu0
      %v1716 = vadd.f32 %v335, %v1715
      %v1717 = vand.u32 %v493, 4294901760
      %v1718 = vsub.f32 %v493, %v1717
      %v1719 = vand.u32 %v1718, 4294901760
      %v1720 = vsub.f32 %v1718, %v1719
      %v1721 = vand.u32 %v1720, 4294901760
      %1722 = vmatmul.f32.gmra.mxu0 %v1721
      %v1723 = vpop.f32.mrf.mxu0
      %v1724 = vadd.f32 %v338, %v1723
      %v1725 = vand.u32 %v496, 4294901760
      %v1726 = vsub.f32 %v496, %v1725
      %v1727 = vand.u32 %v1726, 4294901760
      %v1728 = vsub.f32 %v1726, %v1727
      %v1729 = vand.u32 %v1728, 4294901760
      %1730 = vmatmul.f32.gmra.mxu0 %v1729
      %v1731 = vpop.f32.mrf.mxu0
      %v1732 = vadd.f32 %v341, %v1731
      %v1733 = vand.u32 %v499, 4294901760
      %v1734 = vsub.f32 %v499, %v1733
      %v1735 = vand.u32 %v1734, 4294901760
      %v1736 = vsub.f32 %v1734, %v1735
      %v1737 = vand.u32 %v1736, 4294901760
      %1738 = vmatmul.f32.gmra.mxu0 %v1737
      %v1739 = vpop.f32.mrf.mxu0
      %v1740 = vadd.f32 %v344, %v1739
      %v1741 = vand.u32 %v502, 4294901760
      %v1742 = vsub.f32 %v502, %v1741
      %v1743 = vand.u32 %v1742, 4294901760
      %v1744 = vsub.f32 %v1742, %v1743
      %v1745 = vand.u32 %v1744, 4294901760
      %1746 = vmatmul.f32.gmra.mxu0 %v1745
      %v1747 = vpop.f32.mrf.mxu0
      %v1748 = vadd.f32 %v347, %v1747
      %v1749 = vand.u32 %v505, 4294901760
      %v1750 = vsub.f32 %v505, %v1749
      %v1751 = vand.u32 %v1750, 4294901760
      %v1752 = vsub.f32 %v1750, %v1751
      %v1753 = vand.u32 %v1752, 4294901760
      %1754 = vmatmul.f32.gmra.mxu0 %v1753
      %v1755 = vpop.f32.mrf.mxu0
      %v1756 = vadd.f32 %v350, %v1755
      %v1757 = vand.u32 %v508, 4294901760
      %v1758 = vsub.f32 %v508, %v1757
      %v1759 = vand.u32 %v1758, 4294901760
      %v1760 = vsub.f32 %v1758, %v1759
      %v1761 = vand.u32 %v1760, 4294901760
      %1762 = vmatmul.f32.gmra.mxu0 %v1761
      %v1763 = vpop.f32.mrf.mxu0
      %v1764 = vadd.f32 %v353, %v1763
      %v1765 = vand.u32 %v511, 4294901760
      %v1766 = vsub.f32 %v511, %v1765
      %v1767 = vand.u32 %v1766, 4294901760
      %v1768 = vsub.f32 %v1766, %v1767
      %v1769 = vand.u32 %v1768, 4294901760
      %1770 = vmatmul.f32.gmra.mxu0 %v1769
      %v1771 = vpop.f32.mrf.mxu0
      %v1772 = vadd.f32 %v356, %v1771
      %v1773 = vand.u32 %v514, 4294901760
      %v1774 = vsub.f32 %v514, %v1773
      %v1775 = vand.u32 %v1774, 4294901760
      %v1776 = vsub.f32 %v1774, %v1775
      %v1777 = vand.u32 %v1776, 4294901760
      %1778 = vmatmul.f32.gmra.mxu0 %v1777
      %v1779 = vpop.f32.mrf.mxu0
      %v1780 = vadd.f32 %v359, %v1779
      %v1781 = vand.u32 %v517, 4294901760
      %v1782 = vsub.f32 %v517, %v1781
      %v1783 = vand.u32 %v1782, 4294901760
      %v1784 = vsub.f32 %v1782, %v1783
      %v1785 = vand.u32 %v1784, 4294901760
      %1786 = vmatmul.f32.gmra.mxu0 %v1785
      %v1787 = vpop.f32.mrf.mxu0
      %v1788 = vadd.f32 %v362, %v1787
      %v1789 = vand.u32 %v520, 4294901760
      %v1790 = vsub.f32 %v520, %v1789
      %v1791 = vand.u32 %v1790, 4294901760
      %v1792 = vsub.f32 %v1790, %v1791
      %v1793 = vand.u32 %v1792, 4294901760
      %1794 = vmatmul.f32.gmra.mxu0 %v1793
      %v1795 = vpop.f32.mrf.mxu0
      %v1796 = vadd.f32 %v365, %v1795
      %v1797 = vand.u32 %v523, 4294901760
      %v1798 = vsub.f32 %v523, %v1797
      %v1799 = vand.u32 %v1798, 4294901760
      %v1800 = vsub.f32 %v1798, %v1799
      %v1801 = vand.u32 %v1800, 4294901760
      %1802 = vmatmul.f32.gmra.mxu0 %v1801
      %v1803 = vpop.f32.mrf.mxu0
      %v1804 = vadd.f32 %v368, %v1803
      %v1805 = vand.u32 %v526, 4294901760
      %v1806 = vsub.f32 %v526, %v1805
      %v1807 = vand.u32 %v1806, 4294901760
      %v1808 = vsub.f32 %v1806, %v1807
      %v1809 = vand.u32 %v1808, 4294901760
      %1810 = vmatmul.f32.gmra.mxu0 %v1809
      %v1811 = vpop.f32.mrf.mxu0
      %v1812 = vadd.f32 %v371, %v1811
      %v1813 = vand.u32 %v529, 4294901760
      %v1814 = vsub.f32 %v529, %v1813
      %v1815 = vand.u32 %v1814, 4294901760
      %v1816 = vsub.f32 %v1814, %v1815
      %v1817 = vand.u32 %v1816, 4294901760
      %1818 = vmatmul.f32.gmra.mxu0 %v1817
      %v1819 = vpop.f32.mrf.mxu0
      %v1820 = vadd.f32 %v374, %v1819
      %v1821 = vand.u32 %v532, 4294901760
      %v1822 = vsub.f32 %v532, %v1821
      %v1823 = vand.u32 %v1822, 4294901760
      %v1824 = vsub.f32 %v1822, %v1823
      %v1825 = vand.u32 %v1824, 4294901760
      %1826 = vmatmul.f32.gmra.mxu0 %v1825
      %v1827 = vpop.f32.mrf.mxu0
      %v1828 = vadd.f32 %v377, %v1827
      %v1829 = vand.u32 %v535, 4294901760
      %v1830 = vsub.f32 %v535, %v1829
      %v1831 = vand.u32 %v1830, 4294901760
      %v1832 = vsub.f32 %v1830, %v1831
      %v1833 = vand.u32 %v1832, 4294901760
      %1834 = vmatmul.f32.gmra.mxu0 %v1833
      %v1835 = vpop.f32.mrf.mxu0
      %v1836 = vadd.f32 %v380, %v1835
      %v1837 = vand.u32 %v538, 4294901760
      %v1838 = vsub.f32 %v538, %v1837
      %v1839 = vand.u32 %v1838, 4294901760
      %v1840 = vsub.f32 %v1838, %v1839
      %v1841 = vand.u32 %v1840, 4294901760
      %1842 = vmatmul.f32.gmra.mxu0 %v1841
      %v1843 = vpop.f32.mrf.mxu0
      %v1844 = vadd.f32 %v383, %v1843
      %v1845 = vand.u32 %v541, 4294901760
      %v1846 = vsub.f32 %v541, %v1845
      %v1847 = vand.u32 %v1846, 4294901760
      %v1848 = vsub.f32 %v1846, %v1847
      %v1849 = vand.u32 %v1848, 4294901760
      %1850 = vmatmul.f32.gmra.mxu0 %v1849
      %v1851 = vpop.f32.mrf.mxu0
      %v1852 = vadd.f32 %v386, %v1851
      %v1853 = vand.u32 %v544, 4294901760
      %v1854 = vsub.f32 %v544, %v1853
      %v1855 = vand.u32 %v1854, 4294901760
      %v1856 = vsub.f32 %v1854, %v1855
      %v1857 = vand.u32 %v1856, 4294901760
      %1858 = vmatmul.f32.gmra.mxu0 %v1857
      %v1859 = vpop.f32.mrf.mxu0
      %v1860 = vadd.f32 %v389, %v1859
      %v1861 = vand.u32 %v547, 4294901760
      %v1862 = vsub.f32 %v547, %v1861
      %v1863 = vand.u32 %v1862, 4294901760
      %v1864 = vsub.f32 %v1862, %v1863
      %v1865 = vand.u32 %v1864, 4294901760
      %1866 = vmatmul.f32.gmra.mxu0 %v1865
      %v1867 = vpop.f32.mrf.mxu0
      %v1868 = vadd.f32 %v392, %v1867
      %v1869 = vand.u32 %v550, 4294901760
      %v1870 = vsub.f32 %v550, %v1869
      %v1871 = vand.u32 %v1870, 4294901760
      %v1872 = vsub.f32 %v1870, %v1871
      %v1873 = vand.u32 %v1872, 4294901760
      %1874 = vmatmul.f32.gmra.mxu0 %v1873
      %v1875 = vpop.f32.mrf.mxu0
      %v1876 = vadd.f32 %v395, %v1875
      %v1877 = vand.u32 %v553, 4294901760
      %v1878 = vsub.f32 %v553, %v1877
      %v1879 = vand.u32 %v1878, 4294901760
      %v1880 = vsub.f32 %v1878, %v1879
      %v1881 = vand.u32 %v1880, 4294901760
      %1882 = vmatmul.f32.gmra.mxu0 %v1881
      %v1883 = vpop.f32.mrf.mxu0
      %v1884 = vadd.f32 %v398, %v1883
      %v1885 = vand.u32 %v556, 4294901760
      %v1886 = vsub.f32 %v556, %v1885
      %v1887 = vand.u32 %v1886, 4294901760
      %v1888 = vsub.f32 %v1886, %v1887
      %v1889 = vand.u32 %v1888, 4294901760
      %1890 = vmatmul.f32.gmra.mxu0 %v1889
      %v1891 = vpop.f32.mrf.mxu0
      %v1892 = vadd.f32 %v401, %v1891
      %v1893 = vand.u32 %v559, 4294901760
      %v1894 = vsub.f32 %v559, %v1893
      %v1895 = vand.u32 %v1894, 4294901760
      %v1896 = vsub.f32 %v1894, %v1895
      %v1897 = vand.u32 %v1896, 4294901760
      %1898 = vmatmul.f32.gmra.mxu0 %v1897
      %v1899 = vpop.f32.mrf.mxu0
      %v1900 = vadd.f32 %v404, %v1899
      %v1901 = vand.u32 %v562, 4294901760
      %v1902 = vsub.f32 %v562, %v1901
      %v1903 = vand.u32 %v1902, 4294901760
      %v1904 = vsub.f32 %v1902, %v1903
      %v1905 = vand.u32 %v1904, 4294901760
      %1906 = vmatmul.f32.gmra.mxu0 %v1905
      %v1907 = vpop.f32.mrf.mxu0
      %v1908 = vadd.f32 %v407, %v1907
      %v1909 = vand.u32 %v565, 4294901760
      %v1910 = vsub.f32 %v565, %v1909
      %v1911 = vand.u32 %v1910, 4294901760
      %v1912 = vsub.f32 %v1910, %v1911
      %v1913 = vand.u32 %v1912, 4294901760
      %1914 = vmatmul.f32.gmra.mxu0 %v1913
      %v1915 = vpop.f32.mrf.mxu0
      %v1916 = vadd.f32 %v410, %v1915
      %v1917 = vand.u32 %v568, 4294901760
      %v1918 = vsub.f32 %v568, %v1917
      %v1919 = vand.u32 %v1918, 4294901760
      %v1920 = vsub.f32 %v1918, %v1919
      %v1921 = vand.u32 %v1920, 4294901760
      %1922 = vmatmul.f32.gmra.mxu0 %v1921
      %v1923 = vpop.f32.mrf.mxu0
      %v1924 = vadd.f32 %v413, %v1923
      %v1925 = vand.u32 %v571, 4294901760
      %v1926 = vsub.f32 %v571, %v1925
      %v1927 = vand.u32 %v1926, 4294901760
      %v1928 = vsub.f32 %v1926, %v1927
      %v1929 = vand.u32 %v1928, 4294901760
      %1930 = vmatmul.f32.gmra.mxu0 %v1929
      %v1931 = vpop.f32.mrf.mxu0
      %v1932 = vadd.f32 %v416, %v1931
      %v1933 = vand.u32 %v574, 4294901760
      %v1934 = vsub.f32 %v574, %v1933
      %v1935 = vand.u32 %v1934, 4294901760
      %v1936 = vsub.f32 %v1934, %v1935
      %v1937 = vand.u32 %v1936, 4294901760
      %1938 = vmatmul.f32.gmra.mxu0 %v1937
      %v1939 = vpop.f32.mrf.mxu0
      %v1940 = vadd.f32 %v419, %v1939
      %v1941 = vand.u32 %v577, 4294901760
      %v1942 = vsub.f32 %v577, %v1941
      %v1943 = vand.u32 %v1942, 4294901760
      %v1944 = vsub.f32 %v1942, %v1943
      %v1945 = vand.u32 %v1944, 4294901760
      %1946 = vmatmul.f32.gmra.mxu0 %v1945
      %v1947 = vpop.f32.mrf.mxu0
      %v1948 = vadd.f32 %v422, %v1947
      %v1949 = vand.u32 %v580, 4294901760
      %v1950 = vsub.f32 %v580, %v1949
      %v1951 = vand.u32 %v1950, 4294901760
      %v1952 = vsub.f32 %v1950, %v1951
      %v1953 = vand.u32 %v1952, 4294901760
      %1954 = vmatmul.f32.gmra.mxu0 %v1953
      %v1955 = vpop.f32.mrf.mxu0
      %v1956 = vadd.f32 %v425, %v1955
      %v1957 = vand.u32 %v583, 4294901760
      %v1958 = vsub.f32 %v583, %v1957
      %v1959 = vand.u32 %v1958, 4294901760
      %v1960 = vsub.f32 %v1958, %v1959
      %v1961 = vand.u32 %v1960, 4294901760
      %1962 = vmatmul.f32.gmra.mxu0 %v1961
      %v1963 = vpop.f32.mrf.mxu0
      %v1964 = vadd.f32 %v428, %v1963
      %1965 = vdwg.mxu0
      %1966 = vmatpush.msra.mxu0 0.0
      %1967 = vmatpush.msra.mxu0 0.0
      %1968 = vmatpush.msra.mxu0 0.0
      %1969 = vmatpush.msra.mxu0 0.0
      %1970 = vmatpush.msra.mxu0 0.0
      %1971 = vmatpush.msra.mxu0 0.0
      %1972 = vmatpush.msra.mxu0 0.0
      %1973 = vmatpush.msra.mxu0 0.0
      %1974 = vmatpush.msra.mxu0 0.0
      %1975 = vmatpush.msra.mxu0 0.0
      %1976 = vmatpush.msra.mxu0 0.0
      %1977 = vmatpush.msra.mxu0 0.0
      %1978 = vmatpush.msra.mxu0 0.0
      %1979 = vmatpush.msra.mxu0 0.0
      %1980 = vmatpush.msra.mxu0 0.0
      %v1981 = vand.u32 %v297, 4294901760
      %v1982 = vsub.f32 %v297, %v1981
      %v1983 = vand.u32 %v1982, 4294901760
      %v1984 = vsub.f32 %v1982, %v1983
      %v1985 = vand.u32 %v1984, 4294901760
      %1986 = vmatpush.msra.mxu0 %v1985
      %v1987 = vand.u32 %v490, 4294901760
      %1988 = vmatmul.f32.gmra.mxu0 %v1987
      %v1989 = vpop.f32.mrf.mxu0
      %v1990 = vadd.f32 %v1716, %v1989
      %v1991 = vand.u32 %v493, 4294901760
      %1992 = vmatmul.f32.gmra.mxu0 %v1991
      %v1993 = vpop.f32.mrf.mxu0
      %v1994 = vadd.f32 %v1724, %v1993
      %v1995 = vand.u32 %v496, 4294901760
      %1996 = vmatmul.f32.gmra.mxu0 %v1995
      %v1997 = vpop.f32.mrf.mxu0
      %v1998 = vadd.f32 %v1732, %v1997
      %v1999 = vand.u32 %v499, 4294901760
      %2000 = vmatmul.f32.gmra.mxu0 %v1999
      %v2001 = vpop.f32.mrf.mxu0
      %v2002 = vadd.f32 %v1740, %v2001
      %v2003 = vand.u32 %v502, 4294901760
      %2004 = vmatmul.f32.gmra.mxu0 %v2003
      %v2005 = vpop.f32.mrf.mxu0
      %v2006 = vadd.f32 %v1748, %v2005
      %v2007 = vand.u32 %v505, 4294901760
      %2008 = vmatmul.f32.gmra.mxu0 %v2007
      %v2009 = vpop.f32.mrf.mxu0
      %v2010 = vadd.f32 %v1756, %v2009
      %v2011 = vand.u32 %v508, 4294901760
      %2012 = vmatmul.f32.gmra.mxu0 %v2011
      %v2013 = vpop.f32.mrf.mxu0
      %v2014 = vadd.f32 %v1764, %v2013
      %v2015 = vand.u32 %v511, 4294901760
      %2016 = vmatmul.f32.gmra.mxu0 %v2015
      %v2017 = vpop.f32.mrf.mxu0
      %v2018 = vadd.f32 %v1772, %v2017
      %v2019 = vand.u32 %v514, 4294901760
      %2020 = vmatmul.f32.gmra.mxu0 %v2019
      %v2021 = vpop.f32.mrf.mxu0
      %v2022 = vadd.f32 %v1780, %v2021
      %v2023 = vand.u32 %v517, 4294901760
      %2024 = vmatmul.f32.gmra.mxu0 %v2023
      %v2025 = vpop.f32.mrf.mxu0
      %v2026 = vadd.f32 %v1788, %v2025
      %v2027 = vand.u32 %v520, 4294901760
      %2028 = vmatmul.f32.gmra.mxu0 %v2027
      %v2029 = vpop.f32.mrf.mxu0
      %v2030 = vadd.f32 %v1796, %v2029
      %v2031 = vand.u32 %v523, 4294901760
      %2032 = vmatmul.f32.gmra.mxu0 %v2031
      %v2033 = vpop.f32.mrf.mxu0
      %v2034 = vadd.f32 %v1804, %v2033
      %v2035 = vand.u32 %v526, 4294901760
      %2036 = vmatmul.f32.gmra.mxu0 %v2035
      %v2037 = vpop.f32.mrf.mxu0
      %v2038 = vadd.f32 %v1812, %v2037
      %v2039 = vand.u32 %v529, 4294901760
      %2040 = vmatmul.f32.gmra.mxu0 %v2039
      %v2041 = vpop.f32.mrf.mxu0
      %v2042 = vadd.f32 %v1820, %v2041
      %v2043 = vand.u32 %v532, 4294901760
      %2044 = vmatmul.f32.gmra.mxu0 %v2043
      %v2045 = vpop.f32.mrf.mxu0
      %v2046 = vadd.f32 %v1828, %v2045
      %v2047 = vand.u32 %v535, 4294901760
      %2048 = vmatmul.f32.gmra.mxu0 %v2047
      %v2049 = vpop.f32.mrf.mxu0
      %v2050 = vadd.f32 %v1836, %v2049
      %v2051 = vand.u32 %v538, 4294901760
      %2052 = vmatmul.f32.gmra.mxu0 %v2051
      %v2053 = vpop.f32.mrf.mxu0
      %v2054 = vadd.f32 %v1844, %v2053
      %v2055 = vand.u32 %v541, 4294901760
      %2056 = vmatmul.f32.gmra.mxu0 %v2055
      %v2057 = vpop.f32.mrf.mxu0
      %v2058 = vadd.f32 %v1852, %v2057
      %v2059 = vand.u32 %v544, 4294901760
      %2060 = vmatmul.f32.gmra.mxu0 %v2059
      %v2061 = vpop.f32.mrf.mxu0
      %v2062 = vadd.f32 %v1860, %v2061
      %v2063 = vand.u32 %v547, 4294901760
      %2064 = vmatmul.f32.gmra.mxu0 %v2063
      %v2065 = vpop.f32.mrf.mxu0
      %v2066 = vadd.f32 %v1868, %v2065
      %v2067 = vand.u32 %v550, 4294901760
      %2068 = vmatmul.f32.gmra.mxu0 %v2067
      %v2069 = vpop.f32.mrf.mxu0
      %v2070 = vadd.f32 %v1876, %v2069
      %v2071 = vand.u32 %v553, 4294901760
      %2072 = vmatmul.f32.gmra.mxu0 %v2071
      %v2073 = vpop.f32.mrf.mxu0
      %v2074 = vadd.f32 %v1884, %v2073
      %v2075 = vand.u32 %v556, 4294901760
      %2076 = vmatmul.f32.gmra.mxu0 %v2075
      %v2077 = vpop.f32.mrf.mxu0
      %v2078 = vadd.f32 %v1892, %v2077
      %v2079 = vand.u32 %v559, 4294901760
      %2080 = vmatmul.f32.gmra.mxu0 %v2079
      %v2081 = vpop.f32.mrf.mxu0
      %v2082 = vadd.f32 %v1900, %v2081
      %v2083 = vand.u32 %v562, 4294901760
      %2084 = vmatmul.f32.gmra.mxu0 %v2083
      %v2085 = vpop.f32.mrf.mxu0
      %v2086 = vadd.f32 %v1908, %v2085
      %v2087 = vand.u32 %v565, 4294901760
      %2088 = vmatmul.f32.gmra.mxu0 %v2087
      %v2089 = vpop.f32.mrf.mxu0
      %v2090 = vadd.f32 %v1916, %v2089
      %v2091 = vand.u32 %v568, 4294901760
      %2092 = vmatmul.f32.gmra.mxu0 %v2091
      %v2093 = vpop.f32.mrf.mxu0
      %v2094 = vadd.f32 %v1924, %v2093
      %v2095 = vand.u32 %v571, 4294901760
      %2096 = vmatmul.f32.gmra.mxu0 %v2095
      %v2097 = vpop.f32.mrf.mxu0
      %v2098 = vadd.f32 %v1932, %v2097
      %v2099 = vand.u32 %v574, 4294901760
      %2100 = vmatmul.f32.gmra.mxu0 %v2099
      %v2101 = vpop.f32.mrf.mxu0
      %v2102 = vadd.f32 %v1940, %v2101
      %v2103 = vand.u32 %v577, 4294901760
      %2104 = vmatmul.f32.gmra.mxu0 %v2103
      %v2105 = vpop.f32.mrf.mxu0
      %v2106 = vadd.f32 %v1948, %v2105
      %v2107 = vand.u32 %v580, 4294901760
      %2108 = vmatmul.f32.gmra.mxu0 %v2107
      %v2109 = vpop.f32.mrf.mxu0
      %v2110 = vadd.f32 %v1956, %v2109
      %v2111 = vand.u32 %v583, 4294901760
      %2112 = vmatmul.f32.gmra.mxu0 %v2111
      %v2113 = vpop.f32.mrf.mxu0
      %v2114 = vadd.f32 %v1964, %v2113
      %2115 = vdwg.mxu0
      %2116 = vmatpush.msra.mxu0 0.0
      %2117 = vmatpush.msra.mxu0 0.0
      %2118 = vmatpush.msra.mxu0 0.0
      %2119 = vmatpush.msra.mxu0 0.0
      %2120 = vmatpush.msra.mxu0 0.0
      %2121 = vmatpush.msra.mxu0 0.0
      %2122 = vmatpush.msra.mxu0 0.0
      %2123 = vmatpush.msra.mxu0 0.0
      %2124 = vmatpush.msra.mxu0 0.0
      %2125 = vmatpush.msra.mxu0 0.0
      %2126 = vmatpush.msra.mxu0 0.0
      %2127 = vmatpush.msra.mxu0 0.0
      %2128 = vmatpush.msra.mxu0 0.0
      %2129 = vmatpush.msra.mxu0 0.0
      %2130 = vmatpush.msra.mxu0 0.0
      %v2131 = vand.u32 %v297, 4294901760
      %v2132 = vsub.f32 %v297, %v2131
      %2133 = vmatpush.msra.mxu0 %v2132
      %v2134 = vand.u32 %v490, 4294901760
      %v2135 = vsub.f32 %v490, %v2134
      %2136 = vmatmul.f32.gmra.mxu0 %v2135
      %v2137 = vpop.f32.mrf.mxu0
      %v2138 = vadd.f32 %v1990, %v2137
      %v2139 = vand.u32 %v493, 4294901760
      %v2140 = vsub.f32 %v493, %v2139
      %2141 = vmatmul.f32.gmra.mxu0 %v2140
      %v2142 = vpop.f32.mrf.mxu0
      %v2143 = vadd.f32 %v1994, %v2142
      %v2144 = vand.u32 %v496, 4294901760
      %v2145 = vsub.f32 %v496, %v2144
      %2146 = vmatmul.f32.gmra.mxu0 %v2145
      %v2147 = vpop.f32.mrf.mxu0
      %v2148 = vadd.f32 %v1998, %v2147
      %v2149 = vand.u32 %v499, 4294901760
      %v2150 = vsub.f32 %v499, %v2149
      %2151 = vmatmul.f32.gmra.mxu0 %v2150
      %v2152 = vpop.f32.mrf.mxu0
      %v2153 = vadd.f32 %v2002, %v2152
      %v2154 = vand.u32 %v502, 4294901760
      %v2155 = vsub.f32 %v502, %v2154
      %2156 = vmatmul.f32.gmra.mxu0 %v2155
      %v2157 = vpop.f32.mrf.mxu0
      %v2158 = vadd.f32 %v2006, %v2157
      %v2159 = vand.u32 %v505, 4294901760
      %v2160 = vsub.f32 %v505, %v2159
      %2161 = vmatmul.f32.gmra.mxu0 %v2160
      %v2162 = vpop.f32.mrf.mxu0
      %v2163 = vadd.f32 %v2010, %v2162
      %v2164 = vand.u32 %v508, 4294901760
      %v2165 = vsub.f32 %v508, %v2164
      %2166 = vmatmul.f32.gmra.mxu0 %v2165
      %v2167 = vpop.f32.mrf.mxu0
      %v2168 = vadd.f32 %v2014, %v2167
      %v2169 = vand.u32 %v511, 4294901760
      %v2170 = vsub.f32 %v511, %v2169
      %2171 = vmatmul.f32.gmra.mxu0 %v2170
      %v2172 = vpop.f32.mrf.mxu0
      %v2173 = vadd.f32 %v2018, %v2172
      %v2174 = vand.u32 %v514, 4294901760
      %v2175 = vsub.f32 %v514, %v2174
      %2176 = vmatmul.f32.gmra.mxu0 %v2175
      %v2177 = vpop.f32.mrf.mxu0
      %v2178 = vadd.f32 %v2022, %v2177
      %v2179 = vand.u32 %v517, 4294901760
      %v2180 = vsub.f32 %v517, %v2179
      %2181 = vmatmul.f32.gmra.mxu0 %v2180
      %v2182 = vpop.f32.mrf.mxu0
      %v2183 = vadd.f32 %v2026, %v2182
      %v2184 = vand.u32 %v520, 4294901760
      %v2185 = vsub.f32 %v520, %v2184
      %2186 = vmatmul.f32.gmra.mxu0 %v2185
      %v2187 = vpop.f32.mrf.mxu0
      %v2188 = vadd.f32 %v2030, %v2187
      %v2189 = vand.u32 %v523, 4294901760
      %v2190 = vsub.f32 %v523, %v2189
      %2191 = vmatmul.f32.gmra.mxu0 %v2190
      %v2192 = vpop.f32.mrf.mxu0
      %v2193 = vadd.f32 %v2034, %v2192
      %v2194 = vand.u32 %v526, 4294901760
      %v2195 = vsub.f32 %v526, %v2194
      %2196 = vmatmul.f32.gmra.mxu0 %v2195
      %v2197 = vpop.f32.mrf.mxu0
      %v2198 = vadd.f32 %v2038, %v2197
      %v2199 = vand.u32 %v529, 4294901760
      %v2200 = vsub.f32 %v529, %v2199
      %2201 = vmatmul.f32.gmra.mxu0 %v2200
      %v2202 = vpop.f32.mrf.mxu0
      %v2203 = vadd.f32 %v2042, %v2202
      %v2204 = vand.u32 %v532, 4294901760
      %v2205 = vsub.f32 %v532, %v2204
      %2206 = vmatmul.f32.gmra.mxu0 %v2205
      %v2207 = vpop.f32.mrf.mxu0
      %v2208 = vadd.f32 %v2046, %v2207
      %v2209 = vand.u32 %v535, 4294901760
      %v2210 = vsub.f32 %v535, %v2209
      %2211 = vmatmul.f32.gmra.mxu0 %v2210
      %v2212 = vpop.f32.mrf.mxu0
      %v2213 = vadd.f32 %v2050, %v2212
      %v2214 = vand.u32 %v538, 4294901760
      %v2215 = vsub.f32 %v538, %v2214
      %2216 = vmatmul.f32.gmra.mxu0 %v2215
      %v2217 = vpop.f32.mrf.mxu0
      %v2218 = vadd.f32 %v2054, %v2217
      %v2219 = vand.u32 %v541, 4294901760
      %v2220 = vsub.f32 %v541, %v2219
      %2221 = vmatmul.f32.gmra.mxu0 %v2220
      %v2222 = vpop.f32.mrf.mxu0
      %v2223 = vadd.f32 %v2058, %v2222
      %v2224 = vand.u32 %v544, 4294901760
      %v2225 = vsub.f32 %v544, %v2224
      %2226 = vmatmul.f32.gmra.mxu0 %v2225
      %v2227 = vpop.f32.mrf.mxu0
      %v2228 = vadd.f32 %v2062, %v2227
      %v2229 = vand.u32 %v547, 4294901760
      %v2230 = vsub.f32 %v547, %v2229
      %2231 = vmatmul.f32.gmra.mxu0 %v2230
      %v2232 = vpop.f32.mrf.mxu0
      %v2233 = vadd.f32 %v2066, %v2232
      %v2234 = vand.u32 %v550, 4294901760
      %v2235 = vsub.f32 %v550, %v2234
      %2236 = vmatmul.f32.gmra.mxu0 %v2235
      %v2237 = vpop.f32.mrf.mxu0
      %v2238 = vadd.f32 %v2070, %v2237
      %v2239 = vand.u32 %v553, 4294901760
      %v2240 = vsub.f32 %v553, %v2239
      %2241 = vmatmul.f32.gmra.mxu0 %v2240
      %v2242 = vpop.f32.mrf.mxu0
      %v2243 = vadd.f32 %v2074, %v2242
      %v2244 = vand.u32 %v556, 4294901760
      %v2245 = vsub.f32 %v556, %v2244
      %2246 = vmatmul.f32.gmra.mxu0 %v2245
      %v2247 = vpop.f32.mrf.mxu0
      %v2248 = vadd.f32 %v2078, %v2247
      %v2249 = vand.u32 %v559, 4294901760
      %v2250 = vsub.f32 %v559, %v2249
      %2251 = vmatmul.f32.gmra.mxu0 %v2250
      %v2252 = vpop.f32.mrf.mxu0
      %v2253 = vadd.f32 %v2082, %v2252
      %v2254 = vand.u32 %v562, 4294901760
      %v2255 = vsub.f32 %v562, %v2254
      %2256 = vmatmul.f32.gmra.mxu0 %v2255
      %v2257 = vpop.f32.mrf.mxu0
      %v2258 = vadd.f32 %v2086, %v2257
      %v2259 = vand.u32 %v565, 4294901760
      %v2260 = vsub.f32 %v565, %v2259
      %2261 = vmatmul.f32.gmra.mxu0 %v2260
      %v2262 = vpop.f32.mrf.mxu0
      %v2263 = vadd.f32 %v2090, %v2262
      %v2264 = vand.u32 %v568, 4294901760
      %v2265 = vsub.f32 %v568, %v2264
      %2266 = vmatmul.f32.gmra.mxu0 %v2265
      %v2267 = vpop.f32.mrf.mxu0
      %v2268 = vadd.f32 %v2094, %v2267
      %v2269 = vand.u32 %v571, 4294901760
      %v2270 = vsub.f32 %v571, %v2269
      %2271 = vmatmul.f32.gmra.mxu0 %v2270
      %v2272 = vpop.f32.mrf.mxu0
      %v2273 = vadd.f32 %v2098, %v2272
      %v2274 = vand.u32 %v574, 4294901760
      %v2275 = vsub.f32 %v574, %v2274
      %2276 = vmatmul.f32.gmra.mxu0 %v2275
      %v2277 = vpop.f32.mrf.mxu0
      %v2278 = vadd.f32 %v2102, %v2277
      %v2279 = vand.u32 %v577, 4294901760
      %v2280 = vsub.f32 %v577, %v2279
      %2281 = vmatmul.f32.gmra.mxu0 %v2280
      %v2282 = vpop.f32.mrf.mxu0
      %v2283 = vadd.f32 %v2106, %v2282
      %v2284 = vand.u32 %v580, 4294901760
      %v2285 = vsub.f32 %v580, %v2284
      %2286 = vmatmul.f32.gmra.mxu0 %v2285
      %v2287 = vpop.f32.mrf.mxu0
      %v2288 = vadd.f32 %v2110, %v2287
      %v2289 = vand.u32 %v583, 4294901760
      %v2290 = vsub.f32 %v583, %v2289
      %2291 = vmatmul.f32.gmra.mxu0 %v2290
      %v2292 = vpop.f32.mrf.mxu0
      %v2293 = vadd.f32 %v2114, %v2292
      %2294 = vdwg.mxu0
      %2295 = vmatpush.msra.mxu0 0.0
      %2296 = vmatpush.msra.mxu0 0.0
      %2297 = vmatpush.msra.mxu0 0.0
      %2298 = vmatpush.msra.mxu0 0.0
      %2299 = vmatpush.msra.mxu0 0.0
      %2300 = vmatpush.msra.mxu0 0.0
      %2301 = vmatpush.msra.mxu0 0.0
      %2302 = vmatpush.msra.mxu0 0.0
      %2303 = vmatpush.msra.mxu0 0.0
      %2304 = vmatpush.msra.mxu0 0.0
      %2305 = vmatpush.msra.mxu0 0.0
      %2306 = vmatpush.msra.mxu0 0.0
      %2307 = vmatpush.msra.mxu0 0.0
      %2308 = vmatpush.msra.mxu0 0.0
      %2309 = vmatpush.msra.mxu0 0.0
      %v2310 = vand.u32 %v297, 4294901760
      %2311 = vmatpush.msra.mxu0 %v2310
      %v2312 = vand.u32 %v490, 4294901760
      %v2313 = vsub.f32 %v490, %v2312
      %v2314 = vand.u32 %v2313, 4294901760
      %2315 = vmatmul.f32.gmra.mxu0 %v2314
      %v2316 = vpop.f32.mrf.mxu0
      %v2317 = vadd.f32 %v2138, %v2316
      %v2318 = vand.u32 %v493, 4294901760
      %v2319 = vsub.f32 %v493, %v2318
      %v2320 = vand.u32 %v2319, 4294901760
      %2321 = vmatmul.f32.gmra.mxu0 %v2320
      %v2322 = vpop.f32.mrf.mxu0
      %v2323 = vadd.f32 %v2143, %v2322
      %v2324 = vand.u32 %v496, 4294901760
      %v2325 = vsub.f32 %v496, %v2324
      %v2326 = vand.u32 %v2325, 4294901760
      %2327 = vmatmul.f32.gmra.mxu0 %v2326
      %v2328 = vpop.f32.mrf.mxu0
      %v2329 = vadd.f32 %v2148, %v2328
      %v2330 = vand.u32 %v499, 4294901760
      %v2331 = vsub.f32 %v499, %v2330
      %v2332 = vand.u32 %v2331, 4294901760
      %2333 = vmatmul.f32.gmra.mxu0 %v2332
      %v2334 = vpop.f32.mrf.mxu0
      %v2335 = vadd.f32 %v2153, %v2334
      %v2336 = vand.u32 %v502, 4294901760
      %v2337 = vsub.f32 %v502, %v2336
      %v2338 = vand.u32 %v2337, 4294901760
      %2339 = vmatmul.f32.gmra.mxu0 %v2338
      %v2340 = vpop.f32.mrf.mxu0
      %v2341 = vadd.f32 %v2158, %v2340
      %v2342 = vand.u32 %v505, 4294901760
      %v2343 = vsub.f32 %v505, %v2342
      %v2344 = vand.u32 %v2343, 4294901760
      %2345 = vmatmul.f32.gmra.mxu0 %v2344
      %v2346 = vpop.f32.mrf.mxu0
      %v2347 = vadd.f32 %v2163, %v2346
      %v2348 = vand.u32 %v508, 4294901760
      %v2349 = vsub.f32 %v508, %v2348
      %v2350 = vand.u32 %v2349, 4294901760
      %2351 = vmatmul.f32.gmra.mxu0 %v2350
      %v2352 = vpop.f32.mrf.mxu0
      %v2353 = vadd.f32 %v2168, %v2352
      %v2354 = vand.u32 %v511, 4294901760
      %v2355 = vsub.f32 %v511, %v2354
      %v2356 = vand.u32 %v2355, 4294901760
      %2357 = vmatmul.f32.gmra.mxu0 %v2356
      %v2358 = vpop.f32.mrf.mxu0
      %v2359 = vadd.f32 %v2173, %v2358
      %v2360 = vand.u32 %v514, 4294901760
      %v2361 = vsub.f32 %v514, %v2360
      %v2362 = vand.u32 %v2361, 4294901760
      %2363 = vmatmul.f32.gmra.mxu0 %v2362
      %v2364 = vpop.f32.mrf.mxu0
      %v2365 = vadd.f32 %v2178, %v2364
      %v2366 = vand.u32 %v517, 4294901760
      %v2367 = vsub.f32 %v517, %v2366
      %v2368 = vand.u32 %v2367, 4294901760
      %2369 = vmatmul.f32.gmra.mxu0 %v2368
      %v2370 = vpop.f32.mrf.mxu0
      %v2371 = vadd.f32 %v2183, %v2370
      %v2372 = vand.u32 %v520, 4294901760
      %v2373 = vsub.f32 %v520, %v2372
      %v2374 = vand.u32 %v2373, 4294901760
      %2375 = vmatmul.f32.gmra.mxu0 %v2374
      %v2376 = vpop.f32.mrf.mxu0
      %v2377 = vadd.f32 %v2188, %v2376
      %v2378 = vand.u32 %v523, 4294901760
      %v2379 = vsub.f32 %v523, %v2378
      %v2380 = vand.u32 %v2379, 4294901760
      %2381 = vmatmul.f32.gmra.mxu0 %v2380
      %v2382 = vpop.f32.mrf.mxu0
      %v2383 = vadd.f32 %v2193, %v2382
      %v2384 = vand.u32 %v526, 4294901760
      %v2385 = vsub.f32 %v526, %v2384
      %v2386 = vand.u32 %v2385, 4294901760
      %2387 = vmatmul.f32.gmra.mxu0 %v2386
      %v2388 = vpop.f32.mrf.mxu0
      %v2389 = vadd.f32 %v2198, %v2388
      %v2390 = vand.u32 %v529, 4294901760
      %v2391 = vsub.f32 %v529, %v2390
      %v2392 = vand.u32 %v2391, 4294901760
      %2393 = vmatmul.f32.gmra.mxu0 %v2392
      %v2394 = vpop.f32.mrf.mxu0
      %v2395 = vadd.f32 %v2203, %v2394
      %v2396 = vand.u32 %v532, 4294901760
      %v2397 = vsub.f32 %v532, %v2396
      %v2398 = vand.u32 %v2397, 4294901760
      %2399 = vmatmul.f32.gmra.mxu0 %v2398
      %v2400 = vpop.f32.mrf.mxu0
      %v2401 = vadd.f32 %v2208, %v2400
      %v2402 = vand.u32 %v535, 4294901760
      %v2403 = vsub.f32 %v535, %v2402
      %v2404 = vand.u32 %v2403, 4294901760
      %2405 = vmatmul.f32.gmra.mxu0 %v2404
      %v2406 = vpop.f32.mrf.mxu0
      %v2407 = vadd.f32 %v2213, %v2406
      %v2408 = vand.u32 %v538, 4294901760
      %v2409 = vsub.f32 %v538, %v2408
      %v2410 = vand.u32 %v2409, 4294901760
      %2411 = vmatmul.f32.gmra.mxu0 %v2410
      %v2412 = vpop.f32.mrf.mxu0
      %v2413 = vadd.f32 %v2218, %v2412
      %v2414 = vand.u32 %v541, 4294901760
      %v2415 = vsub.f32 %v541, %v2414
      %v2416 = vand.u32 %v2415, 4294901760
      %2417 = vmatmul.f32.gmra.mxu0 %v2416
      %v2418 = vpop.f32.mrf.mxu0
      %v2419 = vadd.f32 %v2223, %v2418
      %v2420 = vand.u32 %v544, 4294901760
      %v2421 = vsub.f32 %v544, %v2420
      %v2422 = vand.u32 %v2421, 4294901760
      %2423 = vmatmul.f32.gmra.mxu0 %v2422
      %v2424 = vpop.f32.mrf.mxu0
      %v2425 = vadd.f32 %v2228, %v2424
      %v2426 = vand.u32 %v547, 4294901760
      %v2427 = vsub.f32 %v547, %v2426
      %v2428 = vand.u32 %v2427, 4294901760
      %2429 = vmatmul.f32.gmra.mxu0 %v2428
      %v2430 = vpop.f32.mrf.mxu0
      %v2431 = vadd.f32 %v2233, %v2430
      %v2432 = vand.u32 %v550, 4294901760
      %v2433 = vsub.f32 %v550, %v2432
      %v2434 = vand.u32 %v2433, 4294901760
      %2435 = vmatmul.f32.gmra.mxu0 %v2434
      %v2436 = vpop.f32.mrf.mxu0
      %v2437 = vadd.f32 %v2238, %v2436
      %v2438 = vand.u32 %v553, 4294901760
      %v2439 = vsub.f32 %v553, %v2438
      %v2440 = vand.u32 %v2439, 4294901760
      %2441 = vmatmul.f32.gmra.mxu0 %v2440
      %v2442 = vpop.f32.mrf.mxu0
      %v2443 = vadd.f32 %v2243, %v2442
      %v2444 = vand.u32 %v556, 4294901760
      %v2445 = vsub.f32 %v556, %v2444
      %v2446 = vand.u32 %v2445, 4294901760
      %2447 = vmatmul.f32.gmra.mxu0 %v2446
      %v2448 = vpop.f32.mrf.mxu0
      %v2449 = vadd.f32 %v2248, %v2448
      %v2450 = vand.u32 %v559, 4294901760
      %v2451 = vsub.f32 %v559, %v2450
      %v2452 = vand.u32 %v2451, 4294901760
      %2453 = vmatmul.f32.gmra.mxu0 %v2452
      %v2454 = vpop.f32.mrf.mxu0
      %v2455 = vadd.f32 %v2253, %v2454
      %v2456 = vand.u32 %v562, 4294901760
      %v2457 = vsub.f32 %v562, %v2456
      %v2458 = vand.u32 %v2457, 4294901760
      %2459 = vmatmul.f32.gmra.mxu0 %v2458
      %v2460 = vpop.f32.mrf.mxu0
      %v2461 = vadd.f32 %v2258, %v2460
      %v2462 = vand.u32 %v565, 4294901760
      %v2463 = vsub.f32 %v565, %v2462
      %v2464 = vand.u32 %v2463, 4294901760
      %2465 = vmatmul.f32.gmra.mxu0 %v2464
      %v2466 = vpop.f32.mrf.mxu0
      %v2467 = vadd.f32 %v2263, %v2466
      %v2468 = vand.u32 %v568, 4294901760
      %v2469 = vsub.f32 %v568, %v2468
      %v2470 = vand.u32 %v2469, 4294901760
      %2471 = vmatmul.f32.gmra.mxu0 %v2470
      %v2472 = vpop.f32.mrf.mxu0
      %v2473 = vadd.f32 %v2268, %v2472
      %v2474 = vand.u32 %v571, 4294901760
      %v2475 = vsub.f32 %v571, %v2474
      %v2476 = vand.u32 %v2475, 4294901760
      %2477 = vmatmul.f32.gmra.mxu0 %v2476
      %v2478 = vpop.f32.mrf.mxu0
      %v2479 = vadd.f32 %v2273, %v2478
      %v2480 = vand.u32 %v574, 4294901760
      %v2481 = vsub.f32 %v574, %v2480
      %v2482 = vand.u32 %v2481, 4294901760
      %2483 = vmatmul.f32.gmra.mxu0 %v2482
      %v2484 = vpop.f32.mrf.mxu0
      %v2485 = vadd.f32 %v2278, %v2484
      %v2486 = vand.u32 %v577, 4294901760
      %v2487 = vsub.f32 %v577, %v2486
      %v2488 = vand.u32 %v2487, 4294901760
      %2489 = vmatmul.f32.gmra.mxu0 %v2488
      %v2490 = vpop.f32.mrf.mxu0
      %v2491 = vadd.f32 %v2283, %v2490
      %v2492 = vand.u32 %v580, 4294901760
      %v2493 = vsub.f32 %v580, %v2492
      %v2494 = vand.u32 %v2493, 4294901760
      %2495 = vmatmul.f32.gmra.mxu0 %v2494
      %v2496 = vpop.f32.mrf.mxu0
      %v2497 = vadd.f32 %v2288, %v2496
      %v2498 = vand.u32 %v583, 4294901760
      %v2499 = vsub.f32 %v583, %v2498
      %v2500 = vand.u32 %v2499, 4294901760
      %2501 = vmatmul.f32.gmra.mxu0 %v2500
      %v2502 = vpop.f32.mrf.mxu0
      %v2503 = vadd.f32 %v2293, %v2502
      %2504 = vdwg.mxu0
      %2505 = vmatpush.msra.mxu0 0.0
      %2506 = vmatpush.msra.mxu0 0.0
      %2507 = vmatpush.msra.mxu0 0.0
      %2508 = vmatpush.msra.mxu0 0.0
      %2509 = vmatpush.msra.mxu0 0.0
      %2510 = vmatpush.msra.mxu0 0.0
      %2511 = vmatpush.msra.mxu0 0.0
      %2512 = vmatpush.msra.mxu0 0.0
      %2513 = vmatpush.msra.mxu0 0.0
      %2514 = vmatpush.msra.mxu0 0.0
      %2515 = vmatpush.msra.mxu0 0.0
      %2516 = vmatpush.msra.mxu0 0.0
      %2517 = vmatpush.msra.mxu0 0.0
      %2518 = vmatpush.msra.mxu0 0.0
      %2519 = vmatpush.msra.mxu0 0.0
      %v2520 = vand.u32 %v297, 4294901760
      %v2521 = vsub.f32 %v297, %v2520
      %v2522 = vand.u32 %v2521, 4294901760
      %2523 = vmatpush.msra.mxu0 %v2522
      %v2524 = vand.u32 %v490, 4294901760
      %2525 = vmatmul.f32.gmra.mxu0 %v2524
      %v2526 = vpop.f32.mrf.mxu0
      %v2527 = vadd.f32 %v2317, %v2526
      %v2528 = vand.u32 %v493, 4294901760
      %2529 = vmatmul.f32.gmra.mxu0 %v2528
      %v2530 = vpop.f32.mrf.mxu0
      %v2531 = vadd.f32 %v2323, %v2530
      %v2532 = vand.u32 %v496, 4294901760
      %2533 = vmatmul.f32.gmra.mxu0 %v2532
      %v2534 = vpop.f32.mrf.mxu0
      %v2535 = vadd.f32 %v2329, %v2534
      %v2536 = vand.u32 %v499, 4294901760
      %2537 = vmatmul.f32.gmra.mxu0 %v2536
      %v2538 = vpop.f32.mrf.mxu0
      %v2539 = vadd.f32 %v2335, %v2538
      %v2540 = vand.u32 %v502, 4294901760
      %2541 = vmatmul.f32.gmra.mxu0 %v2540
      %v2542 = vpop.f32.mrf.mxu0
      %v2543 = vadd.f32 %v2341, %v2542
      %v2544 = vand.u32 %v505, 4294901760
      %2545 = vmatmul.f32.gmra.mxu0 %v2544
      %v2546 = vpop.f32.mrf.mxu0
      %v2547 = vadd.f32 %v2347, %v2546
      %v2548 = vand.u32 %v508, 4294901760
      %2549 = vmatmul.f32.gmra.mxu0 %v2548
      %v2550 = vpop.f32.mrf.mxu0
      %v2551 = vadd.f32 %v2353, %v2550
      %v2552 = vand.u32 %v511, 4294901760
      %2553 = vmatmul.f32.gmra.mxu0 %v2552
      %v2554 = vpop.f32.mrf.mxu0
      %v2555 = vadd.f32 %v2359, %v2554
      %v2556 = vand.u32 %v514, 4294901760
      %2557 = vmatmul.f32.gmra.mxu0 %v2556
      %v2558 = vpop.f32.mrf.mxu0
      %v2559 = vadd.f32 %v2365, %v2558
      %v2560 = vand.u32 %v517, 4294901760
      %2561 = vmatmul.f32.gmra.mxu0 %v2560
      %v2562 = vpop.f32.mrf.mxu0
      %v2563 = vadd.f32 %v2371, %v2562
      %v2564 = vand.u32 %v520, 4294901760
      %2565 = vmatmul.f32.gmra.mxu0 %v2564
      %v2566 = vpop.f32.mrf.mxu0
      %v2567 = vadd.f32 %v2377, %v2566
      %v2568 = vand.u32 %v523, 4294901760
      %2569 = vmatmul.f32.gmra.mxu0 %v2568
      %v2570 = vpop.f32.mrf.mxu0
      %v2571 = vadd.f32 %v2383, %v2570
      %v2572 = vand.u32 %v526, 4294901760
      %2573 = vmatmul.f32.gmra.mxu0 %v2572
      %v2574 = vpop.f32.mrf.mxu0
      %v2575 = vadd.f32 %v2389, %v2574
      %v2576 = vand.u32 %v529, 4294901760
      %2577 = vmatmul.f32.gmra.mxu0 %v2576
      %v2578 = vpop.f32.mrf.mxu0
      %v2579 = vadd.f32 %v2395, %v2578
      %v2580 = vand.u32 %v532, 4294901760
      %2581 = vmatmul.f32.gmra.mxu0 %v2580
      %v2582 = vpop.f32.mrf.mxu0
      %v2583 = vadd.f32 %v2401, %v2582
      %v2584 = vand.u32 %v535, 4294901760
      %2585 = vmatmul.f32.gmra.mxu0 %v2584
      %v2586 = vpop.f32.mrf.mxu0
      %v2587 = vadd.f32 %v2407, %v2586
      %v2588 = vand.u32 %v538, 4294901760
      %2589 = vmatmul.f32.gmra.mxu0 %v2588
      %v2590 = vpop.f32.mrf.mxu0
      %v2591 = vadd.f32 %v2413, %v2590
      %v2592 = vand.u32 %v541, 4294901760
      %2593 = vmatmul.f32.gmra.mxu0 %v2592
      %v2594 = vpop.f32.mrf.mxu0
      %v2595 = vadd.f32 %v2419, %v2594
      %v2596 = vand.u32 %v544, 4294901760
      %2597 = vmatmul.f32.gmra.mxu0 %v2596
      %v2598 = vpop.f32.mrf.mxu0
      %v2599 = vadd.f32 %v2425, %v2598
      %v2600 = vand.u32 %v547, 4294901760
      %2601 = vmatmul.f32.gmra.mxu0 %v2600
      %v2602 = vpop.f32.mrf.mxu0
      %v2603 = vadd.f32 %v2431, %v2602
      %v2604 = vand.u32 %v550, 4294901760
      %2605 = vmatmul.f32.gmra.mxu0 %v2604
      %v2606 = vpop.f32.mrf.mxu0
      %v2607 = vadd.f32 %v2437, %v2606
      %v2608 = vand.u32 %v553, 4294901760
      %2609 = vmatmul.f32.gmra.mxu0 %v2608
      %v2610 = vpop.f32.mrf.mxu0
      %v2611 = vadd.f32 %v2443, %v2610
      %v2612 = vand.u32 %v556, 4294901760
      %2613 = vmatmul.f32.gmra.mxu0 %v2612
      %v2614 = vpop.f32.mrf.mxu0
      %v2615 = vadd.f32 %v2449, %v2614
      %v2616 = vand.u32 %v559, 4294901760
      %2617 = vmatmul.f32.gmra.mxu0 %v2616
      %v2618 = vpop.f32.mrf.mxu0
      %v2619 = vadd.f32 %v2455, %v2618
      %v2620 = vand.u32 %v562, 4294901760
      %2621 = vmatmul.f32.gmra.mxu0 %v2620
      %v2622 = vpop.f32.mrf.mxu0
      %v2623 = vadd.f32 %v2461, %v2622
      %v2624 = vand.u32 %v565, 4294901760
      %2625 = vmatmul.f32.gmra.mxu0 %v2624
      %v2626 = vpop.f32.mrf.mxu0
      %v2627 = vadd.f32 %v2467, %v2626
      %v2628 = vand.u32 %v568, 4294901760
      %2629 = vmatmul.f32.gmra.mxu0 %v2628
      %v2630 = vpop.f32.mrf.mxu0
      %v2631 = vadd.f32 %v2473, %v2630
      %v2632 = vand.u32 %v571, 4294901760
      %2633 = vmatmul.f32.gmra.mxu0 %v2632
      %v2634 = vpop.f32.mrf.mxu0
      %v2635 = vadd.f32 %v2479, %v2634
      %v2636 = vand.u32 %v574, 4294901760
      %2637 = vmatmul.f32.gmra.mxu0 %v2636
      %v2638 = vpop.f32.mrf.mxu0
      %v2639 = vadd.f32 %v2485, %v2638
      %v2640 = vand.u32 %v577, 4294901760
      %2641 = vmatmul.f32.gmra.mxu0 %v2640
      %v2642 = vpop.f32.mrf.mxu0
      %v2643 = vadd.f32 %v2491, %v2642
      %v2644 = vand.u32 %v580, 4294901760
      %2645 = vmatmul.f32.gmra.mxu0 %v2644
      %v2646 = vpop.f32.mrf.mxu0
      %v2647 = vadd.f32 %v2497, %v2646
      %v2648 = vand.u32 %v583, 4294901760
      %2649 = vmatmul.f32.gmra.mxu0 %v2648
      %v2650 = vpop.f32.mrf.mxu0
      %v2651 = vadd.f32 %v2503, %v2650
      %2652 = vdwg.mxu0
      %2653 = vmatpush.msra.mxu0 0.0
      %2654 = vmatpush.msra.mxu0 0.0
      %2655 = vmatpush.msra.mxu0 0.0
      %2656 = vmatpush.msra.mxu0 0.0
      %2657 = vmatpush.msra.mxu0 0.0
      %2658 = vmatpush.msra.mxu0 0.0
      %2659 = vmatpush.msra.mxu0 0.0
      %2660 = vmatpush.msra.mxu0 0.0
      %2661 = vmatpush.msra.mxu0 0.0
      %2662 = vmatpush.msra.mxu0 0.0
      %2663 = vmatpush.msra.mxu0 0.0
      %2664 = vmatpush.msra.mxu0 0.0
      %2665 = vmatpush.msra.mxu0 0.0
      %2666 = vmatpush.msra.mxu0 0.0
      %2667 = vmatpush.msra.mxu0 0.0
      %v2668 = vand.u32 %v297, 4294901760
      %2669 = vmatpush.msra.mxu0 %v2668
      %v2670 = vand.u32 %v490, 4294901760
      %2671 = vmatmul.f32.gmra.mxu0 %v2670
      %v2672 = vpop.f32.mrf.mxu0
      %v2673 = vadd.f32 %v2527, %v2672
      %v2674 = vand.u32 %v493, 4294901760
      %2675 = vmatmul.f32.gmra.mxu0 %v2674
      %v2676 = vpop.f32.mrf.mxu0
      %v2677 = vadd.f32 %v2531, %v2676
      %v2678 = vand.u32 %v496, 4294901760
      %2679 = vmatmul.f32.gmra.mxu0 %v2678
      %v2680 = vpop.f32.mrf.mxu0
      %v2681 = vadd.f32 %v2535, %v2680
      %v2682 = vand.u32 %v499, 4294901760
      %2683 = vmatmul.f32.gmra.mxu0 %v2682
      %v2684 = vpop.f32.mrf.mxu0
      %v2685 = vadd.f32 %v2539, %v2684
      %v2686 = vand.u32 %v502, 4294901760
      %2687 = vmatmul.f32.gmra.mxu0 %v2686
      %v2688 = vpop.f32.mrf.mxu0
      %v2689 = vadd.f32 %v2543, %v2688
      %v2690 = vand.u32 %v505, 4294901760
      %2691 = vmatmul.f32.gmra.mxu0 %v2690
      %v2692 = vpop.f32.mrf.mxu0
      %v2693 = vadd.f32 %v2547, %v2692
      %v2694 = vand.u32 %v508, 4294901760
      %2695 = vmatmul.f32.gmra.mxu0 %v2694
      %v2696 = vpop.f32.mrf.mxu0
      %v2697 = vadd.f32 %v2551, %v2696
      %v2698 = vand.u32 %v511, 4294901760
      %2699 = vmatmul.f32.gmra.mxu0 %v2698
      %v2700 = vpop.f32.mrf.mxu0
      %v2701 = vadd.f32 %v2555, %v2700
      %v2702 = vand.u32 %v514, 4294901760
      %2703 = vmatmul.f32.gmra.mxu0 %v2702
      %v2704 = vpop.f32.mrf.mxu0
      %v2705 = vadd.f32 %v2559, %v2704
      %v2706 = vand.u32 %v517, 4294901760
      %2707 = vmatmul.f32.gmra.mxu0 %v2706
      %v2708 = vpop.f32.mrf.mxu0
      %v2709 = vadd.f32 %v2563, %v2708
      %v2710 = vand.u32 %v520, 4294901760
      %2711 = vmatmul.f32.gmra.mxu0 %v2710
      %v2712 = vpop.f32.mrf.mxu0
      %v2713 = vadd.f32 %v2567, %v2712
      %v2714 = vand.u32 %v523, 4294901760
      %2715 = vmatmul.f32.gmra.mxu0 %v2714
      %v2716 = vpop.f32.mrf.mxu0
      %v2717 = vadd.f32 %v2571, %v2716
      %v2718 = vand.u32 %v526, 4294901760
      %2719 = vmatmul.f32.gmra.mxu0 %v2718
      %v2720 = vpop.f32.mrf.mxu0
      %v2721 = vadd.f32 %v2575, %v2720
      %v2722 = vand.u32 %v529, 4294901760
      %2723 = vmatmul.f32.gmra.mxu0 %v2722
      %v2724 = vpop.f32.mrf.mxu0
      %v2725 = vadd.f32 %v2579, %v2724
      %v2726 = vand.u32 %v532, 4294901760
      %2727 = vmatmul.f32.gmra.mxu0 %v2726
      %v2728 = vpop.f32.mrf.mxu0
      %v2729 = vadd.f32 %v2583, %v2728
      %v2730 = vand.u32 %v535, 4294901760
      %2731 = vmatmul.f32.gmra.mxu0 %v2730
      %v2732 = vpop.f32.mrf.mxu0
      %v2733 = vadd.f32 %v2587, %v2732
      %v2734 = vand.u32 %v538, 4294901760
      %2735 = vmatmul.f32.gmra.mxu0 %v2734
      %v2736 = vpop.f32.mrf.mxu0
      %v2737 = vadd.f32 %v2591, %v2736
      %v2738 = vand.u32 %v541, 4294901760
      %2739 = vmatmul.f32.gmra.mxu0 %v2738
      %v2740 = vpop.f32.mrf.mxu0
      %v2741 = vadd.f32 %v2595, %v2740
      %v2742 = vand.u32 %v544, 4294901760
      %2743 = vmatmul.f32.gmra.mxu0 %v2742
      %v2744 = vpop.f32.mrf.mxu0
      %v2745 = vadd.f32 %v2599, %v2744
      %v2746 = vand.u32 %v547, 4294901760
      %2747 = vmatmul.f32.gmra.mxu0 %v2746
      %v2748 = vpop.f32.mrf.mxu0
      %v2749 = vadd.f32 %v2603, %v2748
      %v2750 = vand.u32 %v550, 4294901760
      %2751 = vmatmul.f32.gmra.mxu0 %v2750
      %v2752 = vpop.f32.mrf.mxu0
      %v2753 = vadd.f32 %v2607, %v2752
      %v2754 = vand.u32 %v553, 4294901760
      %2755 = vmatmul.f32.gmra.mxu0 %v2754
      %v2756 = vpop.f32.mrf.mxu0
      %v2757 = vadd.f32 %v2611, %v2756
      %v2758 = vand.u32 %v556, 4294901760
      %2759 = vmatmul.f32.gmra.mxu0 %v2758
      %v2760 = vpop.f32.mrf.mxu0
      %v2761 = vadd.f32 %v2615, %v2760
      %v2762 = vand.u32 %v559, 4294901760
      %2763 = vmatmul.f32.gmra.mxu0 %v2762
      %v2764 = vpop.f32.mrf.mxu0
      %v2765 = vadd.f32 %v2619, %v2764
      %v2766 = vand.u32 %v562, 4294901760
      %2767 = vmatmul.f32.gmra.mxu0 %v2766
      %v2768 = vpop.f32.mrf.mxu0
      %v2769 = vadd.f32 %v2623, %v2768
      %v2770 = vand.u32 %v565, 4294901760
      %2771 = vmatmul.f32.gmra.mxu0 %v2770
      %v2772 = vpop.f32.mrf.mxu0
      %v2773 = vadd.f32 %v2627, %v2772
      %v2774 = vand.u32 %v568, 4294901760
      %2775 = vmatmul.f32.gmra.mxu0 %v2774
      %v2776 = vpop.f32.mrf.mxu0
      %v2777 = vadd.f32 %v2631, %v2776
      %v2778 = vand.u32 %v571, 4294901760
      %2779 = vmatmul.f32.gmra.mxu0 %v2778
      %v2780 = vpop.f32.mrf.mxu0
      %v2781 = vadd.f32 %v2635, %v2780
      %v2782 = vand.u32 %v574, 4294901760
      %2783 = vmatmul.f32.gmra.mxu0 %v2782
      %v2784 = vpop.f32.mrf.mxu0
      %v2785 = vadd.f32 %v2639, %v2784
      %v2786 = vand.u32 %v577, 4294901760
      %2787 = vmatmul.f32.gmra.mxu0 %v2786
      %v2788 = vpop.f32.mrf.mxu0
      %v2789 = vadd.f32 %v2643, %v2788
      %v2790 = vand.u32 %v580, 4294901760
      %2791 = vmatmul.f32.gmra.mxu0 %v2790
      %v2792 = vpop.f32.mrf.mxu0
      %v2793 = vadd.f32 %v2647, %v2792
      %v2794 = vand.u32 %v583, 4294901760
      %2795 = vmatmul.f32.gmra.mxu0 %v2794
      %v2796 = vpop.f32.mrf.mxu0
      %v2797 = vadd.f32 %v2651, %v2796
      %2798 = vdwg.mxu0
      %2799 = vmatpush.msra.mxu0 0.0
      %2800 = vmatpush.msra.mxu0 0.0
      %2801 = vmatpush.msra.mxu0 0.0
      %2802 = vmatpush.msra.mxu0 0.0
      %2803 = vmatpush.msra.mxu0 0.0
      %2804 = vmatpush.msra.mxu0 0.0
      %2805 = vmatpush.msra.mxu0 0.0
      %2806 = vmatpush.msra.mxu0 0.0
      %2807 = vmatpush.msra.mxu0 0.0
      %2808 = vmatpush.msra.mxu0 0.0
      %2809 = vmatpush.msra.mxu0 0.0
      %2810 = vmatpush.msra.mxu0 0.0
      %2811 = vmatpush.msra.mxu0 0.0
      %2812 = vmatpush.msra.mxu0 0.0
      %2813 = vmatpush.msra.mxu0 0.0
      %v2814 = vand.u32 %v298, 4294901760
      %2815 = vmatpush.msra.mxu0 %v2814
      %v2816 = vand.u32 %v490, 4294901760
      %v2817 = vsub.f32 %v490, %v2816
      %v2818 = vand.u32 %v2817, 4294901760
      %v2819 = vsub.f32 %v2817, %v2818
      %v2820 = vand.u32 %v2819, 4294901760
      %2821 = vmatmul.f32.gmra.mxu0 %v2820
      %v2822 = vpop.f32.mrf.mxu0
      %v2823 = vadd.f32 %v335, %v2822
      %v2824 = vand.u32 %v493, 4294901760
      %v2825 = vsub.f32 %v493, %v2824
      %v2826 = vand.u32 %v2825, 4294901760
      %v2827 = vsub.f32 %v2825, %v2826
      %v2828 = vand.u32 %v2827, 4294901760
      %2829 = vmatmul.f32.gmra.mxu0 %v2828
      %v2830 = vpop.f32.mrf.mxu0
      %v2831 = vadd.f32 %v338, %v2830
      %v2832 = vand.u32 %v496, 4294901760
      %v2833 = vsub.f32 %v496, %v2832
      %v2834 = vand.u32 %v2833, 4294901760
      %v2835 = vsub.f32 %v2833, %v2834
      %v2836 = vand.u32 %v2835, 4294901760
      %2837 = vmatmul.f32.gmra.mxu0 %v2836
      %v2838 = vpop.f32.mrf.mxu0
      %v2839 = vadd.f32 %v341, %v2838
      %v2840 = vand.u32 %v499, 4294901760
      %v2841 = vsub.f32 %v499, %v2840
      %v2842 = vand.u32 %v2841, 4294901760
      %v2843 = vsub.f32 %v2841, %v2842
      %v2844 = vand.u32 %v2843, 4294901760
      %2845 = vmatmul.f32.gmra.mxu0 %v2844
      %v2846 = vpop.f32.mrf.mxu0
      %v2847 = vadd.f32 %v344, %v2846
      %v2848 = vand.u32 %v502, 4294901760
      %v2849 = vsub.f32 %v502, %v2848
      %v2850 = vand.u32 %v2849, 4294901760
      %v2851 = vsub.f32 %v2849, %v2850
      %v2852 = vand.u32 %v2851, 4294901760
      %2853 = vmatmul.f32.gmra.mxu0 %v2852
      %v2854 = vpop.f32.mrf.mxu0
      %v2855 = vadd.f32 %v347, %v2854
      %v2856 = vand.u32 %v505, 4294901760
      %v2857 = vsub.f32 %v505, %v2856
      %v2858 = vand.u32 %v2857, 4294901760
      %v2859 = vsub.f32 %v2857, %v2858
      %v2860 = vand.u32 %v2859, 4294901760
      %2861 = vmatmul.f32.gmra.mxu0 %v2860
      %v2862 = vpop.f32.mrf.mxu0
      %v2863 = vadd.f32 %v350, %v2862
      %v2864 = vand.u32 %v508, 4294901760
      %v2865 = vsub.f32 %v508, %v2864
      %v2866 = vand.u32 %v2865, 4294901760
      %v2867 = vsub.f32 %v2865, %v2866
      %v2868 = vand.u32 %v2867, 4294901760
      %2869 = vmatmul.f32.gmra.mxu0 %v2868
      %v2870 = vpop.f32.mrf.mxu0
      %v2871 = vadd.f32 %v353, %v2870
      %v2872 = vand.u32 %v511, 4294901760
      %v2873 = vsub.f32 %v511, %v2872
      %v2874 = vand.u32 %v2873, 4294901760
      %v2875 = vsub.f32 %v2873, %v2874
      %v2876 = vand.u32 %v2875, 4294901760
      %2877 = vmatmul.f32.gmra.mxu0 %v2876
      %v2878 = vpop.f32.mrf.mxu0
      %v2879 = vadd.f32 %v356, %v2878
      %v2880 = vand.u32 %v514, 4294901760
      %v2881 = vsub.f32 %v514, %v2880
      %v2882 = vand.u32 %v2881, 4294901760
      %v2883 = vsub.f32 %v2881, %v2882
      %v2884 = vand.u32 %v2883, 4294901760
      %2885 = vmatmul.f32.gmra.mxu0 %v2884
      %v2886 = vpop.f32.mrf.mxu0
      %v2887 = vadd.f32 %v359, %v2886
      %v2888 = vand.u32 %v517, 4294901760
      %v2889 = vsub.f32 %v517, %v2888
      %v2890 = vand.u32 %v2889, 4294901760
      %v2891 = vsub.f32 %v2889, %v2890
      %v2892 = vand.u32 %v2891, 4294901760
      %2893 = vmatmul.f32.gmra.mxu0 %v2892
      %v2894 = vpop.f32.mrf.mxu0
      %v2895 = vadd.f32 %v362, %v2894
      %v2896 = vand.u32 %v520, 4294901760
      %v2897 = vsub.f32 %v520, %v2896
      %v2898 = vand.u32 %v2897, 4294901760
      %v2899 = vsub.f32 %v2897, %v2898
      %v2900 = vand.u32 %v2899, 4294901760
      %2901 = vmatmul.f32.gmra.mxu0 %v2900
      %v2902 = vpop.f32.mrf.mxu0
      %v2903 = vadd.f32 %v365, %v2902
      %v2904 = vand.u32 %v523, 4294901760
      %v2905 = vsub.f32 %v523, %v2904
      %v2906 = vand.u32 %v2905, 4294901760
      %v2907 = vsub.f32 %v2905, %v2906
      %v2908 = vand.u32 %v2907, 4294901760
      %2909 = vmatmul.f32.gmra.mxu0 %v2908
      %v2910 = vpop.f32.mrf.mxu0
      %v2911 = vadd.f32 %v368, %v2910
      %v2912 = vand.u32 %v526, 4294901760
      %v2913 = vsub.f32 %v526, %v2912
      %v2914 = vand.u32 %v2913, 4294901760
      %v2915 = vsub.f32 %v2913, %v2914
      %v2916 = vand.u32 %v2915, 4294901760
      %2917 = vmatmul.f32.gmra.mxu0 %v2916
      %v2918 = vpop.f32.mrf.mxu0
      %v2919 = vadd.f32 %v371, %v2918
      %v2920 = vand.u32 %v529, 4294901760
      %v2921 = vsub.f32 %v529, %v2920
      %v2922 = vand.u32 %v2921, 4294901760
      %v2923 = vsub.f32 %v2921, %v2922
      %v2924 = vand.u32 %v2923, 4294901760
      %2925 = vmatmul.f32.gmra.mxu0 %v2924
      %v2926 = vpop.f32.mrf.mxu0
      %v2927 = vadd.f32 %v374, %v2926
      %v2928 = vand.u32 %v532, 4294901760
      %v2929 = vsub.f32 %v532, %v2928
      %v2930 = vand.u32 %v2929, 4294901760
      %v2931 = vsub.f32 %v2929, %v2930
      %v2932 = vand.u32 %v2931, 4294901760
      %2933 = vmatmul.f32.gmra.mxu0 %v2932
      %v2934 = vpop.f32.mrf.mxu0
      %v2935 = vadd.f32 %v377, %v2934
      %v2936 = vand.u32 %v535, 4294901760
      %v2937 = vsub.f32 %v535, %v2936
      %v2938 = vand.u32 %v2937, 4294901760
      %v2939 = vsub.f32 %v2937, %v2938
      %v2940 = vand.u32 %v2939, 4294901760
      %2941 = vmatmul.f32.gmra.mxu0 %v2940
      %v2942 = vpop.f32.mrf.mxu0
      %v2943 = vadd.f32 %v380, %v2942
      %v2944 = vand.u32 %v538, 4294901760
      %v2945 = vsub.f32 %v538, %v2944
      %v2946 = vand.u32 %v2945, 4294901760
      %v2947 = vsub.f32 %v2945, %v2946
      %v2948 = vand.u32 %v2947, 4294901760
      %2949 = vmatmul.f32.gmra.mxu0 %v2948
      %v2950 = vpop.f32.mrf.mxu0
      %v2951 = vadd.f32 %v383, %v2950
      %v2952 = vand.u32 %v541, 4294901760
      %v2953 = vsub.f32 %v541, %v2952
      %v2954 = vand.u32 %v2953, 4294901760
      %v2955 = vsub.f32 %v2953, %v2954
      %v2956 = vand.u32 %v2955, 4294901760
      %2957 = vmatmul.f32.gmra.mxu0 %v2956
      %v2958 = vpop.f32.mrf.mxu0
      %v2959 = vadd.f32 %v386, %v2958
      %v2960 = vand.u32 %v544, 4294901760
      %v2961 = vsub.f32 %v544, %v2960
      %v2962 = vand.u32 %v2961, 4294901760
      %v2963 = vsub.f32 %v2961, %v2962
      %v2964 = vand.u32 %v2963, 4294901760
      %2965 = vmatmul.f32.gmra.mxu0 %v2964
      %v2966 = vpop.f32.mrf.mxu0
      %v2967 = vadd.f32 %v389, %v2966
      %v2968 = vand.u32 %v547, 4294901760
      %v2969 = vsub.f32 %v547, %v2968
      %v2970 = vand.u32 %v2969, 4294901760
      %v2971 = vsub.f32 %v2969, %v2970
      %v2972 = vand.u32 %v2971, 4294901760
      %2973 = vmatmul.f32.gmra.mxu0 %v2972
      %v2974 = vpop.f32.mrf.mxu0
      %v2975 = vadd.f32 %v392, %v2974
      %v2976 = vand.u32 %v550, 4294901760
      %v2977 = vsub.f32 %v550, %v2976
      %v2978 = vand.u32 %v2977, 4294901760
      %v2979 = vsub.f32 %v2977, %v2978
      %v2980 = vand.u32 %v2979, 4294901760
      %2981 = vmatmul.f32.gmra.mxu0 %v2980
      %v2982 = vpop.f32.mrf.mxu0
      %v2983 = vadd.f32 %v395, %v2982
      %v2984 = vand.u32 %v553, 4294901760
      %v2985 = vsub.f32 %v553, %v2984
      %v2986 = vand.u32 %v2985, 4294901760
      %v2987 = vsub.f32 %v2985, %v2986
      %v2988 = vand.u32 %v2987, 4294901760
      %2989 = vmatmul.f32.gmra.mxu0 %v2988
      %v2990 = vpop.f32.mrf.mxu0
      %v2991 = vadd.f32 %v398, %v2990
      %v2992 = vand.u32 %v556, 4294901760
      %v2993 = vsub.f32 %v556, %v2992
      %v2994 = vand.u32 %v2993, 4294901760
      %v2995 = vsub.f32 %v2993, %v2994
      %v2996 = vand.u32 %v2995, 4294901760
      %2997 = vmatmul.f32.gmra.mxu0 %v2996
      %v2998 = vpop.f32.mrf.mxu0
      %v2999 = vadd.f32 %v401, %v2998
      %v3000 = vand.u32 %v559, 4294901760
      %v3001 = vsub.f32 %v559, %v3000
      %v3002 = vand.u32 %v3001, 4294901760
      %v3003 = vsub.f32 %v3001, %v3002
      %v3004 = vand.u32 %v3003, 4294901760
      %3005 = vmatmul.f32.gmra.mxu0 %v3004
      %v3006 = vpop.f32.mrf.mxu0
      %v3007 = vadd.f32 %v404, %v3006
      %v3008 = vand.u32 %v562, 4294901760
      %v3009 = vsub.f32 %v562, %v3008
      %v3010 = vand.u32 %v3009, 4294901760
      %v3011 = vsub.f32 %v3009, %v3010
      %v3012 = vand.u32 %v3011, 4294901760
      %3013 = vmatmul.f32.gmra.mxu0 %v3012
      %v3014 = vpop.f32.mrf.mxu0
      %v3015 = vadd.f32 %v407, %v3014
      %v3016 = vand.u32 %v565, 4294901760
      %v3017 = vsub.f32 %v565, %v3016
      %v3018 = vand.u32 %v3017, 4294901760
      %v3019 = vsub.f32 %v3017, %v3018
      %v3020 = vand.u32 %v3019, 4294901760
      %3021 = vmatmul.f32.gmra.mxu0 %v3020
      %v3022 = vpop.f32.mrf.mxu0
      %v3023 = vadd.f32 %v410, %v3022
      %v3024 = vand.u32 %v568, 4294901760
      %v3025 = vsub.f32 %v568, %v3024
      %v3026 = vand.u32 %v3025, 4294901760
      %v3027 = vsub.f32 %v3025, %v3026
      %v3028 = vand.u32 %v3027, 4294901760
      %3029 = vmatmul.f32.gmra.mxu0 %v3028
      %v3030 = vpop.f32.mrf.mxu0
      %v3031 = vadd.f32 %v413, %v3030
      %v3032 = vand.u32 %v571, 4294901760
      %v3033 = vsub.f32 %v571, %v3032
      %v3034 = vand.u32 %v3033, 4294901760
      %v3035 = vsub.f32 %v3033, %v3034
      %v3036 = vand.u32 %v3035, 4294901760
      %3037 = vmatmul.f32.gmra.mxu0 %v3036
      %v3038 = vpop.f32.mrf.mxu0
      %v3039 = vadd.f32 %v416, %v3038
      %v3040 = vand.u32 %v574, 4294901760
      %v3041 = vsub.f32 %v574, %v3040
      %v3042 = vand.u32 %v3041, 4294901760
      %v3043 = vsub.f32 %v3041, %v3042
      %v3044 = vand.u32 %v3043, 4294901760
      %3045 = vmatmul.f32.gmra.mxu0 %v3044
      %v3046 = vpop.f32.mrf.mxu0
      %v3047 = vadd.f32 %v419, %v3046
      %v3048 = vand.u32 %v577, 4294901760
      %v3049 = vsub.f32 %v577, %v3048
      %v3050 = vand.u32 %v3049, 4294901760
      %v3051 = vsub.f32 %v3049, %v3050
      %v3052 = vand.u32 %v3051, 4294901760
      %3053 = vmatmul.f32.gmra.mxu0 %v3052
      %v3054 = vpop.f32.mrf.mxu0
      %v3055 = vadd.f32 %v422, %v3054
      %v3056 = vand.u32 %v580, 4294901760
      %v3057 = vsub.f32 %v580, %v3056
      %v3058 = vand.u32 %v3057, 4294901760
      %v3059 = vsub.f32 %v3057, %v3058
      %v3060 = vand.u32 %v3059, 4294901760
      %3061 = vmatmul.f32.gmra.mxu0 %v3060
      %v3062 = vpop.f32.mrf.mxu0
      %v3063 = vadd.f32 %v425, %v3062
      %v3064 = vand.u32 %v583, 4294901760
      %v3065 = vsub.f32 %v583, %v3064
      %v3066 = vand.u32 %v3065, 4294901760
      %v3067 = vsub.f32 %v3065, %v3066
      %v3068 = vand.u32 %v3067, 4294901760
      %3069 = vmatmul.f32.gmra.mxu0 %v3068
      %v3070 = vpop.f32.mrf.mxu0
      %v3071 = vadd.f32 %v428, %v3070
      %3072 = vdwg.mxu0
      %3073 = vmatpush.msra.mxu0 0.0
      %3074 = vmatpush.msra.mxu0 0.0
      %3075 = vmatpush.msra.mxu0 0.0
      %3076 = vmatpush.msra.mxu0 0.0
      %3077 = vmatpush.msra.mxu0 0.0
      %3078 = vmatpush.msra.mxu0 0.0
      %3079 = vmatpush.msra.mxu0 0.0
      %3080 = vmatpush.msra.mxu0 0.0
      %3081 = vmatpush.msra.mxu0 0.0
      %3082 = vmatpush.msra.mxu0 0.0
      %3083 = vmatpush.msra.mxu0 0.0
      %3084 = vmatpush.msra.mxu0 0.0
      %3085 = vmatpush.msra.mxu0 0.0
      %3086 = vmatpush.msra.mxu0 0.0
      %3087 = vmatpush.msra.mxu0 0.0
      %v3088 = vand.u32 %v298, 4294901760
      %v3089 = vsub.f32 %v298, %v3088
      %v3090 = vand.u32 %v3089, 4294901760
      %v3091 = vsub.f32 %v3089, %v3090
      %v3092 = vand.u32 %v3091, 4294901760
      %3093 = vmatpush.msra.mxu0 %v3092
      %v3094 = vand.u32 %v490, 4294901760
      %3095 = vmatmul.f32.gmra.mxu0 %v3094
      %v3096 = vpop.f32.mrf.mxu0
      %v3097 = vadd.f32 %v2823, %v3096
      %v3098 = vand.u32 %v493, 4294901760
      %3099 = vmatmul.f32.gmra.mxu0 %v3098
      %v3100 = vpop.f32.mrf.mxu0
      %v3101 = vadd.f32 %v2831, %v3100
      %v3102 = vand.u32 %v496, 4294901760
      %3103 = vmatmul.f32.gmra.mxu0 %v3102
      %v3104 = vpop.f32.mrf.mxu0
      %v3105 = vadd.f32 %v2839, %v3104
      %v3106 = vand.u32 %v499, 4294901760
      %3107 = vmatmul.f32.gmra.mxu0 %v3106
      %v3108 = vpop.f32.mrf.mxu0
      %v3109 = vadd.f32 %v2847, %v3108
      %v3110 = vand.u32 %v502, 4294901760
      %3111 = vmatmul.f32.gmra.mxu0 %v3110
      %v3112 = vpop.f32.mrf.mxu0
      %v3113 = vadd.f32 %v2855, %v3112
      %v3114 = vand.u32 %v505, 4294901760
      %3115 = vmatmul.f32.gmra.mxu0 %v3114
      %v3116 = vpop.f32.mrf.mxu0
      %v3117 = vadd.f32 %v2863, %v3116
      %v3118 = vand.u32 %v508, 4294901760
      %3119 = vmatmul.f32.gmra.mxu0 %v3118
      %v3120 = vpop.f32.mrf.mxu0
      %v3121 = vadd.f32 %v2871, %v3120
      %v3122 = vand.u32 %v511, 4294901760
      %3123 = vmatmul.f32.gmra.mxu0 %v3122
      %v3124 = vpop.f32.mrf.mxu0
      %v3125 = vadd.f32 %v2879, %v3124
      %v3126 = vand.u32 %v514, 4294901760
      %3127 = vmatmul.f32.gmra.mxu0 %v3126
      %v3128 = vpop.f32.mrf.mxu0
      %v3129 = vadd.f32 %v2887, %v3128
      %v3130 = vand.u32 %v517, 4294901760
      %3131 = vmatmul.f32.gmra.mxu0 %v3130
      %v3132 = vpop.f32.mrf.mxu0
      %v3133 = vadd.f32 %v2895, %v3132
      %v3134 = vand.u32 %v520, 4294901760
      %3135 = vmatmul.f32.gmra.mxu0 %v3134
      %v3136 = vpop.f32.mrf.mxu0
      %v3137 = vadd.f32 %v2903, %v3136
      %v3138 = vand.u32 %v523, 4294901760
      %3139 = vmatmul.f32.gmra.mxu0 %v3138
      %v3140 = vpop.f32.mrf.mxu0
      %v3141 = vadd.f32 %v2911, %v3140
      %v3142 = vand.u32 %v526, 4294901760
      %3143 = vmatmul.f32.gmra.mxu0 %v3142
      %v3144 = vpop.f32.mrf.mxu0
      %v3145 = vadd.f32 %v2919, %v3144
      %v3146 = vand.u32 %v529, 4294901760
      %3147 = vmatmul.f32.gmra.mxu0 %v3146
      %v3148 = vpop.f32.mrf.mxu0
      %v3149 = vadd.f32 %v2927, %v3148
      %v3150 = vand.u32 %v532, 4294901760
      %3151 = vmatmul.f32.gmra.mxu0 %v3150
      %v3152 = vpop.f32.mrf.mxu0
      %v3153 = vadd.f32 %v2935, %v3152
      %v3154 = vand.u32 %v535, 4294901760
      %3155 = vmatmul.f32.gmra.mxu0 %v3154
      %v3156 = vpop.f32.mrf.mxu0
      %v3157 = vadd.f32 %v2943, %v3156
      %v3158 = vand.u32 %v538, 4294901760
      %3159 = vmatmul.f32.gmra.mxu0 %v3158
      %v3160 = vpop.f32.mrf.mxu0
      %v3161 = vadd.f32 %v2951, %v3160
      %v3162 = vand.u32 %v541, 4294901760
      %3163 = vmatmul.f32.gmra.mxu0 %v3162
      %v3164 = vpop.f32.mrf.mxu0
      %v3165 = vadd.f32 %v2959, %v3164
      %v3166 = vand.u32 %v544, 4294901760
      %3167 = vmatmul.f32.gmra.mxu0 %v3166
      %v3168 = vpop.f32.mrf.mxu0
      %v3169 = vadd.f32 %v2967, %v3168
      %v3170 = vand.u32 %v547, 4294901760
      %3171 = vmatmul.f32.gmra.mxu0 %v3170
      %v3172 = vpop.f32.mrf.mxu0
      %v3173 = vadd.f32 %v2975, %v3172
      %v3174 = vand.u32 %v550, 4294901760
      %3175 = vmatmul.f32.gmra.mxu0 %v3174
      %v3176 = vpop.f32.mrf.mxu0
      %v3177 = vadd.f32 %v2983, %v3176
      %v3178 = vand.u32 %v553, 4294901760
      %3179 = vmatmul.f32.gmra.mxu0 %v3178
      %v3180 = vpop.f32.mrf.mxu0
      %v3181 = vadd.f32 %v2991, %v3180
      %v3182 = vand.u32 %v556, 4294901760
      %3183 = vmatmul.f32.gmra.mxu0 %v3182
      %v3184 = vpop.f32.mrf.mxu0
      %v3185 = vadd.f32 %v2999, %v3184
      %v3186 = vand.u32 %v559, 4294901760
      %3187 = vmatmul.f32.gmra.mxu0 %v3186
      %v3188 = vpop.f32.mrf.mxu0
      %v3189 = vadd.f32 %v3007, %v3188
      %v3190 = vand.u32 %v562, 4294901760
      %3191 = vmatmul.f32.gmra.mxu0 %v3190
      %v3192 = vpop.f32.mrf.mxu0
      %v3193 = vadd.f32 %v3015, %v3192
      %v3194 = vand.u32 %v565, 4294901760
      %3195 = vmatmul.f32.gmra.mxu0 %v3194
      %v3196 = vpop.f32.mrf.mxu0
      %v3197 = vadd.f32 %v3023, %v3196
      %v3198 = vand.u32 %v568, 4294901760
      %3199 = vmatmul.f32.gmra.mxu0 %v3198
      %v3200 = vpop.f32.mrf.mxu0
      %v3201 = vadd.f32 %v3031, %v3200
      %v3202 = vand.u32 %v571, 4294901760
      %3203 = vmatmul.f32.gmra.mxu0 %v3202
      %v3204 = vpop.f32.mrf.mxu0
      %v3205 = vadd.f32 %v3039, %v3204
      %v3206 = vand.u32 %v574, 4294901760
      %3207 = vmatmul.f32.gmra.mxu0 %v3206
      %v3208 = vpop.f32.mrf.mxu0
      %v3209 = vadd.f32 %v3047, %v3208
      %v3210 = vand.u32 %v577, 4294901760
      %3211 = vmatmul.f32.gmra.mxu0 %v3210
      %v3212 = vpop.f32.mrf.mxu0
      %v3213 = vadd.f32 %v3055, %v3212
      %v3214 = vand.u32 %v580, 4294901760
      %3215 = vmatmul.f32.gmra.mxu0 %v3214
      %v3216 = vpop.f32.mrf.mxu0
      %v3217 = vadd.f32 %v3063, %v3216
      %v3218 = vand.u32 %v583, 4294901760
      %3219 = vmatmul.f32.gmra.mxu0 %v3218
      %v3220 = vpop.f32.mrf.mxu0
      %v3221 = vadd.f32 %v3071, %v3220
      %3222 = vdwg.mxu0
      %3223 = vmatpush.msra.mxu0 0.0
      %3224 = vmatpush.msra.mxu0 0.0
      %3225 = vmatpush.msra.mxu0 0.0
      %3226 = vmatpush.msra.mxu0 0.0
      %3227 = vmatpush.msra.mxu0 0.0
      %3228 = vmatpush.msra.mxu0 0.0
      %3229 = vmatpush.msra.mxu0 0.0
      %3230 = vmatpush.msra.mxu0 0.0
      %3231 = vmatpush.msra.mxu0 0.0
      %3232 = vmatpush.msra.mxu0 0.0
      %3233 = vmatpush.msra.mxu0 0.0
      %3234 = vmatpush.msra.mxu0 0.0
      %3235 = vmatpush.msra.mxu0 0.0
      %3236 = vmatpush.msra.mxu0 0.0
      %3237 = vmatpush.msra.mxu0 0.0
      %v3238 = vand.u32 %v298, 4294901760
      %v3239 = vsub.f32 %v298, %v3238
      %3240 = vmatpush.msra.mxu0 %v3239
      %v3241 = vand.u32 %v490, 4294901760
      %v3242 = vsub.f32 %v490, %v3241
      %3243 = vmatmul.f32.gmra.mxu0 %v3242
      %v3244 = vpop.f32.mrf.mxu0
      %v3245 = vadd.f32 %v3097, %v3244
      %v3246 = vand.u32 %v493, 4294901760
      %v3247 = vsub.f32 %v493, %v3246
      %3248 = vmatmul.f32.gmra.mxu0 %v3247
      %v3249 = vpop.f32.mrf.mxu0
      %v3250 = vadd.f32 %v3101, %v3249
      %v3251 = vand.u32 %v496, 4294901760
      %v3252 = vsub.f32 %v496, %v3251
      %3253 = vmatmul.f32.gmra.mxu0 %v3252
      %v3254 = vpop.f32.mrf.mxu0
      %v3255 = vadd.f32 %v3105, %v3254
      %v3256 = vand.u32 %v499, 4294901760
      %v3257 = vsub.f32 %v499, %v3256
      %3258 = vmatmul.f32.gmra.mxu0 %v3257
      %v3259 = vpop.f32.mrf.mxu0
      %v3260 = vadd.f32 %v3109, %v3259
      %v3261 = vand.u32 %v502, 4294901760
      %v3262 = vsub.f32 %v502, %v3261
      %3263 = vmatmul.f32.gmra.mxu0 %v3262
      %v3264 = vpop.f32.mrf.mxu0
      %v3265 = vadd.f32 %v3113, %v3264
      %v3266 = vand.u32 %v505, 4294901760
      %v3267 = vsub.f32 %v505, %v3266
      %3268 = vmatmul.f32.gmra.mxu0 %v3267
      %v3269 = vpop.f32.mrf.mxu0
      %v3270 = vadd.f32 %v3117, %v3269
      %v3271 = vand.u32 %v508, 4294901760
      %v3272 = vsub.f32 %v508, %v3271
      %3273 = vmatmul.f32.gmra.mxu0 %v3272
      %v3274 = vpop.f32.mrf.mxu0
      %v3275 = vadd.f32 %v3121, %v3274
      %v3276 = vand.u32 %v511, 4294901760
      %v3277 = vsub.f32 %v511, %v3276
      %3278 = vmatmul.f32.gmra.mxu0 %v3277
      %v3279 = vpop.f32.mrf.mxu0
      %v3280 = vadd.f32 %v3125, %v3279
      %v3281 = vand.u32 %v514, 4294901760
      %v3282 = vsub.f32 %v514, %v3281
      %3283 = vmatmul.f32.gmra.mxu0 %v3282
      %v3284 = vpop.f32.mrf.mxu0
      %v3285 = vadd.f32 %v3129, %v3284
      %v3286 = vand.u32 %v517, 4294901760
      %v3287 = vsub.f32 %v517, %v3286
      %3288 = vmatmul.f32.gmra.mxu0 %v3287
      %v3289 = vpop.f32.mrf.mxu0
      %v3290 = vadd.f32 %v3133, %v3289
      %v3291 = vand.u32 %v520, 4294901760
      %v3292 = vsub.f32 %v520, %v3291
      %3293 = vmatmul.f32.gmra.mxu0 %v3292
      %v3294 = vpop.f32.mrf.mxu0
      %v3295 = vadd.f32 %v3137, %v3294
      %v3296 = vand.u32 %v523, 4294901760
      %v3297 = vsub.f32 %v523, %v3296
      %3298 = vmatmul.f32.gmra.mxu0 %v3297
      %v3299 = vpop.f32.mrf.mxu0
      %v3300 = vadd.f32 %v3141, %v3299
      %v3301 = vand.u32 %v526, 4294901760
      %v3302 = vsub.f32 %v526, %v3301
      %3303 = vmatmul.f32.gmra.mxu0 %v3302
      %v3304 = vpop.f32.mrf.mxu0
      %v3305 = vadd.f32 %v3145, %v3304
      %v3306 = vand.u32 %v529, 4294901760
      %v3307 = vsub.f32 %v529, %v3306
      %3308 = vmatmul.f32.gmra.mxu0 %v3307
      %v3309 = vpop.f32.mrf.mxu0
      %v3310 = vadd.f32 %v3149, %v3309
      %v3311 = vand.u32 %v532, 4294901760
      %v3312 = vsub.f32 %v532, %v3311
      %3313 = vmatmul.f32.gmra.mxu0 %v3312
      %v3314 = vpop.f32.mrf.mxu0
      %v3315 = vadd.f32 %v3153, %v3314
      %v3316 = vand.u32 %v535, 4294901760
      %v3317 = vsub.f32 %v535, %v3316
      %3318 = vmatmul.f32.gmra.mxu0 %v3317
      %v3319 = vpop.f32.mrf.mxu0
      %v3320 = vadd.f32 %v3157, %v3319
      %v3321 = vand.u32 %v538, 4294901760
      %v3322 = vsub.f32 %v538, %v3321
      %3323 = vmatmul.f32.gmra.mxu0 %v3322
      %v3324 = vpop.f32.mrf.mxu0
      %v3325 = vadd.f32 %v3161, %v3324
      %v3326 = vand.u32 %v541, 4294901760
      %v3327 = vsub.f32 %v541, %v3326
      %3328 = vmatmul.f32.gmra.mxu0 %v3327
      %v3329 = vpop.f32.mrf.mxu0
      %v3330 = vadd.f32 %v3165, %v3329
      %v3331 = vand.u32 %v544, 4294901760
      %v3332 = vsub.f32 %v544, %v3331
      %3333 = vmatmul.f32.gmra.mxu0 %v3332
      %v3334 = vpop.f32.mrf.mxu0
      %v3335 = vadd.f32 %v3169, %v3334
      %v3336 = vand.u32 %v547, 4294901760
      %v3337 = vsub.f32 %v547, %v3336
      %3338 = vmatmul.f32.gmra.mxu0 %v3337
      %v3339 = vpop.f32.mrf.mxu0
      %v3340 = vadd.f32 %v3173, %v3339
      %v3341 = vand.u32 %v550, 4294901760
      %v3342 = vsub.f32 %v550, %v3341
      %3343 = vmatmul.f32.gmra.mxu0 %v3342
      %v3344 = vpop.f32.mrf.mxu0
      %v3345 = vadd.f32 %v3177, %v3344
      %v3346 = vand.u32 %v553, 4294901760
      %v3347 = vsub.f32 %v553, %v3346
      %3348 = vmatmul.f32.gmra.mxu0 %v3347
      %v3349 = vpop.f32.mrf.mxu0
      %v3350 = vadd.f32 %v3181, %v3349
      %v3351 = vand.u32 %v556, 4294901760
      %v3352 = vsub.f32 %v556, %v3351
      %3353 = vmatmul.f32.gmra.mxu0 %v3352
      %v3354 = vpop.f32.mrf.mxu0
      %v3355 = vadd.f32 %v3185, %v3354
      %v3356 = vand.u32 %v559, 4294901760
      %v3357 = vsub.f32 %v559, %v3356
      %3358 = vmatmul.f32.gmra.mxu0 %v3357
      %v3359 = vpop.f32.mrf.mxu0
      %v3360 = vadd.f32 %v3189, %v3359
      %v3361 = vand.u32 %v562, 4294901760
      %v3362 = vsub.f32 %v562, %v3361
      %3363 = vmatmul.f32.gmra.mxu0 %v3362
      %v3364 = vpop.f32.mrf.mxu0
      %v3365 = vadd.f32 %v3193, %v3364
      %v3366 = vand.u32 %v565, 4294901760
      %v3367 = vsub.f32 %v565, %v3366
      %3368 = vmatmul.f32.gmra.mxu0 %v3367
      %v3369 = vpop.f32.mrf.mxu0
      %v3370 = vadd.f32 %v3197, %v3369
      %v3371 = vand.u32 %v568, 4294901760
      %v3372 = vsub.f32 %v568, %v3371
      %3373 = vmatmul.f32.gmra.mxu0 %v3372
      %v3374 = vpop.f32.mrf.mxu0
      %v3375 = vadd.f32 %v3201, %v3374
      %v3376 = vand.u32 %v571, 4294901760
      %v3377 = vsub.f32 %v571, %v3376
      %3378 = vmatmul.f32.gmra.mxu0 %v3377
      %v3379 = vpop.f32.mrf.mxu0
      %v3380 = vadd.f32 %v3205, %v3379
      %v3381 = vand.u32 %v574, 4294901760
      %v3382 = vsub.f32 %v574, %v3381
      %3383 = vmatmul.f32.gmra.mxu0 %v3382
      %v3384 = vpop.f32.mrf.mxu0
      %v3385 = vadd.f32 %v3209, %v3384
      %v3386 = vand.u32 %v577, 4294901760
      %v3387 = vsub.f32 %v577, %v3386
      %3388 = vmatmul.f32.gmra.mxu0 %v3387
      %v3389 = vpop.f32.mrf.mxu0
      %v3390 = vadd.f32 %v3213, %v3389
      %v3391 = vand.u32 %v580, 4294901760
      %v3392 = vsub.f32 %v580, %v3391
      %3393 = vmatmul.f32.gmra.mxu0 %v3392
      %v3394 = vpop.f32.mrf.mxu0
      %v3395 = vadd.f32 %v3217, %v3394
      %v3396 = vand.u32 %v583, 4294901760
      %v3397 = vsub.f32 %v583, %v3396
      %3398 = vmatmul.f32.gmra.mxu0 %v3397
      %v3399 = vpop.f32.mrf.mxu0
      %v3400 = vadd.f32 %v3221, %v3399
      %3401 = vdwg.mxu0
      %3402 = vmatpush.msra.mxu0 0.0
      %3403 = vmatpush.msra.mxu0 0.0
      %3404 = vmatpush.msra.mxu0 0.0
      %3405 = vmatpush.msra.mxu0 0.0
      %3406 = vmatpush.msra.mxu0 0.0
      %3407 = vmatpush.msra.mxu0 0.0
      %3408 = vmatpush.msra.mxu0 0.0
      %3409 = vmatpush.msra.mxu0 0.0
      %3410 = vmatpush.msra.mxu0 0.0
      %3411 = vmatpush.msra.mxu0 0.0
      %3412 = vmatpush.msra.mxu0 0.0
      %3413 = vmatpush.msra.mxu0 0.0
      %3414 = vmatpush.msra.mxu0 0.0
      %3415 = vmatpush.msra.mxu0 0.0
      %3416 = vmatpush.msra.mxu0 0.0
      %v3417 = vand.u32 %v298, 4294901760
      %3418 = vmatpush.msra.mxu0 %v3417
      %v3419 = vand.u32 %v490, 4294901760
      %v3420 = vsub.f32 %v490, %v3419
      %v3421 = vand.u32 %v3420, 4294901760
      %3422 = vmatmul.f32.gmra.mxu0 %v3421
      %v3423 = vpop.f32.mrf.mxu0
      %v3424 = vadd.f32 %v3245, %v3423
      %v3425 = vand.u32 %v493, 4294901760
      %v3426 = vsub.f32 %v493, %v3425
      %v3427 = vand.u32 %v3426, 4294901760
      %3428 = vmatmul.f32.gmra.mxu0 %v3427
      %v3429 = vpop.f32.mrf.mxu0
      %v3430 = vadd.f32 %v3250, %v3429
      %v3431 = vand.u32 %v496, 4294901760
      %v3432 = vsub.f32 %v496, %v3431
      %v3433 = vand.u32 %v3432, 4294901760
      %3434 = vmatmul.f32.gmra.mxu0 %v3433
      %v3435 = vpop.f32.mrf.mxu0
      %v3436 = vadd.f32 %v3255, %v3435
      %v3437 = vand.u32 %v499, 4294901760
      %v3438 = vsub.f32 %v499, %v3437
      %v3439 = vand.u32 %v3438, 4294901760
      %3440 = vmatmul.f32.gmra.mxu0 %v3439
      %v3441 = vpop.f32.mrf.mxu0
      %v3442 = vadd.f32 %v3260, %v3441
      %v3443 = vand.u32 %v502, 4294901760
      %v3444 = vsub.f32 %v502, %v3443
      %v3445 = vand.u32 %v3444, 4294901760
      %3446 = vmatmul.f32.gmra.mxu0 %v3445
      %v3447 = vpop.f32.mrf.mxu0
      %v3448 = vadd.f32 %v3265, %v3447
      %v3449 = vand.u32 %v505, 4294901760
      %v3450 = vsub.f32 %v505, %v3449
      %v3451 = vand.u32 %v3450, 4294901760
      %3452 = vmatmul.f32.gmra.mxu0 %v3451
      %v3453 = vpop.f32.mrf.mxu0
      %v3454 = vadd.f32 %v3270, %v3453
      %v3455 = vand.u32 %v508, 4294901760
      %v3456 = vsub.f32 %v508, %v3455
      %v3457 = vand.u32 %v3456, 4294901760
      %3458 = vmatmul.f32.gmra.mxu0 %v3457
      %v3459 = vpop.f32.mrf.mxu0
      %v3460 = vadd.f32 %v3275, %v3459
      %v3461 = vand.u32 %v511, 4294901760
      %v3462 = vsub.f32 %v511, %v3461
      %v3463 = vand.u32 %v3462, 4294901760
      %3464 = vmatmul.f32.gmra.mxu0 %v3463
      %v3465 = vpop.f32.mrf.mxu0
      %v3466 = vadd.f32 %v3280, %v3465
      %v3467 = vand.u32 %v514, 4294901760
      %v3468 = vsub.f32 %v514, %v3467
      %v3469 = vand.u32 %v3468, 4294901760
      %3470 = vmatmul.f32.gmra.mxu0 %v3469
      %v3471 = vpop.f32.mrf.mxu0
      %v3472 = vadd.f32 %v3285, %v3471
      %v3473 = vand.u32 %v517, 4294901760
      %v3474 = vsub.f32 %v517, %v3473
      %v3475 = vand.u32 %v3474, 4294901760
      %3476 = vmatmul.f32.gmra.mxu0 %v3475
      %v3477 = vpop.f32.mrf.mxu0
      %v3478 = vadd.f32 %v3290, %v3477
      %v3479 = vand.u32 %v520, 4294901760
      %v3480 = vsub.f32 %v520, %v3479
      %v3481 = vand.u32 %v3480, 4294901760
      %3482 = vmatmul.f32.gmra.mxu0 %v3481
      %v3483 = vpop.f32.mrf.mxu0
      %v3484 = vadd.f32 %v3295, %v3483
      %v3485 = vand.u32 %v523, 4294901760
      %v3486 = vsub.f32 %v523, %v3485
      %v3487 = vand.u32 %v3486, 4294901760
      %3488 = vmatmul.f32.gmra.mxu0 %v3487
      %v3489 = vpop.f32.mrf.mxu0
      %v3490 = vadd.f32 %v3300, %v3489
      %v3491 = vand.u32 %v526, 4294901760
      %v3492 = vsub.f32 %v526, %v3491
      %v3493 = vand.u32 %v3492, 4294901760
      %3494 = vmatmul.f32.gmra.mxu0 %v3493
      %v3495 = vpop.f32.mrf.mxu0
      %v3496 = vadd.f32 %v3305, %v3495
      %v3497 = vand.u32 %v529, 4294901760
      %v3498 = vsub.f32 %v529, %v3497
      %v3499 = vand.u32 %v3498, 4294901760
      %3500 = vmatmul.f32.gmra.mxu0 %v3499
      %v3501 = vpop.f32.mrf.mxu0
      %v3502 = vadd.f32 %v3310, %v3501
      %v3503 = vand.u32 %v532, 4294901760
      %v3504 = vsub.f32 %v532, %v3503
      %v3505 = vand.u32 %v3504, 4294901760
      %3506 = vmatmul.f32.gmra.mxu0 %v3505
      %v3507 = vpop.f32.mrf.mxu0
      %v3508 = vadd.f32 %v3315, %v3507
      %v3509 = vand.u32 %v535, 4294901760
      %v3510 = vsub.f32 %v535, %v3509
      %v3511 = vand.u32 %v3510, 4294901760
      %3512 = vmatmul.f32.gmra.mxu0 %v3511
      %v3513 = vpop.f32.mrf.mxu0
      %v3514 = vadd.f32 %v3320, %v3513
      %v3515 = vand.u32 %v538, 4294901760
      %v3516 = vsub.f32 %v538, %v3515
      %v3517 = vand.u32 %v3516, 4294901760
      %3518 = vmatmul.f32.gmra.mxu0 %v3517
      %v3519 = vpop.f32.mrf.mxu0
      %v3520 = vadd.f32 %v3325, %v3519
      %v3521 = vand.u32 %v541, 4294901760
      %v3522 = vsub.f32 %v541, %v3521
      %v3523 = vand.u32 %v3522, 4294901760
      %3524 = vmatmul.f32.gmra.mxu0 %v3523
      %v3525 = vpop.f32.mrf.mxu0
      %v3526 = vadd.f32 %v3330, %v3525
      %v3527 = vand.u32 %v544, 4294901760
      %v3528 = vsub.f32 %v544, %v3527
      %v3529 = vand.u32 %v3528, 4294901760
      %3530 = vmatmul.f32.gmra.mxu0 %v3529
      %v3531 = vpop.f32.mrf.mxu0
      %v3532 = vadd.f32 %v3335, %v3531
      %v3533 = vand.u32 %v547, 4294901760
      %v3534 = vsub.f32 %v547, %v3533
      %v3535 = vand.u32 %v3534, 4294901760
      %3536 = vmatmul.f32.gmra.mxu0 %v3535
      %v3537 = vpop.f32.mrf.mxu0
      %v3538 = vadd.f32 %v3340, %v3537
      %v3539 = vand.u32 %v550, 4294901760
      %v3540 = vsub.f32 %v550, %v3539
      %v3541 = vand.u32 %v3540, 4294901760
      %3542 = vmatmul.f32.gmra.mxu0 %v3541
      %v3543 = vpop.f32.mrf.mxu0
      %v3544 = vadd.f32 %v3345, %v3543
      %v3545 = vand.u32 %v553, 4294901760
      %v3546 = vsub.f32 %v553, %v3545
      %v3547 = vand.u32 %v3546, 4294901760
      %3548 = vmatmul.f32.gmra.mxu0 %v3547
      %v3549 = vpop.f32.mrf.mxu0
      %v3550 = vadd.f32 %v3350, %v3549
      %v3551 = vand.u32 %v556, 4294901760
      %v3552 = vsub.f32 %v556, %v3551
      %v3553 = vand.u32 %v3552, 4294901760
      %3554 = vmatmul.f32.gmra.mxu0 %v3553
      %v3555 = vpop.f32.mrf.mxu0
      %v3556 = vadd.f32 %v3355, %v3555
      %v3557 = vand.u32 %v559, 4294901760
      %v3558 = vsub.f32 %v559, %v3557
      %v3559 = vand.u32 %v3558, 4294901760
      %3560 = vmatmul.f32.gmra.mxu0 %v3559
      %v3561 = vpop.f32.mrf.mxu0
      %v3562 = vadd.f32 %v3360, %v3561
      %v3563 = vand.u32 %v562, 4294901760
      %v3564 = vsub.f32 %v562, %v3563
      %v3565 = vand.u32 %v3564, 4294901760
      %3566 = vmatmul.f32.gmra.mxu0 %v3565
      %v3567 = vpop.f32.mrf.mxu0
      %v3568 = vadd.f32 %v3365, %v3567
      %v3569 = vand.u32 %v565, 4294901760
      %v3570 = vsub.f32 %v565, %v3569
      %v3571 = vand.u32 %v3570, 4294901760
      %3572 = vmatmul.f32.gmra.mxu0 %v3571
      %v3573 = vpop.f32.mrf.mxu0
      %v3574 = vadd.f32 %v3370, %v3573
      %v3575 = vand.u32 %v568, 4294901760
      %v3576 = vsub.f32 %v568, %v3575
      %v3577 = vand.u32 %v3576, 4294901760
      %3578 = vmatmul.f32.gmra.mxu0 %v3577
      %v3579 = vpop.f32.mrf.mxu0
      %v3580 = vadd.f32 %v3375, %v3579
      %v3581 = vand.u32 %v571, 4294901760
      %v3582 = vsub.f32 %v571, %v3581
      %v3583 = vand.u32 %v3582, 4294901760
      %3584 = vmatmul.f32.gmra.mxu0 %v3583
      %v3585 = vpop.f32.mrf.mxu0
      %v3586 = vadd.f32 %v3380, %v3585
      %v3587 = vand.u32 %v574, 4294901760
      %v3588 = vsub.f32 %v574, %v3587
      %v3589 = vand.u32 %v3588, 4294901760
      %3590 = vmatmul.f32.gmra.mxu0 %v3589
      %v3591 = vpop.f32.mrf.mxu0
      %v3592 = vadd.f32 %v3385, %v3591
      %v3593 = vand.u32 %v577, 4294901760
      %v3594 = vsub.f32 %v577, %v3593
      %v3595 = vand.u32 %v3594, 4294901760
      %3596 = vmatmul.f32.gmra.mxu0 %v3595
      %v3597 = vpop.f32.mrf.mxu0
      %v3598 = vadd.f32 %v3390, %v3597
      %v3599 = vand.u32 %v580, 4294901760
      %v3600 = vsub.f32 %v580, %v3599
      %v3601 = vand.u32 %v3600, 4294901760
      %3602 = vmatmul.f32.gmra.mxu0 %v3601
      %v3603 = vpop.f32.mrf.mxu0
      %v3604 = vadd.f32 %v3395, %v3603
      %v3605 = vand.u32 %v583, 4294901760
      %v3606 = vsub.f32 %v583, %v3605
      %v3607 = vand.u32 %v3606, 4294901760
      %3608 = vmatmul.f32.gmra.mxu0 %v3607
      %v3609 = vpop.f32.mrf.mxu0
      %v3610 = vadd.f32 %v3400, %v3609
      %3611 = vdwg.mxu0
      %3612 = vmatpush.msra.mxu0 0.0
      %3613 = vmatpush.msra.mxu0 0.0
      %3614 = vmatpush.msra.mxu0 0.0
      %3615 = vmatpush.msra.mxu0 0.0
      %3616 = vmatpush.msra.mxu0 0.0
      %3617 = vmatpush.msra.mxu0 0.0
      %3618 = vmatpush.msra.mxu0 0.0
      %3619 = vmatpush.msra.mxu0 0.0
      %3620 = vmatpush.msra.mxu0 0.0
      %3621 = vmatpush.msra.mxu0 0.0
      %3622 = vmatpush.msra.mxu0 0.0
      %3623 = vmatpush.msra.mxu0 0.0
      %3624 = vmatpush.msra.mxu0 0.0
      %3625 = vmatpush.msra.mxu0 0.0
      %3626 = vmatpush.msra.mxu0 0.0
      %v3627 = vand.u32 %v298, 4294901760
      %v3628 = vsub.f32 %v298, %v3627
      %v3629 = vand.u32 %v3628, 4294901760
      %3630 = vmatpush.msra.mxu0 %v3629
      %v3631 = vand.u32 %v490, 4294901760
      %3632 = vmatmul.f32.gmra.mxu0 %v3631
      %v3633 = vpop.f32.mrf.mxu0
      %v3634 = vadd.f32 %v3424, %v3633
      %v3635 = vand.u32 %v493, 4294901760
      %3636 = vmatmul.f32.gmra.mxu0 %v3635
      %v3637 = vpop.f32.mrf.mxu0
      %v3638 = vadd.f32 %v3430, %v3637
      %v3639 = vand.u32 %v496, 4294901760
      %3640 = vmatmul.f32.gmra.mxu0 %v3639
      %v3641 = vpop.f32.mrf.mxu0
      %v3642 = vadd.f32 %v3436, %v3641
      %v3643 = vand.u32 %v499, 4294901760
      %3644 = vmatmul.f32.gmra.mxu0 %v3643
      %v3645 = vpop.f32.mrf.mxu0
      %v3646 = vadd.f32 %v3442, %v3645
      %v3647 = vand.u32 %v502, 4294901760
      %3648 = vmatmul.f32.gmra.mxu0 %v3647
      %v3649 = vpop.f32.mrf.mxu0
      %v3650 = vadd.f32 %v3448, %v3649
      %v3651 = vand.u32 %v505, 4294901760
      %3652 = vmatmul.f32.gmra.mxu0 %v3651
      %v3653 = vpop.f32.mrf.mxu0
      %v3654 = vadd.f32 %v3454, %v3653
      %v3655 = vand.u32 %v508, 4294901760
      %3656 = vmatmul.f32.gmra.mxu0 %v3655
      %v3657 = vpop.f32.mrf.mxu0
      %v3658 = vadd.f32 %v3460, %v3657
      %v3659 = vand.u32 %v511, 4294901760
      %3660 = vmatmul.f32.gmra.mxu0 %v3659
      %v3661 = vpop.f32.mrf.mxu0
      %v3662 = vadd.f32 %v3466, %v3661
      %v3663 = vand.u32 %v514, 4294901760
      %3664 = vmatmul.f32.gmra.mxu0 %v3663
      %v3665 = vpop.f32.mrf.mxu0
      %v3666 = vadd.f32 %v3472, %v3665
      %v3667 = vand.u32 %v517, 4294901760
      %3668 = vmatmul.f32.gmra.mxu0 %v3667
      %v3669 = vpop.f32.mrf.mxu0
      %v3670 = vadd.f32 %v3478, %v3669
      %v3671 = vand.u32 %v520, 4294901760
      %3672 = vmatmul.f32.gmra.mxu0 %v3671
      %v3673 = vpop.f32.mrf.mxu0
      %v3674 = vadd.f32 %v3484, %v3673
      %v3675 = vand.u32 %v523, 4294901760
      %3676 = vmatmul.f32.gmra.mxu0 %v3675
      %v3677 = vpop.f32.mrf.mxu0
      %v3678 = vadd.f32 %v3490, %v3677
      %v3679 = vand.u32 %v526, 4294901760
      %3680 = vmatmul.f32.gmra.mxu0 %v3679
      %v3681 = vpop.f32.mrf.mxu0
      %v3682 = vadd.f32 %v3496, %v3681
      %v3683 = vand.u32 %v529, 4294901760
      %3684 = vmatmul.f32.gmra.mxu0 %v3683
      %v3685 = vpop.f32.mrf.mxu0
      %v3686 = vadd.f32 %v3502, %v3685
      %v3687 = vand.u32 %v532, 4294901760
      %3688 = vmatmul.f32.gmra.mxu0 %v3687
      %v3689 = vpop.f32.mrf.mxu0
      %v3690 = vadd.f32 %v3508, %v3689
      %v3691 = vand.u32 %v535, 4294901760
      %3692 = vmatmul.f32.gmra.mxu0 %v3691
      %v3693 = vpop.f32.mrf.mxu0
      %v3694 = vadd.f32 %v3514, %v3693
      %v3695 = vand.u32 %v538, 4294901760
      %3696 = vmatmul.f32.gmra.mxu0 %v3695
      %v3697 = vpop.f32.mrf.mxu0
      %v3698 = vadd.f32 %v3520, %v3697
      %v3699 = vand.u32 %v541, 4294901760
      %3700 = vmatmul.f32.gmra.mxu0 %v3699
      %v3701 = vpop.f32.mrf.mxu0
      %v3702 = vadd.f32 %v3526, %v3701
      %v3703 = vand.u32 %v544, 4294901760
      %3704 = vmatmul.f32.gmra.mxu0 %v3703
      %v3705 = vpop.f32.mrf.mxu0
      %v3706 = vadd.f32 %v3532, %v3705
      %v3707 = vand.u32 %v547, 4294901760
      %3708 = vmatmul.f32.gmra.mxu0 %v3707
      %v3709 = vpop.f32.mrf.mxu0
      %v3710 = vadd.f32 %v3538, %v3709
      %v3711 = vand.u32 %v550, 4294901760
      %3712 = vmatmul.f32.gmra.mxu0 %v3711
      %v3713 = vpop.f32.mrf.mxu0
      %v3714 = vadd.f32 %v3544, %v3713
      %v3715 = vand.u32 %v553, 4294901760
      %3716 = vmatmul.f32.gmra.mxu0 %v3715
      %v3717 = vpop.f32.mrf.mxu0
      %v3718 = vadd.f32 %v3550, %v3717
      %v3719 = vand.u32 %v556, 4294901760
      %3720 = vmatmul.f32.gmra.mxu0 %v3719
      %v3721 = vpop.f32.mrf.mxu0
      %v3722 = vadd.f32 %v3556, %v3721
      %v3723 = vand.u32 %v559, 4294901760
      %3724 = vmatmul.f32.gmra.mxu0 %v3723
      %v3725 = vpop.f32.mrf.mxu0
      %v3726 = vadd.f32 %v3562, %v3725
      %v3727 = vand.u32 %v562, 4294901760
      %3728 = vmatmul.f32.gmra.mxu0 %v3727
      %v3729 = vpop.f32.mrf.mxu0
      %v3730 = vadd.f32 %v3568, %v3729
      %v3731 = vand.u32 %v565, 4294901760
      %3732 = vmatmul.f32.gmra.mxu0 %v3731
      %v3733 = vpop.f32.mrf.mxu0
      %v3734 = vadd.f32 %v3574, %v3733
      %v3735 = vand.u32 %v568, 4294901760
      %3736 = vmatmul.f32.gmra.mxu0 %v3735
      %v3737 = vpop.f32.mrf.mxu0
      %v3738 = vadd.f32 %v3580, %v3737
      %v3739 = vand.u32 %v571, 4294901760
      %3740 = vmatmul.f32.gmra.mxu0 %v3739
      %v3741 = vpop.f32.mrf.mxu0
      %v3742 = vadd.f32 %v3586, %v3741
      %v3743 = vand.u32 %v574, 4294901760
      %3744 = vmatmul.f32.gmra.mxu0 %v3743
      %v3745 = vpop.f32.mrf.mxu0
      %v3746 = vadd.f32 %v3592, %v3745
      %v3747 = vand.u32 %v577, 4294901760
      %3748 = vmatmul.f32.gmra.mxu0 %v3747
      %v3749 = vpop.f32.mrf.mxu0
      %v3750 = vadd.f32 %v3598, %v3749
      %v3751 = vand.u32 %v580, 4294901760
      %3752 = vmatmul.f32.gmra.mxu0 %v3751
      %v3753 = vpop.f32.mrf.mxu0
      %v3754 = vadd.f32 %v3604, %v3753
      %v3755 = vand.u32 %v583, 4294901760
      %3756 = vmatmul.f32.gmra.mxu0 %v3755
      %v3757 = vpop.f32.mrf.mxu0
      %v3758 = vadd.f32 %v3610, %v3757
      %3759 = vdwg.mxu0
      %3760 = vmatpush.msra.mxu0 0.0
      %3761 = vmatpush.msra.mxu0 0.0
      %3762 = vmatpush.msra.mxu0 0.0
      %3763 = vmatpush.msra.mxu0 0.0
      %3764 = vmatpush.msra.mxu0 0.0
      %3765 = vmatpush.msra.mxu0 0.0
      %3766 = vmatpush.msra.mxu0 0.0
      %3767 = vmatpush.msra.mxu0 0.0
      %3768 = vmatpush.msra.mxu0 0.0
      %3769 = vmatpush.msra.mxu0 0.0
      %3770 = vmatpush.msra.mxu0 0.0
      %3771 = vmatpush.msra.mxu0 0.0
      %3772 = vmatpush.msra.mxu0 0.0
      %3773 = vmatpush.msra.mxu0 0.0
      %3774 = vmatpush.msra.mxu0 0.0
      %v3775 = vand.u32 %v298, 4294901760
      %3776 = vmatpush.msra.mxu0 %v3775
      %v3777 = vand.u32 %v490, 4294901760
      %3778 = vmatmul.f32.gmra.mxu0 %v3777
      %v3779 = vpop.f32.mrf.mxu0
      %v3780 = vadd.f32 %v3634, %v3779
      %v3781 = vand.u32 %v493, 4294901760
      %3782 = vmatmul.f32.gmra.mxu0 %v3781
      %v3783 = vpop.f32.mrf.mxu0
      %v3784 = vadd.f32 %v3638, %v3783
      %v3785 = vand.u32 %v496, 4294901760
      %3786 = vmatmul.f32.gmra.mxu0 %v3785
      %v3787 = vpop.f32.mrf.mxu0
      %v3788 = vadd.f32 %v3642, %v3787
      %v3789 = vand.u32 %v499, 4294901760
      %3790 = vmatmul.f32.gmra.mxu0 %v3789
      %v3791 = vpop.f32.mrf.mxu0
      %v3792 = vadd.f32 %v3646, %v3791
      %v3793 = vand.u32 %v502, 4294901760
      %3794 = vmatmul.f32.gmra.mxu0 %v3793
      %v3795 = vpop.f32.mrf.mxu0
      %v3796 = vadd.f32 %v3650, %v3795
      %v3797 = vand.u32 %v505, 4294901760
      %3798 = vmatmul.f32.gmra.mxu0 %v3797
      %v3799 = vpop.f32.mrf.mxu0
      %v3800 = vadd.f32 %v3654, %v3799
      %v3801 = vand.u32 %v508, 4294901760
      %3802 = vmatmul.f32.gmra.mxu0 %v3801
      %v3803 = vpop.f32.mrf.mxu0
      %v3804 = vadd.f32 %v3658, %v3803
      %v3805 = vand.u32 %v511, 4294901760
      %3806 = vmatmul.f32.gmra.mxu0 %v3805
      %v3807 = vpop.f32.mrf.mxu0
      %v3808 = vadd.f32 %v3662, %v3807
      %v3809 = vand.u32 %v514, 4294901760
      %3810 = vmatmul.f32.gmra.mxu0 %v3809
      %v3811 = vpop.f32.mrf.mxu0
      %v3812 = vadd.f32 %v3666, %v3811
      %v3813 = vand.u32 %v517, 4294901760
      %3814 = vmatmul.f32.gmra.mxu0 %v3813
      %v3815 = vpop.f32.mrf.mxu0
      %v3816 = vadd.f32 %v3670, %v3815
      %v3817 = vand.u32 %v520, 4294901760
      %3818 = vmatmul.f32.gmra.mxu0 %v3817
      %v3819 = vpop.f32.mrf.mxu0
      %v3820 = vadd.f32 %v3674, %v3819
      %v3821 = vand.u32 %v523, 4294901760
      %3822 = vmatmul.f32.gmra.mxu0 %v3821
      %v3823 = vpop.f32.mrf.mxu0
      %v3824 = vadd.f32 %v3678, %v3823
      %v3825 = vand.u32 %v526, 4294901760
      %3826 = vmatmul.f32.gmra.mxu0 %v3825
      %v3827 = vpop.f32.mrf.mxu0
      %v3828 = vadd.f32 %v3682, %v3827
      %v3829 = vand.u32 %v529, 4294901760
      %3830 = vmatmul.f32.gmra.mxu0 %v3829
      %v3831 = vpop.f32.mrf.mxu0
      %v3832 = vadd.f32 %v3686, %v3831
      %v3833 = vand.u32 %v532, 4294901760
      %3834 = vmatmul.f32.gmra.mxu0 %v3833
      %v3835 = vpop.f32.mrf.mxu0
      %v3836 = vadd.f32 %v3690, %v3835
      %v3837 = vand.u32 %v535, 4294901760
      %3838 = vmatmul.f32.gmra.mxu0 %v3837
      %v3839 = vpop.f32.mrf.mxu0
      %v3840 = vadd.f32 %v3694, %v3839
      %v3841 = vand.u32 %v538, 4294901760
      %3842 = vmatmul.f32.gmra.mxu0 %v3841
      %v3843 = vpop.f32.mrf.mxu0
      %v3844 = vadd.f32 %v3698, %v3843
      %v3845 = vand.u32 %v541, 4294901760
      %3846 = vmatmul.f32.gmra.mxu0 %v3845
      %v3847 = vpop.f32.mrf.mxu0
      %v3848 = vadd.f32 %v3702, %v3847
      %v3849 = vand.u32 %v544, 4294901760
      %3850 = vmatmul.f32.gmra.mxu0 %v3849
      %v3851 = vpop.f32.mrf.mxu0
      %v3852 = vadd.f32 %v3706, %v3851
      %v3853 = vand.u32 %v547, 4294901760
      %3854 = vmatmul.f32.gmra.mxu0 %v3853
      %v3855 = vpop.f32.mrf.mxu0
      %v3856 = vadd.f32 %v3710, %v3855
      %v3857 = vand.u32 %v550, 4294901760
      %3858 = vmatmul.f32.gmra.mxu0 %v3857
      %v3859 = vpop.f32.mrf.mxu0
      %v3860 = vadd.f32 %v3714, %v3859
      %v3861 = vand.u32 %v553, 4294901760
      %3862 = vmatmul.f32.gmra.mxu0 %v3861
      %v3863 = vpop.f32.mrf.mxu0
      %v3864 = vadd.f32 %v3718, %v3863
      %v3865 = vand.u32 %v556, 4294901760
      %3866 = vmatmul.f32.gmra.mxu0 %v3865
      %v3867 = vpop.f32.mrf.mxu0
      %v3868 = vadd.f32 %v3722, %v3867
      %v3869 = vand.u32 %v559, 4294901760
      %3870 = vmatmul.f32.gmra.mxu0 %v3869
      %v3871 = vpop.f32.mrf.mxu0
      %v3872 = vadd.f32 %v3726, %v3871
      %v3873 = vand.u32 %v562, 4294901760
      %3874 = vmatmul.f32.gmra.mxu0 %v3873
      %v3875 = vpop.f32.mrf.mxu0
      %v3876 = vadd.f32 %v3730, %v3875
      %v3877 = vand.u32 %v565, 4294901760
      %3878 = vmatmul.f32.gmra.mxu0 %v3877
      %v3879 = vpop.f32.mrf.mxu0
      %v3880 = vadd.f32 %v3734, %v3879
      %v3881 = vand.u32 %v568, 4294901760
      %3882 = vmatmul.f32.gmra.mxu0 %v3881
      %v3883 = vpop.f32.mrf.mxu0
      %v3884 = vadd.f32 %v3738, %v3883
      %v3885 = vand.u32 %v571, 4294901760
      %3886 = vmatmul.f32.gmra.mxu0 %v3885
      %v3887 = vpop.f32.mrf.mxu0
      %v3888 = vadd.f32 %v3742, %v3887
      %v3889 = vand.u32 %v574, 4294901760
      %3890 = vmatmul.f32.gmra.mxu0 %v3889
      %v3891 = vpop.f32.mrf.mxu0
      %v3892 = vadd.f32 %v3746, %v3891
      %v3893 = vand.u32 %v577, 4294901760
      %3894 = vmatmul.f32.gmra.mxu0 %v3893
      %v3895 = vpop.f32.mrf.mxu0
      %v3896 = vadd.f32 %v3750, %v3895
      %v3897 = vand.u32 %v580, 4294901760
      %3898 = vmatmul.f32.gmra.mxu0 %v3897
      %v3899 = vpop.f32.mrf.mxu0
      %v3900 = vadd.f32 %v3754, %v3899
      %v3901 = vand.u32 %v583, 4294901760
      %3902 = vmatmul.f32.gmra.mxu0 %v3901
      %v3903 = vpop.f32.mrf.mxu0
      %v3904 = vadd.f32 %v3758, %v3903
      %3905 = vdwg.mxu0
      %3906 = vmatpush.msra.mxu0 0.0
      %3907 = vmatpush.msra.mxu0 0.0
      %3908 = vmatpush.msra.mxu0 0.0
      %3909 = vmatpush.msra.mxu0 0.0
      %3910 = vmatpush.msra.mxu0 0.0
      %3911 = vmatpush.msra.mxu0 0.0
      %3912 = vmatpush.msra.mxu0 0.0
      %3913 = vmatpush.msra.mxu0 0.0
      %3914 = vmatpush.msra.mxu0 0.0
      %3915 = vmatpush.msra.mxu0 0.0
      %3916 = vmatpush.msra.mxu0 0.0
      %3917 = vmatpush.msra.mxu0 0.0
      %3918 = vmatpush.msra.mxu0 0.0
      %3919 = vmatpush.msra.mxu0 0.0
      %3920 = vmatpush.msra.mxu0 0.0
      %v3921 = vand.u32 %v299, 4294901760
      %3922 = vmatpush.msra.mxu0 %v3921
      %v3923 = vand.u32 %v490, 4294901760
      %v3924 = vsub.f32 %v490, %v3923
      %v3925 = vand.u32 %v3924, 4294901760
      %v3926 = vsub.f32 %v3924, %v3925
      %v3927 = vand.u32 %v3926, 4294901760
      %3928 = vmatmul.f32.gmra.mxu0 %v3927
      %v3929 = vpop.f32.mrf.mxu0
      %v3930 = vadd.f32 %v335, %v3929
      %v3931 = vand.u32 %v493, 4294901760
      %v3932 = vsub.f32 %v493, %v3931
      %v3933 = vand.u32 %v3932, 4294901760
      %v3934 = vsub.f32 %v3932, %v3933
      %v3935 = vand.u32 %v3934, 4294901760
      %3936 = vmatmul.f32.gmra.mxu0 %v3935
      %v3937 = vpop.f32.mrf.mxu0
      %v3938 = vadd.f32 %v338, %v3937
      %v3939 = vand.u32 %v496, 4294901760
      %v3940 = vsub.f32 %v496, %v3939
      %v3941 = vand.u32 %v3940, 4294901760
      %v3942 = vsub.f32 %v3940, %v3941
      %v3943 = vand.u32 %v3942, 4294901760
      %3944 = vmatmul.f32.gmra.mxu0 %v3943
      %v3945 = vpop.f32.mrf.mxu0
      %v3946 = vadd.f32 %v341, %v3945
      %v3947 = vand.u32 %v499, 4294901760
      %v3948 = vsub.f32 %v499, %v3947
      %v3949 = vand.u32 %v3948, 4294901760
      %v3950 = vsub.f32 %v3948, %v3949
      %v3951 = vand.u32 %v3950, 4294901760
      %3952 = vmatmul.f32.gmra.mxu0 %v3951
      %v3953 = vpop.f32.mrf.mxu0
      %v3954 = vadd.f32 %v344, %v3953
      %v3955 = vand.u32 %v502, 4294901760
      %v3956 = vsub.f32 %v502, %v3955
      %v3957 = vand.u32 %v3956, 4294901760
      %v3958 = vsub.f32 %v3956, %v3957
      %v3959 = vand.u32 %v3958, 4294901760
      %3960 = vmatmul.f32.gmra.mxu0 %v3959
      %v3961 = vpop.f32.mrf.mxu0
      %v3962 = vadd.f32 %v347, %v3961
      %v3963 = vand.u32 %v505, 4294901760
      %v3964 = vsub.f32 %v505, %v3963
      %v3965 = vand.u32 %v3964, 4294901760
      %v3966 = vsub.f32 %v3964, %v3965
      %v3967 = vand.u32 %v3966, 4294901760
      %3968 = vmatmul.f32.gmra.mxu0 %v3967
      %v3969 = vpop.f32.mrf.mxu0
      %v3970 = vadd.f32 %v350, %v3969
      %v3971 = vand.u32 %v508, 4294901760
      %v3972 = vsub.f32 %v508, %v3971
      %v3973 = vand.u32 %v3972, 4294901760
      %v3974 = vsub.f32 %v3972, %v3973
      %v3975 = vand.u32 %v3974, 4294901760
      %3976 = vmatmul.f32.gmra.mxu0 %v3975
      %v3977 = vpop.f32.mrf.mxu0
      %v3978 = vadd.f32 %v353, %v3977
      %v3979 = vand.u32 %v511, 4294901760
      %v3980 = vsub.f32 %v511, %v3979
      %v3981 = vand.u32 %v3980, 4294901760
      %v3982 = vsub.f32 %v3980, %v3981
      %v3983 = vand.u32 %v3982, 4294901760
      %3984 = vmatmul.f32.gmra.mxu0 %v3983
      %v3985 = vpop.f32.mrf.mxu0
      %v3986 = vadd.f32 %v356, %v3985
      %v3987 = vand.u32 %v514, 4294901760
      %v3988 = vsub.f32 %v514, %v3987
      %v3989 = vand.u32 %v3988, 4294901760
      %v3990 = vsub.f32 %v3988, %v3989
      %v3991 = vand.u32 %v3990, 4294901760
      %3992 = vmatmul.f32.gmra.mxu0 %v3991
      %v3993 = vpop.f32.mrf.mxu0
      %v3994 = vadd.f32 %v359, %v3993
      %v3995 = vand.u32 %v517, 4294901760
      %v3996 = vsub.f32 %v517, %v3995
      %v3997 = vand.u32 %v3996, 4294901760
      %v3998 = vsub.f32 %v3996, %v3997
      %v3999 = vand.u32 %v3998, 4294901760
      %4000 = vmatmul.f32.gmra.mxu0 %v3999
      %v4001 = vpop.f32.mrf.mxu0
      %v4002 = vadd.f32 %v362, %v4001
      %v4003 = vand.u32 %v520, 4294901760
      %v4004 = vsub.f32 %v520, %v4003
      %v4005 = vand.u32 %v4004, 4294901760
      %v4006 = vsub.f32 %v4004, %v4005
      %v4007 = vand.u32 %v4006, 4294901760
      %4008 = vmatmul.f32.gmra.mxu0 %v4007
      %v4009 = vpop.f32.mrf.mxu0
      %v4010 = vadd.f32 %v365, %v4009
      %v4011 = vand.u32 %v523, 4294901760
      %v4012 = vsub.f32 %v523, %v4011
      %v4013 = vand.u32 %v4012, 4294901760
      %v4014 = vsub.f32 %v4012, %v4013
      %v4015 = vand.u32 %v4014, 4294901760
      %4016 = vmatmul.f32.gmra.mxu0 %v4015
      %v4017 = vpop.f32.mrf.mxu0
      %v4018 = vadd.f32 %v368, %v4017
      %v4019 = vand.u32 %v526, 4294901760
      %v4020 = vsub.f32 %v526, %v4019
      %v4021 = vand.u32 %v4020, 4294901760
      %v4022 = vsub.f32 %v4020, %v4021
      %v4023 = vand.u32 %v4022, 4294901760
      %4024 = vmatmul.f32.gmra.mxu0 %v4023
      %v4025 = vpop.f32.mrf.mxu0
      %v4026 = vadd.f32 %v371, %v4025
      %v4027 = vand.u32 %v529, 4294901760
      %v4028 = vsub.f32 %v529, %v4027
      %v4029 = vand.u32 %v4028, 4294901760
      %v4030 = vsub.f32 %v4028, %v4029
      %v4031 = vand.u32 %v4030, 4294901760
      %4032 = vmatmul.f32.gmra.mxu0 %v4031
      %v4033 = vpop.f32.mrf.mxu0
      %v4034 = vadd.f32 %v374, %v4033
      %v4035 = vand.u32 %v532, 4294901760
      %v4036 = vsub.f32 %v532, %v4035
      %v4037 = vand.u32 %v4036, 4294901760
      %v4038 = vsub.f32 %v4036, %v4037
      %v4039 = vand.u32 %v4038, 4294901760
      %4040 = vmatmul.f32.gmra.mxu0 %v4039
      %v4041 = vpop.f32.mrf.mxu0
      %v4042 = vadd.f32 %v377, %v4041
      %v4043 = vand.u32 %v535, 4294901760
      %v4044 = vsub.f32 %v535, %v4043
      %v4045 = vand.u32 %v4044, 4294901760
      %v4046 = vsub.f32 %v4044, %v4045
      %v4047 = vand.u32 %v4046, 4294901760
      %4048 = vmatmul.f32.gmra.mxu0 %v4047
      %v4049 = vpop.f32.mrf.mxu0
      %v4050 = vadd.f32 %v380, %v4049
      %v4051 = vand.u32 %v538, 4294901760
      %v4052 = vsub.f32 %v538, %v4051
      %v4053 = vand.u32 %v4052, 4294901760
      %v4054 = vsub.f32 %v4052, %v4053
      %v4055 = vand.u32 %v4054, 4294901760
      %4056 = vmatmul.f32.gmra.mxu0 %v4055
      %v4057 = vpop.f32.mrf.mxu0
      %v4058 = vadd.f32 %v383, %v4057
      %v4059 = vand.u32 %v541, 4294901760
      %v4060 = vsub.f32 %v541, %v4059
      %v4061 = vand.u32 %v4060, 4294901760
      %v4062 = vsub.f32 %v4060, %v4061
      %v4063 = vand.u32 %v4062, 4294901760
      %4064 = vmatmul.f32.gmra.mxu0 %v4063
      %v4065 = vpop.f32.mrf.mxu0
      %v4066 = vadd.f32 %v386, %v4065
      %v4067 = vand.u32 %v544, 4294901760
      %v4068 = vsub.f32 %v544, %v4067
      %v4069 = vand.u32 %v4068, 4294901760
      %v4070 = vsub.f32 %v4068, %v4069
      %v4071 = vand.u32 %v4070, 4294901760
      %4072 = vmatmul.f32.gmra.mxu0 %v4071
      %v4073 = vpop.f32.mrf.mxu0
      %v4074 = vadd.f32 %v389, %v4073
      %v4075 = vand.u32 %v547, 4294901760
      %v4076 = vsub.f32 %v547, %v4075
      %v4077 = vand.u32 %v4076, 4294901760
      %v4078 = vsub.f32 %v4076, %v4077
      %v4079 = vand.u32 %v4078, 4294901760
      %4080 = vmatmul.f32.gmra.mxu0 %v4079
      %v4081 = vpop.f32.mrf.mxu0
      %v4082 = vadd.f32 %v392, %v4081
      %v4083 = vand.u32 %v550, 4294901760
      %v4084 = vsub.f32 %v550, %v4083
      %v4085 = vand.u32 %v4084, 4294901760
      %v4086 = vsub.f32 %v4084, %v4085
      %v4087 = vand.u32 %v4086, 4294901760
      %4088 = vmatmul.f32.gmra.mxu0 %v4087
      %v4089 = vpop.f32.mrf.mxu0
      %v4090 = vadd.f32 %v395, %v4089
      %v4091 = vand.u32 %v553, 4294901760
      %v4092 = vsub.f32 %v553, %v4091
      %v4093 = vand.u32 %v4092, 4294901760
      %v4094 = vsub.f32 %v4092, %v4093
      %v4095 = vand.u32 %v4094, 4294901760
      %4096 = vmatmul.f32.gmra.mxu0 %v4095
      %v4097 = vpop.f32.mrf.mxu0
      %v4098 = vadd.f32 %v398, %v4097
      %v4099 = vand.u32 %v556, 4294901760
      %v4100 = vsub.f32 %v556, %v4099
      %v4101 = vand.u32 %v4100, 4294901760
      %v4102 = vsub.f32 %v4100, %v4101
      %v4103 = vand.u32 %v4102, 4294901760
      %4104 = vmatmul.f32.gmra.mxu0 %v4103
      %v4105 = vpop.f32.mrf.mxu0
      %v4106 = vadd.f32 %v401, %v4105
      %v4107 = vand.u32 %v559, 4294901760
      %v4108 = vsub.f32 %v559, %v4107
      %v4109 = vand.u32 %v4108, 4294901760
      %v4110 = vsub.f32 %v4108, %v4109
      %v4111 = vand.u32 %v4110, 4294901760
      %4112 = vmatmul.f32.gmra.mxu0 %v4111
      %v4113 = vpop.f32.mrf.mxu0
      %v4114 = vadd.f32 %v404, %v4113
      %v4115 = vand.u32 %v562, 4294901760
      %v4116 = vsub.f32 %v562, %v4115
      %v4117 = vand.u32 %v4116, 4294901760
      %v4118 = vsub.f32 %v4116, %v4117
      %v4119 = vand.u32 %v4118, 4294901760
      %4120 = vmatmul.f32.gmra.mxu0 %v4119
      %v4121 = vpop.f32.mrf.mxu0
      %v4122 = vadd.f32 %v407, %v4121
      %v4123 = vand.u32 %v565, 4294901760
      %v4124 = vsub.f32 %v565, %v4123
      %v4125 = vand.u32 %v4124, 4294901760
      %v4126 = vsub.f32 %v4124, %v4125
      %v4127 = vand.u32 %v4126, 4294901760
      %4128 = vmatmul.f32.gmra.mxu0 %v4127
      %v4129 = vpop.f32.mrf.mxu0
      %v4130 = vadd.f32 %v410, %v4129
      %v4131 = vand.u32 %v568, 4294901760
      %v4132 = vsub.f32 %v568, %v4131
      %v4133 = vand.u32 %v4132, 4294901760
      %v4134 = vsub.f32 %v4132, %v4133
      %v4135 = vand.u32 %v4134, 4294901760
      %4136 = vmatmul.f32.gmra.mxu0 %v4135
      %v4137 = vpop.f32.mrf.mxu0
      %v4138 = vadd.f32 %v413, %v4137
      %v4139 = vand.u32 %v571, 4294901760
      %v4140 = vsub.f32 %v571, %v4139
      %v4141 = vand.u32 %v4140, 4294901760
      %v4142 = vsub.f32 %v4140, %v4141
      %v4143 = vand.u32 %v4142, 4294901760
      %4144 = vmatmul.f32.gmra.mxu0 %v4143
      %v4145 = vpop.f32.mrf.mxu0
      %v4146 = vadd.f32 %v416, %v4145
      %v4147 = vand.u32 %v574, 4294901760
      %v4148 = vsub.f32 %v574, %v4147
      %v4149 = vand.u32 %v4148, 4294901760
      %v4150 = vsub.f32 %v4148, %v4149
      %v4151 = vand.u32 %v4150, 4294901760
      %4152 = vmatmul.f32.gmra.mxu0 %v4151
      %v4153 = vpop.f32.mrf.mxu0
      %v4154 = vadd.f32 %v419, %v4153
      %v4155 = vand.u32 %v577, 4294901760
      %v4156 = vsub.f32 %v577, %v4155
      %v4157 = vand.u32 %v4156, 4294901760
      %v4158 = vsub.f32 %v4156, %v4157
      %v4159 = vand.u32 %v4158, 4294901760
      %4160 = vmatmul.f32.gmra.mxu0 %v4159
      %v4161 = vpop.f32.mrf.mxu0
      %v4162 = vadd.f32 %v422, %v4161
      %v4163 = vand.u32 %v580, 4294901760
      %v4164 = vsub.f32 %v580, %v4163
      %v4165 = vand.u32 %v4164, 4294901760
      %v4166 = vsub.f32 %v4164, %v4165
      %v4167 = vand.u32 %v4166, 4294901760
      %4168 = vmatmul.f32.gmra.mxu0 %v4167
      %v4169 = vpop.f32.mrf.mxu0
      %v4170 = vadd.f32 %v425, %v4169
      %v4171 = vand.u32 %v583, 4294901760
      %v4172 = vsub.f32 %v583, %v4171
      %v4173 = vand.u32 %v4172, 4294901760
      %v4174 = vsub.f32 %v4172, %v4173
      %v4175 = vand.u32 %v4174, 4294901760
      %4176 = vmatmul.f32.gmra.mxu0 %v4175
      %v4177 = vpop.f32.mrf.mxu0
      %v4178 = vadd.f32 %v428, %v4177
      %4179 = vdwg.mxu0
      %4180 = vmatpush.msra.mxu0 0.0
      %4181 = vmatpush.msra.mxu0 0.0
      %4182 = vmatpush.msra.mxu0 0.0
      %4183 = vmatpush.msra.mxu0 0.0
      %4184 = vmatpush.msra.mxu0 0.0
      %4185 = vmatpush.msra.mxu0 0.0
      %4186 = vmatpush.msra.mxu0 0.0
      %4187 = vmatpush.msra.mxu0 0.0
      %4188 = vmatpush.msra.mxu0 0.0
      %4189 = vmatpush.msra.mxu0 0.0
      %4190 = vmatpush.msra.mxu0 0.0
      %4191 = vmatpush.msra.mxu0 0.0
      %4192 = vmatpush.msra.mxu0 0.0
      %4193 = vmatpush.msra.mxu0 0.0
      %4194 = vmatpush.msra.mxu0 0.0
      %v4195 = vand.u32 %v299, 4294901760
      %v4196 = vsub.f32 %v299, %v4195
      %v4197 = vand.u32 %v4196, 4294901760
      %v4198 = vsub.f32 %v4196, %v4197
      %v4199 = vand.u32 %v4198, 4294901760
      %4200 = vmatpush.msra.mxu0 %v4199
      %v4201 = vand.u32 %v490, 4294901760
      %4202 = vmatmul.f32.gmra.mxu0 %v4201
      %v4203 = vpop.f32.mrf.mxu0
      %v4204 = vadd.f32 %v3930, %v4203
      %v4205 = vand.u32 %v493, 4294901760
      %4206 = vmatmul.f32.gmra.mxu0 %v4205
      %v4207 = vpop.f32.mrf.mxu0
      %v4208 = vadd.f32 %v3938, %v4207
      %v4209 = vand.u32 %v496, 4294901760
      %4210 = vmatmul.f32.gmra.mxu0 %v4209
      %v4211 = vpop.f32.mrf.mxu0
      %v4212 = vadd.f32 %v3946, %v4211
      %v4213 = vand.u32 %v499, 4294901760
      %4214 = vmatmul.f32.gmra.mxu0 %v4213
      %v4215 = vpop.f32.mrf.mxu0
      %v4216 = vadd.f32 %v3954, %v4215
      %v4217 = vand.u32 %v502, 4294901760
      %4218 = vmatmul.f32.gmra.mxu0 %v4217
      %v4219 = vpop.f32.mrf.mxu0
      %v4220 = vadd.f32 %v3962, %v4219
      %v4221 = vand.u32 %v505, 4294901760
      %4222 = vmatmul.f32.gmra.mxu0 %v4221
      %v4223 = vpop.f32.mrf.mxu0
      %v4224 = vadd.f32 %v3970, %v4223
      %v4225 = vand.u32 %v508, 4294901760
      %4226 = vmatmul.f32.gmra.mxu0 %v4225
      %v4227 = vpop.f32.mrf.mxu0
      %v4228 = vadd.f32 %v3978, %v4227
      %v4229 = vand.u32 %v511, 4294901760
      %4230 = vmatmul.f32.gmra.mxu0 %v4229
      %v4231 = vpop.f32.mrf.mxu0
      %v4232 = vadd.f32 %v3986, %v4231
      %v4233 = vand.u32 %v514, 4294901760
      %4234 = vmatmul.f32.gmra.mxu0 %v4233
      %v4235 = vpop.f32.mrf.mxu0
      %v4236 = vadd.f32 %v3994, %v4235
      %v4237 = vand.u32 %v517, 4294901760
      %4238 = vmatmul.f32.gmra.mxu0 %v4237
      %v4239 = vpop.f32.mrf.mxu0
      %v4240 = vadd.f32 %v4002, %v4239
      %v4241 = vand.u32 %v520, 4294901760
      %4242 = vmatmul.f32.gmra.mxu0 %v4241
      %v4243 = vpop.f32.mrf.mxu0
      %v4244 = vadd.f32 %v4010, %v4243
      %v4245 = vand.u32 %v523, 4294901760
      %4246 = vmatmul.f32.gmra.mxu0 %v4245
      %v4247 = vpop.f32.mrf.mxu0
      %v4248 = vadd.f32 %v4018, %v4247
      %v4249 = vand.u32 %v526, 4294901760
      %4250 = vmatmul.f32.gmra.mxu0 %v4249
      %v4251 = vpop.f32.mrf.mxu0
      %v4252 = vadd.f32 %v4026, %v4251
      %v4253 = vand.u32 %v529, 4294901760
      %4254 = vmatmul.f32.gmra.mxu0 %v4253
      %v4255 = vpop.f32.mrf.mxu0
      %v4256 = vadd.f32 %v4034, %v4255
      %v4257 = vand.u32 %v532, 4294901760
      %4258 = vmatmul.f32.gmra.mxu0 %v4257
      %v4259 = vpop.f32.mrf.mxu0
      %v4260 = vadd.f32 %v4042, %v4259
      %v4261 = vand.u32 %v535, 4294901760
      %4262 = vmatmul.f32.gmra.mxu0 %v4261
      %v4263 = vpop.f32.mrf.mxu0
      %v4264 = vadd.f32 %v4050, %v4263
      %v4265 = vand.u32 %v538, 4294901760
      %4266 = vmatmul.f32.gmra.mxu0 %v4265
      %v4267 = vpop.f32.mrf.mxu0
      %v4268 = vadd.f32 %v4058, %v4267
      %v4269 = vand.u32 %v541, 4294901760
      %4270 = vmatmul.f32.gmra.mxu0 %v4269
      %v4271 = vpop.f32.mrf.mxu0
      %v4272 = vadd.f32 %v4066, %v4271
      %v4273 = vand.u32 %v544, 4294901760
      %4274 = vmatmul.f32.gmra.mxu0 %v4273
      %v4275 = vpop.f32.mrf.mxu0
      %v4276 = vadd.f32 %v4074, %v4275
      %v4277 = vand.u32 %v547, 4294901760
      %4278 = vmatmul.f32.gmra.mxu0 %v4277
      %v4279 = vpop.f32.mrf.mxu0
      %v4280 = vadd.f32 %v4082, %v4279
      %v4281 = vand.u32 %v550, 4294901760
      %4282 = vmatmul.f32.gmra.mxu0 %v4281
      %v4283 = vpop.f32.mrf.mxu0
      %v4284 = vadd.f32 %v4090, %v4283
      %v4285 = vand.u32 %v553, 4294901760
      %4286 = vmatmul.f32.gmra.mxu0 %v4285
      %v4287 = vpop.f32.mrf.mxu0
      %v4288 = vadd.f32 %v4098, %v4287
      %v4289 = vand.u32 %v556, 4294901760
      %4290 = vmatmul.f32.gmra.mxu0 %v4289
      %v4291 = vpop.f32.mrf.mxu0
      %v4292 = vadd.f32 %v4106, %v4291
      %v4293 = vand.u32 %v559, 4294901760
      %4294 = vmatmul.f32.gmra.mxu0 %v4293
      %v4295 = vpop.f32.mrf.mxu0
      %v4296 = vadd.f32 %v4114, %v4295
      %v4297 = vand.u32 %v562, 4294901760
      %4298 = vmatmul.f32.gmra.mxu0 %v4297
      %v4299 = vpop.f32.mrf.mxu0
      %v4300 = vadd.f32 %v4122, %v4299
      %v4301 = vand.u32 %v565, 4294901760
      %4302 = vmatmul.f32.gmra.mxu0 %v4301
      %v4303 = vpop.f32.mrf.mxu0
      %v4304 = vadd.f32 %v4130, %v4303
      %v4305 = vand.u32 %v568, 4294901760
      %4306 = vmatmul.f32.gmra.mxu0 %v4305
      %v4307 = vpop.f32.mrf.mxu0
      %v4308 = vadd.f32 %v4138, %v4307
      %v4309 = vand.u32 %v571, 4294901760
      %4310 = vmatmul.f32.gmra.mxu0 %v4309
      %v4311 = vpop.f32.mrf.mxu0
      %v4312 = vadd.f32 %v4146, %v4311
      %v4313 = vand.u32 %v574, 4294901760
      %4314 = vmatmul.f32.gmra.mxu0 %v4313
      %v4315 = vpop.f32.mrf.mxu0
      %v4316 = vadd.f32 %v4154, %v4315
      %v4317 = vand.u32 %v577, 4294901760
      %4318 = vmatmul.f32.gmra.mxu0 %v4317
      %v4319 = vpop.f32.mrf.mxu0
      %v4320 = vadd.f32 %v4162, %v4319
      %v4321 = vand.u32 %v580, 4294901760
      %4322 = vmatmul.f32.gmra.mxu0 %v4321
      %v4323 = vpop.f32.mrf.mxu0
      %v4324 = vadd.f32 %v4170, %v4323
      %v4325 = vand.u32 %v583, 4294901760
      %4326 = vmatmul.f32.gmra.mxu0 %v4325
      %v4327 = vpop.f32.mrf.mxu0
      %v4328 = vadd.f32 %v4178, %v4327
      %4329 = vdwg.mxu0
      %4330 = vmatpush.msra.mxu0 0.0
      %4331 = vmatpush.msra.mxu0 0.0
      %4332 = vmatpush.msra.mxu0 0.0
      %4333 = vmatpush.msra.mxu0 0.0
      %4334 = vmatpush.msra.mxu0 0.0
      %4335 = vmatpush.msra.mxu0 0.0
      %4336 = vmatpush.msra.mxu0 0.0
      %4337 = vmatpush.msra.mxu0 0.0
      %4338 = vmatpush.msra.mxu0 0.0
      %4339 = vmatpush.msra.mxu0 0.0
      %4340 = vmatpush.msra.mxu0 0.0
      %4341 = vmatpush.msra.mxu0 0.0
      %4342 = vmatpush.msra.mxu0 0.0
      %4343 = vmatpush.msra.mxu0 0.0
      %4344 = vmatpush.msra.mxu0 0.0
      %v4345 = vand.u32 %v299, 4294901760
      %v4346 = vsub.f32 %v299, %v4345
      %4347 = vmatpush.msra.mxu0 %v4346
      %v4348 = vand.u32 %v490, 4294901760
      %v4349 = vsub.f32 %v490, %v4348
      %4350 = vmatmul.f32.gmra.mxu0 %v4349
      %v4351 = vpop.f32.mrf.mxu0
      %v4352 = vadd.f32 %v4204, %v4351
      %v4353 = vand.u32 %v493, 4294901760
      %v4354 = vsub.f32 %v493, %v4353
      %4355 = vmatmul.f32.gmra.mxu0 %v4354
      %v4356 = vpop.f32.mrf.mxu0
      %v4357 = vadd.f32 %v4208, %v4356
      %v4358 = vand.u32 %v496, 4294901760
      %v4359 = vsub.f32 %v496, %v4358
      %4360 = vmatmul.f32.gmra.mxu0 %v4359
      %v4361 = vpop.f32.mrf.mxu0
      %v4362 = vadd.f32 %v4212, %v4361
      %v4363 = vand.u32 %v499, 4294901760
      %v4364 = vsub.f32 %v499, %v4363
      %4365 = vmatmul.f32.gmra.mxu0 %v4364
      %v4366 = vpop.f32.mrf.mxu0
      %v4367 = vadd.f32 %v4216, %v4366
      %v4368 = vand.u32 %v502, 4294901760
      %v4369 = vsub.f32 %v502, %v4368
      %4370 = vmatmul.f32.gmra.mxu0 %v4369
      %v4371 = vpop.f32.mrf.mxu0
      %v4372 = vadd.f32 %v4220, %v4371
      %v4373 = vand.u32 %v505, 4294901760
      %v4374 = vsub.f32 %v505, %v4373
      %4375 = vmatmul.f32.gmra.mxu0 %v4374
      %v4376 = vpop.f32.mrf.mxu0
      %v4377 = vadd.f32 %v4224, %v4376
      %v4378 = vand.u32 %v508, 4294901760
      %v4379 = vsub.f32 %v508, %v4378
      %4380 = vmatmul.f32.gmra.mxu0 %v4379
      %v4381 = vpop.f32.mrf.mxu0
      %v4382 = vadd.f32 %v4228, %v4381
      %v4383 = vand.u32 %v511, 4294901760
      %v4384 = vsub.f32 %v511, %v4383
      %4385 = vmatmul.f32.gmra.mxu0 %v4384
      %v4386 = vpop.f32.mrf.mxu0
      %v4387 = vadd.f32 %v4232, %v4386
      %v4388 = vand.u32 %v514, 4294901760
      %v4389 = vsub.f32 %v514, %v4388
      %4390 = vmatmul.f32.gmra.mxu0 %v4389
      %v4391 = vpop.f32.mrf.mxu0
      %v4392 = vadd.f32 %v4236, %v4391
      %v4393 = vand.u32 %v517, 4294901760
      %v4394 = vsub.f32 %v517, %v4393
      %4395 = vmatmul.f32.gmra.mxu0 %v4394
      %v4396 = vpop.f32.mrf.mxu0
      %v4397 = vadd.f32 %v4240, %v4396
      %v4398 = vand.u32 %v520, 4294901760
      %v4399 = vsub.f32 %v520, %v4398
      %4400 = vmatmul.f32.gmra.mxu0 %v4399
      %v4401 = vpop.f32.mrf.mxu0
      %v4402 = vadd.f32 %v4244, %v4401
      %v4403 = vand.u32 %v523, 4294901760
      %v4404 = vsub.f32 %v523, %v4403
      %4405 = vmatmul.f32.gmra.mxu0 %v4404
      %v4406 = vpop.f32.mrf.mxu0
      %v4407 = vadd.f32 %v4248, %v4406
      %v4408 = vand.u32 %v526, 4294901760
      %v4409 = vsub.f32 %v526, %v4408
      %4410 = vmatmul.f32.gmra.mxu0 %v4409
      %v4411 = vpop.f32.mrf.mxu0
      %v4412 = vadd.f32 %v4252, %v4411
      %v4413 = vand.u32 %v529, 4294901760
      %v4414 = vsub.f32 %v529, %v4413
      %4415 = vmatmul.f32.gmra.mxu0 %v4414
      %v4416 = vpop.f32.mrf.mxu0
      %v4417 = vadd.f32 %v4256, %v4416
      %v4418 = vand.u32 %v532, 4294901760
      %v4419 = vsub.f32 %v532, %v4418
      %4420 = vmatmul.f32.gmra.mxu0 %v4419
      %v4421 = vpop.f32.mrf.mxu0
      %v4422 = vadd.f32 %v4260, %v4421
      %v4423 = vand.u32 %v535, 4294901760
      %v4424 = vsub.f32 %v535, %v4423
      %4425 = vmatmul.f32.gmra.mxu0 %v4424
      %v4426 = vpop.f32.mrf.mxu0
      %v4427 = vadd.f32 %v4264, %v4426
      %v4428 = vand.u32 %v538, 4294901760
      %v4429 = vsub.f32 %v538, %v4428
      %4430 = vmatmul.f32.gmra.mxu0 %v4429
      %v4431 = vpop.f32.mrf.mxu0
      %v4432 = vadd.f32 %v4268, %v4431
      %v4433 = vand.u32 %v541, 4294901760
      %v4434 = vsub.f32 %v541, %v4433
      %4435 = vmatmul.f32.gmra.mxu0 %v4434
      %v4436 = vpop.f32.mrf.mxu0
      %v4437 = vadd.f32 %v4272, %v4436
      %v4438 = vand.u32 %v544, 4294901760
      %v4439 = vsub.f32 %v544, %v4438
      %4440 = vmatmul.f32.gmra.mxu0 %v4439
      %v4441 = vpop.f32.mrf.mxu0
      %v4442 = vadd.f32 %v4276, %v4441
      %v4443 = vand.u32 %v547, 4294901760
      %v4444 = vsub.f32 %v547, %v4443
      %4445 = vmatmul.f32.gmra.mxu0 %v4444
      %v4446 = vpop.f32.mrf.mxu0
      %v4447 = vadd.f32 %v4280, %v4446
      %v4448 = vand.u32 %v550, 4294901760
      %v4449 = vsub.f32 %v550, %v4448
      %4450 = vmatmul.f32.gmra.mxu0 %v4449
      %v4451 = vpop.f32.mrf.mxu0
      %v4452 = vadd.f32 %v4284, %v4451
      %v4453 = vand.u32 %v553, 4294901760
      %v4454 = vsub.f32 %v553, %v4453
      %4455 = vmatmul.f32.gmra.mxu0 %v4454
      %v4456 = vpop.f32.mrf.mxu0
      %v4457 = vadd.f32 %v4288, %v4456
      %v4458 = vand.u32 %v556, 4294901760
      %v4459 = vsub.f32 %v556, %v4458
      %4460 = vmatmul.f32.gmra.mxu0 %v4459
      %v4461 = vpop.f32.mrf.mxu0
      %v4462 = vadd.f32 %v4292, %v4461
      %v4463 = vand.u32 %v559, 4294901760
      %v4464 = vsub.f32 %v559, %v4463
      %4465 = vmatmul.f32.gmra.mxu0 %v4464
      %v4466 = vpop.f32.mrf.mxu0
      %v4467 = vadd.f32 %v4296, %v4466
      %v4468 = vand.u32 %v562, 4294901760
      %v4469 = vsub.f32 %v562, %v4468
      %4470 = vmatmul.f32.gmra.mxu0 %v4469
      %v4471 = vpop.f32.mrf.mxu0
      %v4472 = vadd.f32 %v4300, %v4471
      %v4473 = vand.u32 %v565, 4294901760
      %v4474 = vsub.f32 %v565, %v4473
      %4475 = vmatmul.f32.gmra.mxu0 %v4474
      %v4476 = vpop.f32.mrf.mxu0
      %v4477 = vadd.f32 %v4304, %v4476
      %v4478 = vand.u32 %v568, 4294901760
      %v4479 = vsub.f32 %v568, %v4478
      %4480 = vmatmul.f32.gmra.mxu0 %v4479
      %v4481 = vpop.f32.mrf.mxu0
      %v4482 = vadd.f32 %v4308, %v4481
      %v4483 = vand.u32 %v571, 4294901760
      %v4484 = vsub.f32 %v571, %v4483
      %4485 = vmatmul.f32.gmra.mxu0 %v4484
      %v4486 = vpop.f32.mrf.mxu0
      %v4487 = vadd.f32 %v4312, %v4486
      %v4488 = vand.u32 %v574, 4294901760
      %v4489 = vsub.f32 %v574, %v4488
      %4490 = vmatmul.f32.gmra.mxu0 %v4489
      %v4491 = vpop.f32.mrf.mxu0
      %v4492 = vadd.f32 %v4316, %v4491
      %v4493 = vand.u32 %v577, 4294901760
      %v4494 = vsub.f32 %v577, %v4493
      %4495 = vmatmul.f32.gmra.mxu0 %v4494
      %v4496 = vpop.f32.mrf.mxu0
      %v4497 = vadd.f32 %v4320, %v4496
      %v4498 = vand.u32 %v580, 4294901760
      %v4499 = vsub.f32 %v580, %v4498
      %4500 = vmatmul.f32.gmra.mxu0 %v4499
      %v4501 = vpop.f32.mrf.mxu0
      %v4502 = vadd.f32 %v4324, %v4501
      %v4503 = vand.u32 %v583, 4294901760
      %v4504 = vsub.f32 %v583, %v4503
      %4505 = vmatmul.f32.gmra.mxu0 %v4504
      %v4506 = vpop.f32.mrf.mxu0
      %v4507 = vadd.f32 %v4328, %v4506
      %4508 = vdwg.mxu0
      %4509 = vmatpush.msra.mxu0 0.0
      %4510 = vmatpush.msra.mxu0 0.0
      %4511 = vmatpush.msra.mxu0 0.0
      %4512 = vmatpush.msra.mxu0 0.0
      %4513 = vmatpush.msra.mxu0 0.0
      %4514 = vmatpush.msra.mxu0 0.0
      %4515 = vmatpush.msra.mxu0 0.0
      %4516 = vmatpush.msra.mxu0 0.0
      %4517 = vmatpush.msra.mxu0 0.0
      %4518 = vmatpush.msra.mxu0 0.0
      %4519 = vmatpush.msra.mxu0 0.0
      %4520 = vmatpush.msra.mxu0 0.0
      %4521 = vmatpush.msra.mxu0 0.0
      %4522 = vmatpush.msra.mxu0 0.0
      %4523 = vmatpush.msra.mxu0 0.0
      %v4524 = vand.u32 %v299, 4294901760
      %4525 = vmatpush.msra.mxu0 %v4524
      %v4526 = vand.u32 %v490, 4294901760
      %v4527 = vsub.f32 %v490, %v4526
      %v4528 = vand.u32 %v4527, 4294901760
      %4529 = vmatmul.f32.gmra.mxu0 %v4528
      %v4530 = vpop.f32.mrf.mxu0
      %v4531 = vadd.f32 %v4352, %v4530
      %v4532 = vand.u32 %v493, 4294901760
      %v4533 = vsub.f32 %v493, %v4532
      %v4534 = vand.u32 %v4533, 4294901760
      %4535 = vmatmul.f32.gmra.mxu0 %v4534
      %v4536 = vpop.f32.mrf.mxu0
      %v4537 = vadd.f32 %v4357, %v4536
      %v4538 = vand.u32 %v496, 4294901760
      %v4539 = vsub.f32 %v496, %v4538
      %v4540 = vand.u32 %v4539, 4294901760
      %4541 = vmatmul.f32.gmra.mxu0 %v4540
      %v4542 = vpop.f32.mrf.mxu0
      %v4543 = vadd.f32 %v4362, %v4542
      %v4544 = vand.u32 %v499, 4294901760
      %v4545 = vsub.f32 %v499, %v4544
      %v4546 = vand.u32 %v4545, 4294901760
      %4547 = vmatmul.f32.gmra.mxu0 %v4546
      %v4548 = vpop.f32.mrf.mxu0
      %v4549 = vadd.f32 %v4367, %v4548
      %v4550 = vand.u32 %v502, 4294901760
      %v4551 = vsub.f32 %v502, %v4550
      %v4552 = vand.u32 %v4551, 4294901760
      %4553 = vmatmul.f32.gmra.mxu0 %v4552
      %v4554 = vpop.f32.mrf.mxu0
      %v4555 = vadd.f32 %v4372, %v4554
      %v4556 = vand.u32 %v505, 4294901760
      %v4557 = vsub.f32 %v505, %v4556
      %v4558 = vand.u32 %v4557, 4294901760
      %4559 = vmatmul.f32.gmra.mxu0 %v4558
      %v4560 = vpop.f32.mrf.mxu0
      %v4561 = vadd.f32 %v4377, %v4560
      %v4562 = vand.u32 %v508, 4294901760
      %v4563 = vsub.f32 %v508, %v4562
      %v4564 = vand.u32 %v4563, 4294901760
      %4565 = vmatmul.f32.gmra.mxu0 %v4564
      %v4566 = vpop.f32.mrf.mxu0
      %v4567 = vadd.f32 %v4382, %v4566
      %v4568 = vand.u32 %v511, 4294901760
      %v4569 = vsub.f32 %v511, %v4568
      %v4570 = vand.u32 %v4569, 4294901760
      %4571 = vmatmul.f32.gmra.mxu0 %v4570
      %v4572 = vpop.f32.mrf.mxu0
      %v4573 = vadd.f32 %v4387, %v4572
      %v4574 = vand.u32 %v514, 4294901760
      %v4575 = vsub.f32 %v514, %v4574
      %v4576 = vand.u32 %v4575, 4294901760
      %4577 = vmatmul.f32.gmra.mxu0 %v4576
      %v4578 = vpop.f32.mrf.mxu0
      %v4579 = vadd.f32 %v4392, %v4578
      %v4580 = vand.u32 %v517, 4294901760
      %v4581 = vsub.f32 %v517, %v4580
      %v4582 = vand.u32 %v4581, 4294901760
      %4583 = vmatmul.f32.gmra.mxu0 %v4582
      %v4584 = vpop.f32.mrf.mxu0
      %v4585 = vadd.f32 %v4397, %v4584
      %v4586 = vand.u32 %v520, 4294901760
      %v4587 = vsub.f32 %v520, %v4586
      %v4588 = vand.u32 %v4587, 4294901760
      %4589 = vmatmul.f32.gmra.mxu0 %v4588
      %v4590 = vpop.f32.mrf.mxu0
      %v4591 = vadd.f32 %v4402, %v4590
      %v4592 = vand.u32 %v523, 4294901760
      %v4593 = vsub.f32 %v523, %v4592
      %v4594 = vand.u32 %v4593, 4294901760
      %4595 = vmatmul.f32.gmra.mxu0 %v4594
      %v4596 = vpop.f32.mrf.mxu0
      %v4597 = vadd.f32 %v4407, %v4596
      %v4598 = vand.u32 %v526, 4294901760
      %v4599 = vsub.f32 %v526, %v4598
      %v4600 = vand.u32 %v4599, 4294901760
      %4601 = vmatmul.f32.gmra.mxu0 %v4600
      %v4602 = vpop.f32.mrf.mxu0
      %v4603 = vadd.f32 %v4412, %v4602
      %v4604 = vand.u32 %v529, 4294901760
      %v4605 = vsub.f32 %v529, %v4604
      %v4606 = vand.u32 %v4605, 4294901760
      %4607 = vmatmul.f32.gmra.mxu0 %v4606
      %v4608 = vpop.f32.mrf.mxu0
      %v4609 = vadd.f32 %v4417, %v4608
      %v4610 = vand.u32 %v532, 4294901760
      %v4611 = vsub.f32 %v532, %v4610
      %v4612 = vand.u32 %v4611, 4294901760
      %4613 = vmatmul.f32.gmra.mxu0 %v4612
      %v4614 = vpop.f32.mrf.mxu0
      %v4615 = vadd.f32 %v4422, %v4614
      %v4616 = vand.u32 %v535, 4294901760
      %v4617 = vsub.f32 %v535, %v4616
      %v4618 = vand.u32 %v4617, 4294901760
      %4619 = vmatmul.f32.gmra.mxu0 %v4618
      %v4620 = vpop.f32.mrf.mxu0
      %v4621 = vadd.f32 %v4427, %v4620
      %v4622 = vand.u32 %v538, 4294901760
      %v4623 = vsub.f32 %v538, %v4622
      %v4624 = vand.u32 %v4623, 4294901760
      %4625 = vmatmul.f32.gmra.mxu0 %v4624
      %v4626 = vpop.f32.mrf.mxu0
      %v4627 = vadd.f32 %v4432, %v4626
      %v4628 = vand.u32 %v541, 4294901760
      %v4629 = vsub.f32 %v541, %v4628
      %v4630 = vand.u32 %v4629, 4294901760
      %4631 = vmatmul.f32.gmra.mxu0 %v4630
      %v4632 = vpop.f32.mrf.mxu0
      %v4633 = vadd.f32 %v4437, %v4632
      %v4634 = vand.u32 %v544, 4294901760
      %v4635 = vsub.f32 %v544, %v4634
      %v4636 = vand.u32 %v4635, 4294901760
      %4637 = vmatmul.f32.gmra.mxu0 %v4636
      %v4638 = vpop.f32.mrf.mxu0
      %v4639 = vadd.f32 %v4442, %v4638
      %v4640 = vand.u32 %v547, 4294901760
      %v4641 = vsub.f32 %v547, %v4640
      %v4642 = vand.u32 %v4641, 4294901760
      %4643 = vmatmul.f32.gmra.mxu0 %v4642
      %v4644 = vpop.f32.mrf.mxu0
      %v4645 = vadd.f32 %v4447, %v4644
      %v4646 = vand.u32 %v550, 4294901760
      %v4647 = vsub.f32 %v550, %v4646
      %v4648 = vand.u32 %v4647, 4294901760
      %4649 = vmatmul.f32.gmra.mxu0 %v4648
      %v4650 = vpop.f32.mrf.mxu0
      %v4651 = vadd.f32 %v4452, %v4650
      %v4652 = vand.u32 %v553, 4294901760
      %v4653 = vsub.f32 %v553, %v4652
      %v4654 = vand.u32 %v4653, 4294901760
      %4655 = vmatmul.f32.gmra.mxu0 %v4654
      %v4656 = vpop.f32.mrf.mxu0
      %v4657 = vadd.f32 %v4457, %v4656
      %v4658 = vand.u32 %v556, 4294901760
      %v4659 = vsub.f32 %v556, %v4658
      %v4660 = vand.u32 %v4659, 4294901760
      %4661 = vmatmul.f32.gmra.mxu0 %v4660
      %v4662 = vpop.f32.mrf.mxu0
      %v4663 = vadd.f32 %v4462, %v4662
      %v4664 = vand.u32 %v559, 4294901760
      %v4665 = vsub.f32 %v559, %v4664
      %v4666 = vand.u32 %v4665, 4294901760
      %4667 = vmatmul.f32.gmra.mxu0 %v4666
      %v4668 = vpop.f32.mrf.mxu0
      %v4669 = vadd.f32 %v4467, %v4668
      %v4670 = vand.u32 %v562, 4294901760
      %v4671 = vsub.f32 %v562, %v4670
      %v4672 = vand.u32 %v4671, 4294901760
      %4673 = vmatmul.f32.gmra.mxu0 %v4672
      %v4674 = vpop.f32.mrf.mxu0
      %v4675 = vadd.f32 %v4472, %v4674
      %v4676 = vand.u32 %v565, 4294901760
      %v4677 = vsub.f32 %v565, %v4676
      %v4678 = vand.u32 %v4677, 4294901760
      %4679 = vmatmul.f32.gmra.mxu0 %v4678
      %v4680 = vpop.f32.mrf.mxu0
      %v4681 = vadd.f32 %v4477, %v4680
      %v4682 = vand.u32 %v568, 4294901760
      %v4683 = vsub.f32 %v568, %v4682
      %v4684 = vand.u32 %v4683, 4294901760
      %4685 = vmatmul.f32.gmra.mxu0 %v4684
      %v4686 = vpop.f32.mrf.mxu0
      %v4687 = vadd.f32 %v4482, %v4686
      %v4688 = vand.u32 %v571, 4294901760
      %v4689 = vsub.f32 %v571, %v4688
      %v4690 = vand.u32 %v4689, 4294901760
      %4691 = vmatmul.f32.gmra.mxu0 %v4690
      %v4692 = vpop.f32.mrf.mxu0
      %v4693 = vadd.f32 %v4487, %v4692
      %v4694 = vand.u32 %v574, 4294901760
      %v4695 = vsub.f32 %v574, %v4694
      %v4696 = vand.u32 %v4695, 4294901760
      %4697 = vmatmul.f32.gmra.mxu0 %v4696
      %v4698 = vpop.f32.mrf.mxu0
      %v4699 = vadd.f32 %v4492, %v4698
      %v4700 = vand.u32 %v577, 4294901760
      %v4701 = vsub.f32 %v577, %v4700
      %v4702 = vand.u32 %v4701, 4294901760
      %4703 = vmatmul.f32.gmra.mxu0 %v4702
      %v4704 = vpop.f32.mrf.mxu0
      %v4705 = vadd.f32 %v4497, %v4704
      %v4706 = vand.u32 %v580, 4294901760
      %v4707 = vsub.f32 %v580, %v4706
      %v4708 = vand.u32 %v4707, 4294901760
      %4709 = vmatmul.f32.gmra.mxu0 %v4708
      %v4710 = vpop.f32.mrf.mxu0
      %v4711 = vadd.f32 %v4502, %v4710
      %v4712 = vand.u32 %v583, 4294901760
      %v4713 = vsub.f32 %v583, %v4712
      %v4714 = vand.u32 %v4713, 4294901760
      %4715 = vmatmul.f32.gmra.mxu0 %v4714
      %v4716 = vpop.f32.mrf.mxu0
      %v4717 = vadd.f32 %v4507, %v4716
      %4718 = vdwg.mxu0
      %4719 = vmatpush.msra.mxu0 0.0
      %4720 = vmatpush.msra.mxu0 0.0
      %4721 = vmatpush.msra.mxu0 0.0
      %4722 = vmatpush.msra.mxu0 0.0
      %4723 = vmatpush.msra.mxu0 0.0
      %4724 = vmatpush.msra.mxu0 0.0
      %4725 = vmatpush.msra.mxu0 0.0
      %4726 = vmatpush.msra.mxu0 0.0
      %4727 = vmatpush.msra.mxu0 0.0
      %4728 = vmatpush.msra.mxu0 0.0
      %4729 = vmatpush.msra.mxu0 0.0
      %4730 = vmatpush.msra.mxu0 0.0
      %4731 = vmatpush.msra.mxu0 0.0
      %4732 = vmatpush.msra.mxu0 0.0
      %4733 = vmatpush.msra.mxu0 0.0
      %v4734 = vand.u32 %v299, 4294901760
      %v4735 = vsub.f32 %v299, %v4734
      %v4736 = vand.u32 %v4735, 4294901760
      %4737 = vmatpush.msra.mxu0 %v4736
      %v4738 = vand.u32 %v490, 4294901760
      %4739 = vmatmul.f32.gmra.mxu0 %v4738
      %v4740 = vpop.f32.mrf.mxu0
      %v4741 = vadd.f32 %v4531, %v4740
      %v4742 = vand.u32 %v493, 4294901760
      %4743 = vmatmul.f32.gmra.mxu0 %v4742
      %v4744 = vpop.f32.mrf.mxu0
      %v4745 = vadd.f32 %v4537, %v4744
      %v4746 = vand.u32 %v496, 4294901760
      %4747 = vmatmul.f32.gmra.mxu0 %v4746
      %v4748 = vpop.f32.mrf.mxu0
      %v4749 = vadd.f32 %v4543, %v4748
      %v4750 = vand.u32 %v499, 4294901760
      %4751 = vmatmul.f32.gmra.mxu0 %v4750
      %v4752 = vpop.f32.mrf.mxu0
      %v4753 = vadd.f32 %v4549, %v4752
      %v4754 = vand.u32 %v502, 4294901760
      %4755 = vmatmul.f32.gmra.mxu0 %v4754
      %v4756 = vpop.f32.mrf.mxu0
      %v4757 = vadd.f32 %v4555, %v4756
      %v4758 = vand.u32 %v505, 4294901760
      %4759 = vmatmul.f32.gmra.mxu0 %v4758
      %v4760 = vpop.f32.mrf.mxu0
      %v4761 = vadd.f32 %v4561, %v4760
      %v4762 = vand.u32 %v508, 4294901760
      %4763 = vmatmul.f32.gmra.mxu0 %v4762
      %v4764 = vpop.f32.mrf.mxu0
      %v4765 = vadd.f32 %v4567, %v4764
      %v4766 = vand.u32 %v511, 4294901760
      %4767 = vmatmul.f32.gmra.mxu0 %v4766
      %v4768 = vpop.f32.mrf.mxu0
      %v4769 = vadd.f32 %v4573, %v4768
      %v4770 = vand.u32 %v514, 4294901760
      %4771 = vmatmul.f32.gmra.mxu0 %v4770
      %v4772 = vpop.f32.mrf.mxu0
      %v4773 = vadd.f32 %v4579, %v4772
      %v4774 = vand.u32 %v517, 4294901760
      %4775 = vmatmul.f32.gmra.mxu0 %v4774
      %v4776 = vpop.f32.mrf.mxu0
      %v4777 = vadd.f32 %v4585, %v4776
      %v4778 = vand.u32 %v520, 4294901760
      %4779 = vmatmul.f32.gmra.mxu0 %v4778
      %v4780 = vpop.f32.mrf.mxu0
      %v4781 = vadd.f32 %v4591, %v4780
      %v4782 = vand.u32 %v523, 4294901760
      %4783 = vmatmul.f32.gmra.mxu0 %v4782
      %v4784 = vpop.f32.mrf.mxu0
      %v4785 = vadd.f32 %v4597, %v4784
      %v4786 = vand.u32 %v526, 4294901760
      %4787 = vmatmul.f32.gmra.mxu0 %v4786
      %v4788 = vpop.f32.mrf.mxu0
      %v4789 = vadd.f32 %v4603, %v4788
      %v4790 = vand.u32 %v529, 4294901760
      %4791 = vmatmul.f32.gmra.mxu0 %v4790
      %v4792 = vpop.f32.mrf.mxu0
      %v4793 = vadd.f32 %v4609, %v4792
      %v4794 = vand.u32 %v532, 4294901760
      %4795 = vmatmul.f32.gmra.mxu0 %v4794
      %v4796 = vpop.f32.mrf.mxu0
      %v4797 = vadd.f32 %v4615, %v4796
      %v4798 = vand.u32 %v535, 4294901760
      %4799 = vmatmul.f32.gmra.mxu0 %v4798
      %v4800 = vpop.f32.mrf.mxu0
      %v4801 = vadd.f32 %v4621, %v4800
      %v4802 = vand.u32 %v538, 4294901760
      %4803 = vmatmul.f32.gmra.mxu0 %v4802
      %v4804 = vpop.f32.mrf.mxu0
      %v4805 = vadd.f32 %v4627, %v4804
      %v4806 = vand.u32 %v541, 4294901760
      %4807 = vmatmul.f32.gmra.mxu0 %v4806
      %v4808 = vpop.f32.mrf.mxu0
      %v4809 = vadd.f32 %v4633, %v4808
      %v4810 = vand.u32 %v544, 4294901760
      %4811 = vmatmul.f32.gmra.mxu0 %v4810
      %v4812 = vpop.f32.mrf.mxu0
      %v4813 = vadd.f32 %v4639, %v4812
      %v4814 = vand.u32 %v547, 4294901760
      %4815 = vmatmul.f32.gmra.mxu0 %v4814
      %v4816 = vpop.f32.mrf.mxu0
      %v4817 = vadd.f32 %v4645, %v4816
      %v4818 = vand.u32 %v550, 4294901760
      %4819 = vmatmul.f32.gmra.mxu0 %v4818
      %v4820 = vpop.f32.mrf.mxu0
      %v4821 = vadd.f32 %v4651, %v4820
      %v4822 = vand.u32 %v553, 4294901760
      %4823 = vmatmul.f32.gmra.mxu0 %v4822
      %v4824 = vpop.f32.mrf.mxu0
      %v4825 = vadd.f32 %v4657, %v4824
      %v4826 = vand.u32 %v556, 4294901760
      %4827 = vmatmul.f32.gmra.mxu0 %v4826
      %v4828 = vpop.f32.mrf.mxu0
      %v4829 = vadd.f32 %v4663, %v4828
      %v4830 = vand.u32 %v559, 4294901760
      %4831 = vmatmul.f32.gmra.mxu0 %v4830
      %v4832 = vpop.f32.mrf.mxu0
      %v4833 = vadd.f32 %v4669, %v4832
      %v4834 = vand.u32 %v562, 4294901760
      %4835 = vmatmul.f32.gmra.mxu0 %v4834
      %v4836 = vpop.f32.mrf.mxu0
      %v4837 = vadd.f32 %v4675, %v4836
      %v4838 = vand.u32 %v565, 4294901760
      %4839 = vmatmul.f32.gmra.mxu0 %v4838
      %v4840 = vpop.f32.mrf.mxu0
      %v4841 = vadd.f32 %v4681, %v4840
      %v4842 = vand.u32 %v568, 4294901760
      %4843 = vmatmul.f32.gmra.mxu0 %v4842
      %v4844 = vpop.f32.mrf.mxu0
      %v4845 = vadd.f32 %v4687, %v4844
      %v4846 = vand.u32 %v571, 4294901760
      %4847 = vmatmul.f32.gmra.mxu0 %v4846
      %v4848 = vpop.f32.mrf.mxu0
      %v4849 = vadd.f32 %v4693, %v4848
      %v4850 = vand.u32 %v574, 4294901760
      %4851 = vmatmul.f32.gmra.mxu0 %v4850
      %v4852 = vpop.f32.mrf.mxu0
      %v4853 = vadd.f32 %v4699, %v4852
      %v4854 = vand.u32 %v577, 4294901760
      %4855 = vmatmul.f32.gmra.mxu0 %v4854
      %v4856 = vpop.f32.mrf.mxu0
      %v4857 = vadd.f32 %v4705, %v4856
      %v4858 = vand.u32 %v580, 4294901760
      %4859 = vmatmul.f32.gmra.mxu0 %v4858
      %v4860 = vpop.f32.mrf.mxu0
      %v4861 = vadd.f32 %v4711, %v4860
      %v4862 = vand.u32 %v583, 4294901760
      %4863 = vmatmul.f32.gmra.mxu0 %v4862
      %v4864 = vpop.f32.mrf.mxu0
      %v4865 = vadd.f32 %v4717, %v4864
      %4866 = vdwg.mxu0
      %4867 = vmatpush.msra.mxu0 0.0
      %4868 = vmatpush.msra.mxu0 0.0
      %4869 = vmatpush.msra.mxu0 0.0
      %4870 = vmatpush.msra.mxu0 0.0
      %4871 = vmatpush.msra.mxu0 0.0
      %4872 = vmatpush.msra.mxu0 0.0
      %4873 = vmatpush.msra.mxu0 0.0
      %4874 = vmatpush.msra.mxu0 0.0
      %4875 = vmatpush.msra.mxu0 0.0
      %4876 = vmatpush.msra.mxu0 0.0
      %4877 = vmatpush.msra.mxu0 0.0
      %4878 = vmatpush.msra.mxu0 0.0
      %4879 = vmatpush.msra.mxu0 0.0
      %4880 = vmatpush.msra.mxu0 0.0
      %4881 = vmatpush.msra.mxu0 0.0
      %v4882 = vand.u32 %v299, 4294901760
      %4883 = vmatpush.msra.mxu0 %v4882
      %v4884 = vand.u32 %v490, 4294901760
      %4885 = vmatmul.f32.gmra.mxu0 %v4884
      %v4886 = vpop.f32.mrf.mxu0
      %v4887 = vadd.f32 %v4741, %v4886
      %v4888 = vand.u32 %v493, 4294901760
      %4889 = vmatmul.f32.gmra.mxu0 %v4888
      %v4890 = vpop.f32.mrf.mxu0
      %v4891 = vadd.f32 %v4745, %v4890
      %v4892 = vand.u32 %v496, 4294901760
      %4893 = vmatmul.f32.gmra.mxu0 %v4892
      %v4894 = vpop.f32.mrf.mxu0
      %v4895 = vadd.f32 %v4749, %v4894
      %v4896 = vand.u32 %v499, 4294901760
      %4897 = vmatmul.f32.gmra.mxu0 %v4896
      %v4898 = vpop.f32.mrf.mxu0
      %v4899 = vadd.f32 %v4753, %v4898
      %v4900 = vand.u32 %v502, 4294901760
      %4901 = vmatmul.f32.gmra.mxu0 %v4900
      %v4902 = vpop.f32.mrf.mxu0
      %v4903 = vadd.f32 %v4757, %v4902
      %v4904 = vand.u32 %v505, 4294901760
      %4905 = vmatmul.f32.gmra.mxu0 %v4904
      %v4906 = vpop.f32.mrf.mxu0
      %v4907 = vadd.f32 %v4761, %v4906
      %v4908 = vand.u32 %v508, 4294901760
      %4909 = vmatmul.f32.gmra.mxu0 %v4908
      %v4910 = vpop.f32.mrf.mxu0
      %v4911 = vadd.f32 %v4765, %v4910
      %v4912 = vand.u32 %v511, 4294901760
      %4913 = vmatmul.f32.gmra.mxu0 %v4912
      %v4914 = vpop.f32.mrf.mxu0
      %v4915 = vadd.f32 %v4769, %v4914
      %v4916 = vand.u32 %v514, 4294901760
      %4917 = vmatmul.f32.gmra.mxu0 %v4916
      %v4918 = vpop.f32.mrf.mxu0
      %v4919 = vadd.f32 %v4773, %v4918
      %v4920 = vand.u32 %v517, 4294901760
      %4921 = vmatmul.f32.gmra.mxu0 %v4920
      %v4922 = vpop.f32.mrf.mxu0
      %v4923 = vadd.f32 %v4777, %v4922
      %v4924 = vand.u32 %v520, 4294901760
      %4925 = vmatmul.f32.gmra.mxu0 %v4924
      %v4926 = vpop.f32.mrf.mxu0
      %v4927 = vadd.f32 %v4781, %v4926
      %v4928 = vand.u32 %v523, 4294901760
      %4929 = vmatmul.f32.gmra.mxu0 %v4928
      %v4930 = vpop.f32.mrf.mxu0
      %v4931 = vadd.f32 %v4785, %v4930
      %v4932 = vand.u32 %v526, 4294901760
      %4933 = vmatmul.f32.gmra.mxu0 %v4932
      %v4934 = vpop.f32.mrf.mxu0
      %v4935 = vadd.f32 %v4789, %v4934
      %v4936 = vand.u32 %v529, 4294901760
      %4937 = vmatmul.f32.gmra.mxu0 %v4936
      %v4938 = vpop.f32.mrf.mxu0
      %v4939 = vadd.f32 %v4793, %v4938
      %v4940 = vand.u32 %v532, 4294901760
      %4941 = vmatmul.f32.gmra.mxu0 %v4940
      %v4942 = vpop.f32.mrf.mxu0
      %v4943 = vadd.f32 %v4797, %v4942
      %v4944 = vand.u32 %v535, 4294901760
      %4945 = vmatmul.f32.gmra.mxu0 %v4944
      %v4946 = vpop.f32.mrf.mxu0
      %v4947 = vadd.f32 %v4801, %v4946
      %v4948 = vand.u32 %v538, 4294901760
      %4949 = vmatmul.f32.gmra.mxu0 %v4948
      %v4950 = vpop.f32.mrf.mxu0
      %v4951 = vadd.f32 %v4805, %v4950
      %v4952 = vand.u32 %v541, 4294901760
      %4953 = vmatmul.f32.gmra.mxu0 %v4952
      %v4954 = vpop.f32.mrf.mxu0
      %v4955 = vadd.f32 %v4809, %v4954
      %v4956 = vand.u32 %v544, 4294901760
      %4957 = vmatmul.f32.gmra.mxu0 %v4956
      %v4958 = vpop.f32.mrf.mxu0
      %v4959 = vadd.f32 %v4813, %v4958
      %v4960 = vand.u32 %v547, 4294901760
      %4961 = vmatmul.f32.gmra.mxu0 %v4960
      %v4962 = vpop.f32.mrf.mxu0
      %v4963 = vadd.f32 %v4817, %v4962
      %v4964 = vand.u32 %v550, 4294901760
      %4965 = vmatmul.f32.gmra.mxu0 %v4964
      %v4966 = vpop.f32.mrf.mxu0
      %v4967 = vadd.f32 %v4821, %v4966
      %v4968 = vand.u32 %v553, 4294901760
      %4969 = vmatmul.f32.gmra.mxu0 %v4968
      %v4970 = vpop.f32.mrf.mxu0
      %v4971 = vadd.f32 %v4825, %v4970
      %v4972 = vand.u32 %v556, 4294901760
      %4973 = vmatmul.f32.gmra.mxu0 %v4972
      %v4974 = vpop.f32.mrf.mxu0
      %v4975 = vadd.f32 %v4829, %v4974
      %v4976 = vand.u32 %v559, 4294901760
      %4977 = vmatmul.f32.gmra.mxu0 %v4976
      %v4978 = vpop.f32.mrf.mxu0
      %v4979 = vadd.f32 %v4833, %v4978
      %v4980 = vand.u32 %v562, 4294901760
      %4981 = vmatmul.f32.gmra.mxu0 %v4980
      %v4982 = vpop.f32.mrf.mxu0
      %v4983 = vadd.f32 %v4837, %v4982
      %v4984 = vand.u32 %v565, 4294901760
      %4985 = vmatmul.f32.gmra.mxu0 %v4984
      %v4986 = vpop.f32.mrf.mxu0
      %v4987 = vadd.f32 %v4841, %v4986
      %v4988 = vand.u32 %v568, 4294901760
      %4989 = vmatmul.f32.gmra.mxu0 %v4988
      %v4990 = vpop.f32.mrf.mxu0
      %v4991 = vadd.f32 %v4845, %v4990
      %v4992 = vand.u32 %v571, 4294901760
      %4993 = vmatmul.f32.gmra.mxu0 %v4992
      %v4994 = vpop.f32.mrf.mxu0
      %v4995 = vadd.f32 %v4849, %v4994
      %v4996 = vand.u32 %v574, 4294901760
      %4997 = vmatmul.f32.gmra.mxu0 %v4996
      %v4998 = vpop.f32.mrf.mxu0
      %v4999 = vadd.f32 %v4853, %v4998
      %v5000 = vand.u32 %v577, 4294901760
      %5001 = vmatmul.f32.gmra.mxu0 %v5000
      %v5002 = vpop.f32.mrf.mxu0
      %v5003 = vadd.f32 %v4857, %v5002
      %v5004 = vand.u32 %v580, 4294901760
      %5005 = vmatmul.f32.gmra.mxu0 %v5004
      %v5006 = vpop.f32.mrf.mxu0
      %v5007 = vadd.f32 %v4861, %v5006
      %v5008 = vand.u32 %v583, 4294901760
      %5009 = vmatmul.f32.gmra.mxu0 %v5008
      %v5010 = vpop.f32.mrf.mxu0
      %v5011 = vadd.f32 %v4865, %v5010
      %5012 = vdwg.mxu0
      %v5013 = vadd.f32 %v1566, %v438
      %v5014 = vadd.f32 %v2673, %v444
      %v5015 = vadd.f32 %v3780, %v450
      %v5016 = vadd.f32 %v4887, %v456
      %v5017 = vadd.f32 %v1570, %v438
      %v5018 = vadd.f32 %v2677, %v444
      %v5019 = vadd.f32 %v3784, %v450
      %v5020 = vadd.f32 %v4891, %v456
      %v5021 = vadd.f32 %v1574, %v438
      %v5022 = vadd.f32 %v2681, %v444
      %v5023 = vadd.f32 %v3788, %v450
      %v5024 = vadd.f32 %v4895, %v456
      %v5025 = vadd.f32 %v1578, %v438
      %v5026 = vadd.f32 %v2685, %v444
      %v5027 = vadd.f32 %v3792, %v450
      %v5028 = vadd.f32 %v4899, %v456
      %v5029 = vadd.f32 %v1582, %v438
      %v5030 = vadd.f32 %v2689, %v444
      %v5031 = vadd.f32 %v3796, %v450
      %v5032 = vadd.f32 %v4903, %v456
      %v5033 = vadd.f32 %v1586, %v438
      %v5034 = vadd.f32 %v2693, %v444
      %v5035 = vadd.f32 %v3800, %v450
      %v5036 = vadd.f32 %v4907, %v456
      %v5037 = vadd.f32 %v1590, %v438
      %v5038 = vadd.f32 %v2697, %v444
      %v5039 = vadd.f32 %v3804, %v450
      %v5040 = vadd.f32 %v4911, %v456
      %v5041 = vadd.f32 %v1594, %v438
      %v5042 = vadd.f32 %v2701, %v444
      %v5043 = vadd.f32 %v3808, %v450
      %v5044 = vadd.f32 %v4915, %v456
      %v5045 = vadd.f32 %v1598, %v438
      %v5046 = vadd.f32 %v2705, %v444
      %v5047 = vadd.f32 %v3812, %v450
      %v5048 = vadd.f32 %v4919, %v456
      %v5049 = vadd.f32 %v1602, %v438
      %v5050 = vadd.f32 %v2709, %v444
      %v5051 = vadd.f32 %v3816, %v450
      %v5052 = vadd.f32 %v4923, %v456
      %v5053 = vadd.f32 %v1606, %v438
      %v5054 = vadd.f32 %v2713, %v444
      %v5055 = vadd.f32 %v3820, %v450
      %v5056 = vadd.f32 %v4927, %v456
      %v5057 = vadd.f32 %v1610, %v438
      %v5058 = vadd.f32 %v2717, %v444
      %v5059 = vadd.f32 %v3824, %v450
      %v5060 = vadd.f32 %v4931, %v456
      %v5061 = vadd.f32 %v1614, %v438
      %v5062 = vadd.f32 %v2721, %v444
      %v5063 = vadd.f32 %v3828, %v450
      %v5064 = vadd.f32 %v4935, %v456
      %v5065 = vadd.f32 %v1618, %v438
      %v5066 = vadd.f32 %v2725, %v444
      %v5067 = vadd.f32 %v3832, %v450
      %v5068 = vadd.f32 %v4939, %v456
      %v5069 = vadd.f32 %v1622, %v438
      %v5070 = vadd.f32 %v2729, %v444
      %v5071 = vadd.f32 %v3836, %v450
      %v5072 = vadd.f32 %v4943, %v456
      %v5073 = vadd.f32 %v1626, %v438
      %v5074 = vadd.f32 %v2733, %v444
      %v5075 = vadd.f32 %v3840, %v450
      %v5076 = vadd.f32 %v4947, %v456
      %v5077 = vadd.f32 %v1630, %v438
      %v5078 = vadd.f32 %v2737, %v444
      %v5079 = vadd.f32 %v3844, %v450
      %v5080 = vadd.f32 %v4951, %v456
      %v5081 = vadd.f32 %v1634, %v438
      %v5082 = vadd.f32 %v2741, %v444
      %v5083 = vadd.f32 %v3848, %v450
      %v5084 = vadd.f32 %v4955, %v456
      %v5085 = vadd.f32 %v1638, %v438
      %v5086 = vadd.f32 %v2745, %v444
      %v5087 = vadd.f32 %v3852, %v450
      %v5088 = vadd.f32 %v4959, %v456
      %v5089 = vadd.f32 %v1642, %v438
      %v5090 = vadd.f32 %v2749, %v444
      %v5091 = vadd.f32 %v3856, %v450
      %v5092 = vadd.f32 %v4963, %v456
      %v5093 = vadd.f32 %v1646, %v438
      %v5094 = vadd.f32 %v2753, %v444
      %v5095 = vadd.f32 %v3860, %v450
      %v5096 = vadd.f32 %v4967, %v456
      %v5097 = vadd.f32 %v1650, %v438
      %v5098 = vadd.f32 %v2757, %v444
      %v5099 = vadd.f32 %v3864, %v450
      %v5100 = vadd.f32 %v4971, %v456
      %v5101 = vadd.f32 %v1654, %v438
      %v5102 = vadd.f32 %v2761, %v444
      %v5103 = vadd.f32 %v3868, %v450
      %v5104 = vadd.f32 %v4975, %v456
      %v5105 = vadd.f32 %v1658, %v438
      %v5106 = vadd.f32 %v2765, %v444
      %v5107 = vadd.f32 %v3872, %v450
      %v5108 = vadd.f32 %v4979, %v456
      %v5109 = vadd.f32 %v1662, %v438
      %v5110 = vadd.f32 %v2769, %v444
      %v5111 = vadd.f32 %v3876, %v450
      %v5112 = vadd.f32 %v4983, %v456
      %v5113 = vadd.f32 %v1666, %v438
      %v5114 = vadd.f32 %v2773, %v444
      %v5115 = vadd.f32 %v3880, %v450
      %v5116 = vadd.f32 %v4987, %v456
      %v5117 = vadd.f32 %v1670, %v438
      %v5118 = vadd.f32 %v2777, %v444
      %v5119 = vadd.f32 %v3884, %v450
      %v5120 = vadd.f32 %v4991, %v456
      %v5121 = vadd.f32 %v1674, %v438
      %v5122 = vadd.f32 %v2781, %v444
      %v5123 = vadd.f32 %v3888, %v450
      %v5124 = vadd.f32 %v4995, %v456
      %v5125 = vadd.f32 %v1678, %v438
      %v5126 = vadd.f32 %v2785, %v444
      %v5127 = vadd.f32 %v3892, %v450
      %v5128 = vadd.f32 %v4999, %v456
      %v5129 = vadd.f32 %v1682, %v438
      %v5130 = vadd.f32 %v2789, %v444
      %v5131 = vadd.f32 %v3896, %v450
      %v5132 = vadd.f32 %v5003, %v456
      %v5133 = vadd.f32 %v1686, %v438
      %v5134 = vadd.f32 %v2793, %v444
      %v5135 = vadd.f32 %v3900, %v450
      %v5136 = vadd.f32 %v5007, %v456
      %v5137 = vadd.f32 %v1690, %v438
      %v5138 = vadd.f32 %v2797, %v444
      %v5139 = vadd.f32 %v3904, %v450
      %v5140 = vadd.f32 %v5011, %v456
      %v5141 = vmax.f32 %v5013, 0.0
      %v5142 = vmax.f32 %v5014, 0.0
      %v5143 = vmax.f32 %v5015, 0.0
      %v5144 = vmax.f32 %v5016, 0.0
      %v5145 = vmax.f32 %v5017, 0.0
      %v5146 = vmax.f32 %v5018, 0.0
      %v5147 = vmax.f32 %v5019, 0.0
      %v5148 = vmax.f32 %v5020, 0.0
      %v5149 = vmax.f32 %v5021, 0.0
      %v5150 = vmax.f32 %v5022, 0.0
      %v5151 = vmax.f32 %v5023, 0.0
      %v5152 = vmax.f32 %v5024, 0.0
      %v5153 = vmax.f32 %v5025, 0.0
      %v5154 = vmax.f32 %v5026, 0.0
      %v5155 = vmax.f32 %v5027, 0.0
      %v5156 = vmax.f32 %v5028, 0.0
      %v5157 = vmax.f32 %v5029, 0.0
      %v5158 = vmax.f32 %v5030, 0.0
      %v5159 = vmax.f32 %v5031, 0.0
      %v5160 = vmax.f32 %v5032, 0.0
      %v5161 = vmax.f32 %v5033, 0.0
      %v5162 = vmax.f32 %v5034, 0.0
      %v5163 = vmax.f32 %v5035, 0.0
      %v5164 = vmax.f32 %v5036, 0.0
      %v5165 = vmax.f32 %v5037, 0.0
      %v5166 = vmax.f32 %v5038, 0.0
      %v5167 = vmax.f32 %v5039, 0.0
      %v5168 = vmax.f32 %v5040, 0.0
      %v5169 = vmax.f32 %v5041, 0.0
      %v5170 = vmax.f32 %v5042, 0.0
      %v5171 = vmax.f32 %v5043, 0.0
      %v5172 = vmax.f32 %v5044, 0.0
      %v5173 = vmax.f32 %v5045, 0.0
      %v5174 = vmax.f32 %v5046, 0.0
      %v5175 = vmax.f32 %v5047, 0.0
      %v5176 = vmax.f32 %v5048, 0.0
      %v5177 = vmax.f32 %v5049, 0.0
      %v5178 = vmax.f32 %v5050, 0.0
      %v5179 = vmax.f32 %v5051, 0.0
      %v5180 = vmax.f32 %v5052, 0.0
      %v5181 = vmax.f32 %v5053, 0.0
      %v5182 = vmax.f32 %v5054, 0.0
      %v5183 = vmax.f32 %v5055, 0.0
      %v5184 = vmax.f32 %v5056, 0.0
      %v5185 = vmax.f32 %v5057, 0.0
      %v5186 = vmax.f32 %v5058, 0.0
      %v5187 = vmax.f32 %v5059, 0.0
      %v5188 = vmax.f32 %v5060, 0.0
      %v5189 = vmax.f32 %v5061, 0.0
      %v5190 = vmax.f32 %v5062, 0.0
      %v5191 = vmax.f32 %v5063, 0.0
      %v5192 = vmax.f32 %v5064, 0.0
      %v5193 = vmax.f32 %v5065, 0.0
      %v5194 = vmax.f32 %v5066, 0.0
      %v5195 = vmax.f32 %v5067, 0.0
      %v5196 = vmax.f32 %v5068, 0.0
      %v5197 = vmax.f32 %v5069, 0.0
      %v5198 = vmax.f32 %v5070, 0.0
      %v5199 = vmax.f32 %v5071, 0.0
      %v5200 = vmax.f32 %v5072, 0.0
      %v5201 = vmax.f32 %v5073, 0.0
      %v5202 = vmax.f32 %v5074, 0.0
      %v5203 = vmax.f32 %v5075, 0.0
      %v5204 = vmax.f32 %v5076, 0.0
      %v5205 = vmax.f32 %v5077, 0.0
      %v5206 = vmax.f32 %v5078, 0.0
      %v5207 = vmax.f32 %v5079, 0.0
      %v5208 = vmax.f32 %v5080, 0.0
      %v5209 = vmax.f32 %v5081, 0.0
      %v5210 = vmax.f32 %v5082, 0.0
      %v5211 = vmax.f32 %v5083, 0.0
      %v5212 = vmax.f32 %v5084, 0.0
      %v5213 = vmax.f32 %v5085, 0.0
      %v5214 = vmax.f32 %v5086, 0.0
      %v5215 = vmax.f32 %v5087, 0.0
      %v5216 = vmax.f32 %v5088, 0.0
      %v5217 = vmax.f32 %v5089, 0.0
      %v5218 = vmax.f32 %v5090, 0.0
      %v5219 = vmax.f32 %v5091, 0.0
      %v5220 = vmax.f32 %v5092, 0.0
      %v5221 = vmax.f32 %v5093, 0.0
      %v5222 = vmax.f32 %v5094, 0.0
      %v5223 = vmax.f32 %v5095, 0.0
      %v5224 = vmax.f32 %v5096, 0.0
      %v5225 = vmax.f32 %v5097, 0.0
      %v5226 = vmax.f32 %v5098, 0.0
      %v5227 = vmax.f32 %v5099, 0.0
      %v5228 = vmax.f32 %v5100, 0.0
      %v5229 = vmax.f32 %v5101, 0.0
      %v5230 = vmax.f32 %v5102, 0.0
      %v5231 = vmax.f32 %v5103, 0.0
      %v5232 = vmax.f32 %v5104, 0.0
      %v5233 = vmax.f32 %v5105, 0.0
      %v5234 = vmax.f32 %v5106, 0.0
      %v5235 = vmax.f32 %v5107, 0.0
      %v5236 = vmax.f32 %v5108, 0.0
      %v5237 = vmax.f32 %v5109, 0.0
      %v5238 = vmax.f32 %v5110, 0.0
      %v5239 = vmax.f32 %v5111, 0.0
      %v5240 = vmax.f32 %v5112, 0.0
      %v5241 = vmax.f32 %v5113, 0.0
      %v5242 = vmax.f32 %v5114, 0.0
      %v5243 = vmax.f32 %v5115, 0.0
      %v5244 = vmax.f32 %v5116, 0.0
      %v5245 = vmax.f32 %v5117, 0.0
      %v5246 = vmax.f32 %v5118, 0.0
      %v5247 = vmax.f32 %v5119, 0.0
      %v5248 = vmax.f32 %v5120, 0.0
      %v5249 = vmax.f32 %v5121, 0.0
      %v5250 = vmax.f32 %v5122, 0.0
      %v5251 = vmax.f32 %v5123, 0.0
      %v5252 = vmax.f32 %v5124, 0.0
      %v5253 = vmax.f32 %v5125, 0.0
      %v5254 = vmax.f32 %v5126, 0.0
      %v5255 = vmax.f32 %v5127, 0.0
      %v5256 = vmax.f32 %v5128, 0.0
      %v5257 = vmax.f32 %v5129, 0.0
      %v5258 = vmax.f32 %v5130, 0.0
      %v5259 = vmax.f32 %v5131, 0.0
      %v5260 = vmax.f32 %v5132, 0.0
      %v5261 = vmax.f32 %v5133, 0.0
      %v5262 = vmax.f32 %v5134, 0.0
      %v5263 = vmax.f32 %v5135, 0.0
      %v5264 = vmax.f32 %v5136, 0.0
      %v5265 = vmax.f32 %v5137, 0.0
      %v5266 = vmax.f32 %v5138, 0.0
      %v5267 = vmax.f32 %v5139, 0.0
      %v5268 = vmax.f32 %v5140, 0.0
      %p5269 = scmp.eq.s32.totalorder %s22, 0
      // Predicated region
      $region29: #{chamfer_distance_l2.1} parent=27 // pred_check
        %p5270 = pneg %p5269
      $region30: #{chamfer_distance_l2.1} parent=27 // pred_check_branch
        %5272 = sbr.rel (%p5270) target = $region32
      $region31: #{chamfer_distance_l2.1} parent=27 // pred_region
        %vm5273 = vcmask 7168
        %5274 = vst.msk [vmem:[#allocation2] sm:$0xff] %vm5273, inf
        %5275 = vst.msk [vmem:[#allocation2 + $0x8] sm:$0xff] %vm5273, inf
        %5276 = vst.msk [vmem:[#allocation2 + $0x10] sm:$0xff] %vm5273, inf
        %5277 = vst.msk [vmem:[#allocation2 + $0x18] sm:$0xff] %vm5273, inf
        %5278 = vst.msk [vmem:[#allocation2 + $0x20] sm:$0xff] %vm5273, inf
        %5279 = vst.msk [vmem:[#allocation2 + $0x28] sm:$0xff] %vm5273, inf
        %5280 = vst.msk [vmem:[#allocation2 + $0x30] sm:$0xff] %vm5273, inf
        %5281 = vst.msk [vmem:[#allocation2 + $0x38] sm:$0xff] %vm5273, inf
        %5282 = vst.msk [vmem:[#allocation2 + $0x40] sm:$0xff] %vm5273, inf
        %5283 = vst.msk [vmem:[#allocation2 + $0x48] sm:$0xff] %vm5273, inf
        %5284 = vst.msk [vmem:[#allocation2 + $0x50] sm:$0xff] %vm5273, inf
        %5285 = vst.msk [vmem:[#allocation2 + $0x58] sm:$0xff] %vm5273, inf
        %5286 = vst.msk [vmem:[#allocation2 + $0x60] sm:$0xff] %vm5273, inf
        %5287 = vst.msk [vmem:[#allocation2 + $0x68] sm:$0xff] %vm5273, inf
        %5288 = vst.msk [vmem:[#allocation2 + $0x70] sm:$0xff] %vm5273, inf
        %5289 = vst.msk [vmem:[#allocation2 + $0x78] sm:$0xff] %vm5273, inf
        %5290 = vst.msk [vmem:[#allocation2 + $0x80] sm:$0xff] %vm5273, inf
        %5291 = vst.msk [vmem:[#allocation2 + $0x88] sm:$0xff] %vm5273, inf
        %5292 = vst.msk [vmem:[#allocation2 + $0x90] sm:$0xff] %vm5273, inf
        %5293 = vst.msk [vmem:[#allocation2 + $0x98] sm:$0xff] %vm5273, inf
        %5294 = vst.msk [vmem:[#allocation2 + $0xa0] sm:$0xff] %vm5273, inf
        %5295 = vst.msk [vmem:[#allocation2 + $0xa8] sm:$0xff] %vm5273, inf
        %5296 = vst.msk [vmem:[#allocation2 + $0xb0] sm:$0xff] %vm5273, inf
        %5297 = vst.msk [vmem:[#allocation2 + $0xb8] sm:$0xff] %vm5273, inf
        %5298 = vst.msk [vmem:[#allocation2 + $0xc0] sm:$0xff] %vm5273, inf
        %5299 = vst.msk [vmem:[#allocation2 + $0xc8] sm:$0xff] %vm5273, inf
        %5300 = vst.msk [vmem:[#allocation2 + $0xd0] sm:$0xff] %vm5273, inf
        %5301 = vst.msk [vmem:[#allocation2 + $0xd8] sm:$0xff] %vm5273, inf
        %5302 = vst.msk [vmem:[#allocation2 + $0xe0] sm:$0xff] %vm5273, inf
        %5303 = vst.msk [vmem:[#allocation2 + $0xe8] sm:$0xff] %vm5273, inf
        %5304 = vst.msk [vmem:[#allocation2 + $0xf0] sm:$0xff] %vm5273, inf
        %5305 = vst.msk [vmem:[#allocation2 + $0xf8] sm:$0xff] %vm5273, inf
      $region32: #{chamfer_distance_l2.1} parent=27 // pred_fallthru
        _
      %p5306 = scmp.eq.s32.totalorder %s21, 0
      %p5307 = pnand %p5306, %p5269
      %p5308 = pneg %p5307
      // Predicated region
      $region33: #{chamfer_distance_l2.1} parent=27 // pred_check
        _
      $region34: #{chamfer_distance_l2.1} parent=27 // pred_check_branch
        %5310 = sbr.rel (%p5307) target = $region36
      $region35: #{chamfer_distance_l2.1} parent=27 // pred_region
        %5311 = vst [vmem:[#allocation3] sm:$0xff] inf
      $region36: #{chamfer_distance_l2.1} parent=27 // pred_fallthru
        _
      %s5312 = smul.u32 %s22, 512
      %v5313 = vlaneseq
      %v5314 = vand.u32 %v5313, 127
      %v5315 = vadd.s32 %v5314, 128
      %v5316 = vadd.s32 %v5314, 256
      %v5317 = vadd.s32 %v5314, 384
      %v5318 = vstv %s5312
      %v5319 = vadd.s32 %v5318, %v5314
      %v5320 = vadd.s32 %v5318, %v5315
      %v5321 = vadd.s32 %v5318, %v5316
      %v5322 = vadd.s32 %v5318, %v5317
      %vm5323 = vcmp.lt.s32.totalorder %v5319, 700
      %vm5324 = vcmp.lt.s32.totalorder %v5320, 700
      %vm5325 = vcmp.lt.s32.totalorder %v5321, 700
      %vm5326 = vcmp.lt.s32.totalorder %v5322, 700
      %v5327 = vsel %vm5323, 1, 0
      %v5328 = vsel %vm5324, 1, 0
      %v5329 = vsel %vm5325, 1, 0
      %v5330 = vsel %vm5326, 1, 0
      %vm5331 = vcmp.eq.s32.totalorder %v5327, 1
      %vm5332 = vcmp.eq.s32.totalorder %v5328, 1
      %vm5333 = vcmp.eq.s32.totalorder %v5329, 1
      %vm5334 = vcmp.eq.s32.totalorder %v5330, 1
      %v5335 = vsel %vm5331, %v5141, inf
      %v5336 = vsel %vm5332, %v5142, inf
      %v5337 = vsel %vm5333, %v5143, inf
      %v5338 = vsel %vm5334, %v5144, inf
      %v5339 = vsel %vm5331, %v5145, inf
      %v5340 = vsel %vm5332, %v5146, inf
      %v5341 = vsel %vm5333, %v5147, inf
      %v5342 = vsel %vm5334, %v5148, inf
      %v5343 = vsel %vm5331, %v5149, inf
      %v5344 = vsel %vm5332, %v5150, inf
      %v5345 = vsel %vm5333, %v5151, inf
      %v5346 = vsel %vm5334, %v5152, inf
      %v5347 = vsel %vm5331, %v5153, inf
      %v5348 = vsel %vm5332, %v5154, inf
      %v5349 = vsel %vm5333, %v5155, inf
      %v5350 = vsel %vm5334, %v5156, inf
      %v5351 = vsel %vm5331, %v5157, inf
      %v5352 = vsel %vm5332, %v5158, inf
      %v5353 = vsel %vm5333, %v5159, inf
      %v5354 = vsel %vm5334, %v5160, inf
      %v5355 = vsel %vm5331, %v5161, inf
      %v5356 = vsel %vm5332, %v5162, inf
      %v5357 = vsel %vm5333, %v5163, inf
      %v5358 = vsel %vm5334, %v5164, inf
      %v5359 = vsel %vm5331, %v5165, inf
      %v5360 = vsel %vm5332, %v5166, inf
      %v5361 = vsel %vm5333, %v5167, inf
      %v5362 = vsel %vm5334, %v5168, inf
      %v5363 = vsel %vm5331, %v5169, inf
      %v5364 = vsel %vm5332, %v5170, inf
      %v5365 = vsel %vm5333, %v5171, inf
      %v5366 = vsel %vm5334, %v5172, inf
      %v5367 = vsel %vm5331, %v5173, inf
      %v5368 = vsel %vm5332, %v5174, inf
      %v5369 = vsel %vm5333, %v5175, inf
      %v5370 = vsel %vm5334, %v5176, inf
      %v5371 = vsel %vm5331, %v5177, inf
      %v5372 = vsel %vm5332, %v5178, inf
      %v5373 = vsel %vm5333, %v5179, inf
      %v5374 = vsel %vm5334, %v5180, inf
      %v5375 = vsel %vm5331, %v5181, inf
      %v5376 = vsel %vm5332, %v5182, inf
      %v5377 = vsel %vm5333, %v5183, inf
      %v5378 = vsel %vm5334, %v5184, inf
      %v5379 = vsel %vm5331, %v5185, inf
      %v5380 = vsel %vm5332, %v5186, inf
      %v5381 = vsel %vm5333, %v5187, inf
      %v5382 = vsel %vm5334, %v5188, inf
      %v5383 = vsel %vm5331, %v5189, inf
      %v5384 = vsel %vm5332, %v5190, inf
      %v5385 = vsel %vm5333, %v5191, inf
      %v5386 = vsel %vm5334, %v5192, inf
      %v5387 = vsel %vm5331, %v5193, inf
      %v5388 = vsel %vm5332, %v5194, inf
      %v5389 = vsel %vm5333, %v5195, inf
      %v5390 = vsel %vm5334, %v5196, inf
      %v5391 = vsel %vm5331, %v5197, inf
      %v5392 = vsel %vm5332, %v5198, inf
      %v5393 = vsel %vm5333, %v5199, inf
      %v5394 = vsel %vm5334, %v5200, inf
      %v5395 = vsel %vm5331, %v5201, inf
      %v5396 = vsel %vm5332, %v5202, inf
      %v5397 = vsel %vm5333, %v5203, inf
      %v5398 = vsel %vm5334, %v5204, inf
      %v5399 = vsel %vm5331, %v5205, inf
      %v5400 = vsel %vm5332, %v5206, inf
      %v5401 = vsel %vm5333, %v5207, inf
      %v5402 = vsel %vm5334, %v5208, inf
      %v5403 = vsel %vm5331, %v5209, inf
      %v5404 = vsel %vm5332, %v5210, inf
      %v5405 = vsel %vm5333, %v5211, inf
      %v5406 = vsel %vm5334, %v5212, inf
      %v5407 = vsel %vm5331, %v5213, inf
      %v5408 = vsel %vm5332, %v5214, inf
      %v5409 = vsel %vm5333, %v5215, inf
      %v5410 = vsel %vm5334, %v5216, inf
      %v5411 = vsel %vm5331, %v5217, inf
      %v5412 = vsel %vm5332, %v5218, inf
      %v5413 = vsel %vm5333, %v5219, inf
      %v5414 = vsel %vm5334, %v5220, inf
      %v5415 = vsel %vm5331, %v5221, inf
      %v5416 = vsel %vm5332, %v5222, inf
      %v5417 = vsel %vm5333, %v5223, inf
      %v5418 = vsel %vm5334, %v5224, inf
      %v5419 = vsel %vm5331, %v5225, inf
      %v5420 = vsel %vm5332, %v5226, inf
      %v5421 = vsel %vm5333, %v5227, inf
      %v5422 = vsel %vm5334, %v5228, inf
      %v5423 = vsel %vm5331, %v5229, inf
      %v5424 = vsel %vm5332, %v5230, inf
      %v5425 = vsel %vm5333, %v5231, inf
      %v5426 = vsel %vm5334, %v5232, inf
      %v5427 = vsel %vm5331, %v5233, inf
      %v5428 = vsel %vm5332, %v5234, inf
      %v5429 = vsel %vm5333, %v5235, inf
      %v5430 = vsel %vm5334, %v5236, inf
      %v5431 = vsel %vm5331, %v5237, inf
      %v5432 = vsel %vm5332, %v5238, inf
      %v5433 = vsel %vm5333, %v5239, inf
      %v5434 = vsel %vm5334, %v5240, inf
      %v5435 = vsel %vm5331, %v5241, inf
      %v5436 = vsel %vm5332, %v5242, inf
      %v5437 = vsel %vm5333, %v5243, inf
      %v5438 = vsel %vm5334, %v5244, inf
      %v5439 = vsel %vm5331, %v5245, inf
      %v5440 = vsel %vm5332, %v5246, inf
      %v5441 = vsel %vm5333, %v5247, inf
      %v5442 = vsel %vm5334, %v5248, inf
      %v5443 = vsel %vm5331, %v5249, inf
      %v5444 = vsel %vm5332, %v5250, inf
      %v5445 = vsel %vm5333, %v5251, inf
      %v5446 = vsel %vm5334, %v5252, inf
      %v5447 = vsel %vm5331, %v5253, inf
      %v5448 = vsel %vm5332, %v5254, inf
      %v5449 = vsel %vm5333, %v5255, inf
      %v5450 = vsel %vm5334, %v5256, inf
      %v5451 = vsel %vm5331, %v5257, inf
      %v5452 = vsel %vm5332, %v5258, inf
      %v5453 = vsel %vm5333, %v5259, inf
      %v5454 = vsel %vm5334, %v5260, inf
      %v5455 = vsel %vm5331, %v5261, inf
      %v5456 = vsel %vm5332, %v5262, inf
      %v5457 = vsel %vm5333, %v5263, inf
      %v5458 = vsel %vm5334, %v5264, inf
      %v5459 = vsel %vm5331, %v5265, inf
      %v5460 = vsel %vm5332, %v5266, inf
      %v5461 = vsel %vm5333, %v5267, inf
      %v5462 = vsel %vm5334, %v5268, inf
      %v5463 = vld [vmem:[#allocation2] sm:$0xff]
      %v5464 = vld [vmem:[#allocation2 + $0x8] sm:$0xff]
      %v5465 = vld [vmem:[#allocation2 + $0x10] sm:$0xff]
      %v5466 = vld [vmem:[#allocation2 + $0x18] sm:$0xff]
      %v5467 = vld [vmem:[#allocation2 + $0x20] sm:$0xff]
      %v5468 = vld [vmem:[#allocation2 + $0x28] sm:$0xff]
      %v5469 = vld [vmem:[#allocation2 + $0x30] sm:$0xff]
      %v5470 = vld [vmem:[#allocation2 + $0x38] sm:$0xff]
      %v5471 = vld [vmem:[#allocation2 + $0x40] sm:$0xff]
      %v5472 = vld [vmem:[#allocation2 + $0x48] sm:$0xff]
      %v5473 = vld [vmem:[#allocation2 + $0x50] sm:$0xff]
      %v5474 = vld [vmem:[#allocation2 + $0x58] sm:$0xff]
      %v5475 = vld [vmem:[#allocation2 + $0x60] sm:$0xff]
      %v5476 = vld [vmem:[#allocation2 + $0x68] sm:$0xff]
      %v5477 = vld [vmem:[#allocation2 + $0x70] sm:$0xff]
      %v5478 = vld [vmem:[#allocation2 + $0x78] sm:$0xff]
      %v5479 = vld [vmem:[#allocation2 + $0x80] sm:$0xff]
      %v5480 = vld [vmem:[#allocation2 + $0x88] sm:$0xff]
      %v5481 = vld [vmem:[#allocation2 + $0x90] sm:$0xff]
      %v5482 = vld [vmem:[#allocation2 + $0x98] sm:$0xff]
      %v5483 = vld [vmem:[#allocation2 + $0xa0] sm:$0xff]
      %v5484 = vld [vmem:[#allocation2 + $0xa8] sm:$0xff]
      %v5485 = vld [vmem:[#allocation2 + $0xb0] sm:$0xff]
      %v5486 = vld [vmem:[#allocation2 + $0xb8] sm:$0xff]
      %v5487 = vld [vmem:[#allocation2 + $0xc0] sm:$0xff]
      %v5488 = vld [vmem:[#allocation2 + $0xc8] sm:$0xff]
      %v5489 = vld [vmem:[#allocation2 + $0xd0] sm:$0xff]
      %v5490 = vld [vmem:[#allocation2 + $0xd8] sm:$0xff]
      %v5491 = vld [vmem:[#allocation2 + $0xe0] sm:$0xff]
      %v5492 = vld [vmem:[#allocation2 + $0xe8] sm:$0xff]
      %v5493 = vld [vmem:[#allocation2 + $0xf0] sm:$0xff]
      %v5494 = vld [vmem:[#allocation2 + $0xf8] sm:$0xff]
      %v5495 = vmin.f32 %v5335, %v5336
      %v5496 = vmin.f32 %v5495, %v5337
      %v5497 = vmin.f32 %v5496, %v5338
      %5498 = vmin.xlane.f32.xlu0 %v5497
      %v5499 = vpop.xlane.xlu0 %5498
      %v5500 = vmin.f32 %v5339, %v5340
      %v5501 = vmin.f32 %v5500, %v5341
      %v5502 = vmin.f32 %v5501, %v5342
      %5503 = vmin.xlane.f32.xlu0 %v5502
      %v5504 = vpop.xlane.xlu0 %5503
      %v5505 = vmin.f32 %v5343, %v5344
      %v5506 = vmin.f32 %v5505, %v5345
      %v5507 = vmin.f32 %v5506, %v5346
      %5508 = vmin.xlane.f32.xlu0 %v5507
      %v5509 = vpop.xlane.xlu0 %5508
      %v5510 = vmin.f32 %v5347, %v5348
      %v5511 = vmin.f32 %v5510, %v5349
      %v5512 = vmin.f32 %v5511, %v5350
      %5513 = vmin.xlane.f32.xlu0 %v5512
      %v5514 = vpop.xlane.xlu0 %5513
      %v5515 = vmin.f32 %v5351, %v5352
      %v5516 = vmin.f32 %v5515, %v5353
      %v5517 = vmin.f32 %v5516, %v5354
      %5518 = vmin.xlane.f32.xlu0 %v5517
      %v5519 = vpop.xlane.xlu0 %5518
      %v5520 = vmin.f32 %v5355, %v5356
      %v5521 = vmin.f32 %v5520, %v5357
      %v5522 = vmin.f32 %v5521, %v5358
      %5523 = vmin.xlane.f32.xlu0 %v5522
      %v5524 = vpop.xlane.xlu0 %5523
      %v5525 = vmin.f32 %v5359, %v5360
      %v5526 = vmin.f32 %v5525, %v5361
      %v5527 = vmin.f32 %v5526, %v5362
      %5528 = vmin.xlane.f32.xlu0 %v5527
      %v5529 = vpop.xlane.xlu0 %5528
      %v5530 = vmin.f32 %v5363, %v5364
      %v5531 = vmin.f32 %v5530, %v5365
      %v5532 = vmin.f32 %v5531, %v5366
      %5533 = vmin.xlane.f32.xlu0 %v5532
      %v5534 = vpop.xlane.xlu0 %5533
      %v5535 = vmin.f32 %v5367, %v5368
      %v5536 = vmin.f32 %v5535, %v5369
      %v5537 = vmin.f32 %v5536, %v5370
      %5538 = vmin.xlane.f32.xlu0 %v5537
      %v5539 = vpop.xlane.xlu0 %5538
      %v5540 = vmin.f32 %v5371, %v5372
      %v5541 = vmin.f32 %v5540, %v5373
      %v5542 = vmin.f32 %v5541, %v5374
      %5543 = vmin.xlane.f32.xlu0 %v5542
      %v5544 = vpop.xlane.xlu0 %5543
      %v5545 = vmin.f32 %v5375, %v5376
      %v5546 = vmin.f32 %v5545, %v5377
      %v5547 = vmin.f32 %v5546, %v5378
      %5548 = vmin.xlane.f32.xlu0 %v5547
      %v5549 = vpop.xlane.xlu0 %5548
      %v5550 = vmin.f32 %v5379, %v5380
      %v5551 = vmin.f32 %v5550, %v5381
      %v5552 = vmin.f32 %v5551, %v5382
      %5553 = vmin.xlane.f32.xlu0 %v5552
      %v5554 = vpop.xlane.xlu0 %5553
      %v5555 = vmin.f32 %v5383, %v5384
      %v5556 = vmin.f32 %v5555, %v5385
      %v5557 = vmin.f32 %v5556, %v5386
      %5558 = vmin.xlane.f32.xlu0 %v5557
      %v5559 = vpop.xlane.xlu0 %5558
      %v5560 = vmin.f32 %v5387, %v5388
      %v5561 = vmin.f32 %v5560, %v5389
      %v5562 = vmin.f32 %v5561, %v5390
      %5563 = vmin.xlane.f32.xlu0 %v5562
      %v5564 = vpop.xlane.xlu0 %5563
      %v5565 = vmin.f32 %v5391, %v5392
      %v5566 = vmin.f32 %v5565, %v5393
      %v5567 = vmin.f32 %v5566, %v5394
      %5568 = vmin.xlane.f32.xlu0 %v5567
      %v5569 = vpop.xlane.xlu0 %5568
      %v5570 = vmin.f32 %v5395, %v5396
      %v5571 = vmin.f32 %v5570, %v5397
      %v5572 = vmin.f32 %v5571, %v5398
      %5573 = vmin.xlane.f32.xlu0 %v5572
      %v5574 = vpop.xlane.xlu0 %5573
      %v5575 = vmin.f32 %v5399, %v5400
      %v5576 = vmin.f32 %v5575, %v5401
      %v5577 = vmin.f32 %v5576, %v5402
      %5578 = vmin.xlane.f32.xlu0 %v5577
      %v5579 = vpop.xlane.xlu0 %5578
      %v5580 = vmin.f32 %v5403, %v5404
      %v5581 = vmin.f32 %v5580, %v5405
      %v5582 = vmin.f32 %v5581, %v5406
      %5583 = vmin.xlane.f32.xlu0 %v5582
      %v5584 = vpop.xlane.xlu0 %5583
      %v5585 = vmin.f32 %v5407, %v5408
      %v5586 = vmin.f32 %v5585, %v5409
      %v5587 = vmin.f32 %v5586, %v5410
      %5588 = vmin.xlane.f32.xlu0 %v5587
      %v5589 = vpop.xlane.xlu0 %5588
      %v5590 = vmin.f32 %v5411, %v5412
      %v5591 = vmin.f32 %v5590, %v5413
      %v5592 = vmin.f32 %v5591, %v5414
      %5593 = vmin.xlane.f32.xlu0 %v5592
      %v5594 = vpop.xlane.xlu0 %5593
      %v5595 = vmin.f32 %v5415, %v5416
      %v5596 = vmin.f32 %v5595, %v5417
      %v5597 = vmin.f32 %v5596, %v5418
      %5598 = vmin.xlane.f32.xlu0 %v5597
      %v5599 = vpop.xlane.xlu0 %5598
      %v5600 = vmin.f32 %v5419, %v5420
      %v5601 = vmin.f32 %v5600, %v5421
      %v5602 = vmin.f32 %v5601, %v5422
      %5603 = vmin.xlane.f32.xlu0 %v5602
      %v5604 = vpop.xlane.xlu0 %5603
      %v5605 = vmin.f32 %v5423, %v5424
      %v5606 = vmin.f32 %v5605, %v5425
      %v5607 = vmin.f32 %v5606, %v5426
      %5608 = vmin.xlane.f32.xlu0 %v5607
      %v5609 = vpop.xlane.xlu0 %5608
      %v5610 = vmin.f32 %v5427, %v5428
      %v5611 = vmin.f32 %v5610, %v5429
      %v5612 = vmin.f32 %v5611, %v5430
      %5613 = vmin.xlane.f32.xlu0 %v5612
      %v5614 = vpop.xlane.xlu0 %5613
      %v5615 = vmin.f32 %v5431, %v5432
      %v5616 = vmin.f32 %v5615, %v5433
      %v5617 = vmin.f32 %v5616, %v5434
      %5618 = vmin.xlane.f32.xlu0 %v5617
      %v5619 = vpop.xlane.xlu0 %5618
      %v5620 = vmin.f32 %v5435, %v5436
      %v5621 = vmin.f32 %v5620, %v5437
      %v5622 = vmin.f32 %v5621, %v5438
      %5623 = vmin.xlane.f32.xlu0 %v5622
      %v5624 = vpop.xlane.xlu0 %5623
      %v5625 = vmin.f32 %v5439, %v5440
      %v5626 = vmin.f32 %v5625, %v5441
      %v5627 = vmin.f32 %v5626, %v5442
      %5628 = vmin.xlane.f32.xlu0 %v5627
      %v5629 = vpop.xlane.xlu0 %5628
      %v5630 = vmin.f32 %v5443, %v5444
      %v5631 = vmin.f32 %v5630, %v5445
      %v5632 = vmin.f32 %v5631, %v5446
      %5633 = vmin.xlane.f32.xlu0 %v5632
      %v5634 = vpop.xlane.xlu0 %5633
      %v5635 = vmin.f32 %v5447, %v5448
      %v5636 = vmin.f32 %v5635, %v5449
      %v5637 = vmin.f32 %v5636, %v5450
      %5638 = vmin.xlane.f32.xlu0 %v5637
      %v5639 = vpop.xlane.xlu0 %5638
      %v5640 = vmin.f32 %v5451, %v5452
      %v5641 = vmin.f32 %v5640, %v5453
      %v5642 = vmin.f32 %v5641, %v5454
      %5643 = vmin.xlane.f32.xlu0 %v5642
      %v5644 = vpop.xlane.xlu0 %5643
      %v5645 = vmin.f32 %v5455, %v5456
      %v5646 = vmin.f32 %v5645, %v5457
      %v5647 = vmin.f32 %v5646, %v5458
      %5648 = vmin.xlane.f32.xlu0 %v5647
      %v5649 = vpop.xlane.xlu0 %5648
      %v5650 = vmin.f32 %v5459, %v5460
      %v5651 = vmin.f32 %v5650, %v5461
      %v5652 = vmin.f32 %v5651, %v5462
      %5653 = vmin.xlane.f32.xlu0 %v5652
      %v5654 = vpop.xlane.xlu0 %5653
      %v5655 = vmin.f32 %v5463, %v5499
      %v5656 = vmin.f32 %v5464, %v5504
      %v5657 = vmin.f32 %v5465, %v5509
      %v5658 = vmin.f32 %v5466, %v5514
      %v5659 = vmin.f32 %v5467, %v5519
      %v5660 = vmin.f32 %v5468, %v5524
      %v5661 = vmin.f32 %v5469, %v5529
      %v5662 = vmin.f32 %v5470, %v5534
      %v5663 = vmin.f32 %v5471, %v5539
      %v5664 = vmin.f32 %v5472, %v5544
      %v5665 = vmin.f32 %v5473, %v5549
      %v5666 = vmin.f32 %v5474, %v5554
      %v5667 = vmin.f32 %v5475, %v5559
      %v5668 = vmin.f32 %v5476, %v5564
      %v5669 = vmin.f32 %v5477, %v5569
      %v5670 = vmin.f32 %v5478, %v5574
      %v5671 = vmin.f32 %v5479, %v5579
      %v5672 = vmin.f32 %v5480, %v5584
      %v5673 = vmin.f32 %v5481, %v5589
      %v5674 = vmin.f32 %v5482, %v5594
      %v5675 = vmin.f32 %v5483, %v5599
      %v5676 = vmin.f32 %v5484, %v5604
      %v5677 = vmin.f32 %v5485, %v5609
      %v5678 = vmin.f32 %v5486, %v5614
      %v5679 = vmin.f32 %v5487, %v5619
      %v5680 = vmin.f32 %v5488, %v5624
      %v5681 = vmin.f32 %v5489, %v5629
      %v5682 = vmin.f32 %v5490, %v5634
      %v5683 = vmin.f32 %v5491, %v5639
      %v5684 = vmin.f32 %v5492, %v5644
      %v5685 = vmin.f32 %v5493, %v5649
      %v5686 = vmin.f32 %v5494, %v5654
      %vm5687 = vcmask 7168
      %5688 = vst.msk [vmem:[#allocation2] sm:$0xff] %vm5687, %v5655
      %5689 = vst.msk [vmem:[#allocation2 + $0x8] sm:$0xff] %vm5687, %v5656
      %5690 = vst.msk [vmem:[#allocation2 + $0x10] sm:$0xff] %vm5687, %v5657
      %5691 = vst.msk [vmem:[#allocation2 + $0x18] sm:$0xff] %vm5687, %v5658
      %5692 = vst.msk [vmem:[#allocation2 + $0x20] sm:$0xff] %vm5687, %v5659
      %5693 = vst.msk [vmem:[#allocation2 + $0x28] sm:$0xff] %vm5687, %v5660
      %5694 = vst.msk [vmem:[#allocation2 + $0x30] sm:$0xff] %vm5687, %v5661
      %5695 = vst.msk [vmem:[#allocation2 + $0x38] sm:$0xff] %vm5687, %v5662
      %5696 = vst.msk [vmem:[#allocation2 + $0x40] sm:$0xff] %vm5687, %v5663
      %5697 = vst.msk [vmem:[#allocation2 + $0x48] sm:$0xff] %vm5687, %v5664
      %5698 = vst.msk [vmem:[#allocation2 + $0x50] sm:$0xff] %vm5687, %v5665
      %5699 = vst.msk [vmem:[#allocation2 + $0x58] sm:$0xff] %vm5687, %v5666
      %5700 = vst.msk [vmem:[#allocation2 + $0x60] sm:$0xff] %vm5687, %v5667
      %5701 = vst.msk [vmem:[#allocation2 + $0x68] sm:$0xff] %vm5687, %v5668
      %5702 = vst.msk [vmem:[#allocation2 + $0x70] sm:$0xff] %vm5687, %v5669
      %5703 = vst.msk [vmem:[#allocation2 + $0x78] sm:$0xff] %vm5687, %v5670
      %5704 = vst.msk [vmem:[#allocation2 + $0x80] sm:$0xff] %vm5687, %v5671
      %5705 = vst.msk [vmem:[#allocation2 + $0x88] sm:$0xff] %vm5687, %v5672
      %5706 = vst.msk [vmem:[#allocation2 + $0x90] sm:$0xff] %vm5687, %v5673
      %5707 = vst.msk [vmem:[#allocation2 + $0x98] sm:$0xff] %vm5687, %v5674
      %5708 = vst.msk [vmem:[#allocation2 + $0xa0] sm:$0xff] %vm5687, %v5675
      %5709 = vst.msk [vmem:[#allocation2 + $0xa8] sm:$0xff] %vm5687, %v5676
      %5710 = vst.msk [vmem:[#allocation2 + $0xb0] sm:$0xff] %vm5687, %v5677
      %5711 = vst.msk [vmem:[#allocation2 + $0xb8] sm:$0xff] %vm5687, %v5678
      %5712 = vst.msk [vmem:[#allocation2 + $0xc0] sm:$0xff] %vm5687, %v5679
      %5713 = vst.msk [vmem:[#allocation2 + $0xc8] sm:$0xff] %vm5687, %v5680
      %5714 = vst.msk [vmem:[#allocation2 + $0xd0] sm:$0xff] %vm5687, %v5681
      %5715 = vst.msk [vmem:[#allocation2 + $0xd8] sm:$0xff] %vm5687, %v5682
      %5716 = vst.msk [vmem:[#allocation2 + $0xe0] sm:$0xff] %vm5687, %v5683
      %5717 = vst.msk [vmem:[#allocation2 + $0xe8] sm:$0xff] %vm5687, %v5684
      %5718 = vst.msk [vmem:[#allocation2 + $0xf0] sm:$0xff] %vm5687, %v5685
      %5719 = vst.msk [vmem:[#allocation2 + $0xf8] sm:$0xff] %vm5687, %v5686
      %s5720 = smul.u32 %s21, 256
      %v5721 = vlaneseq
      %v5722 = vshrl.u32 %v5721, 7
      %v5723 = vadd.s32 %v5722, 8
      %v5724 = vadd.s32 %v5722, 16
      %v5725 = vadd.s32 %v5722, 24
      %v5726 = vadd.s32 %v5722, 32
      %v5727 = vadd.s32 %v5722, 40
      %v5728 = vadd.s32 %v5722, 48
      %v5729 = vadd.s32 %v5722, 56
      %v5730 = vadd.s32 %v5722, 64
      %v5731 = vadd.s32 %v5722, 72
      %v5732 = vadd.s32 %v5722, 80
      %v5733 = vadd.s32 %v5722, 88
      %v5734 = vadd.s32 %v5722, 96
      %v5735 = vadd.s32 %v5722, 104
      %v5736 = vadd.s32 %v5722, 112
      %v5737 = vadd.s32 %v5722, 120
      %v5738 = vadd.s32 %v5722, 128
      %v5739 = vadd.s32 %v5722, 136
      %v5740 = vadd.s32 %v5722, 144
      %v5741 = vadd.s32 %v5722, 152
      %v5742 = vadd.s32 %v5722, 160
      %v5743 = vadd.s32 %v5722, 168
      %v5744 = vadd.s32 %v5722, 176
      %v5745 = vadd.s32 %v5722, 184
      %v5746 = vadd.s32 %v5722, 192
      %v5747 = vadd.s32 %v5722, 200
      %v5748 = vadd.s32 %v5722, 208
      %v5749 = vadd.s32 %v5722, 216
      %v5750 = vadd.s32 %v5722, 224
      %v5751 = vadd.s32 %v5722, 232
      %v5752 = vadd.s32 %v5722, 240
      %v5753 = vadd.s32 %v5722, 248
      %v5754 = vstv %s5720
      %v5755 = vadd.s32 %v5754, %v5722
      %v5756 = vadd.s32 %v5754, %v5723
      %v5757 = vadd.s32 %v5754, %v5724
      %v5758 = vadd.s32 %v5754, %v5725
      %v5759 = vadd.s32 %v5754, %v5726
      %v5760 = vadd.s32 %v5754, %v5727
      %v5761 = vadd.s32 %v5754, %v5728
      %v5762 = vadd.s32 %v5754, %v5729
      %v5763 = vadd.s32 %v5754, %v5730
      %v5764 = vadd.s32 %v5754, %v5731
      %v5765 = vadd.s32 %v5754, %v5732
      %v5766 = vadd.s32 %v5754, %v5733
      %v5767 = vadd.s32 %v5754, %v5734
      %v5768 = vadd.s32 %v5754, %v5735
      %v5769 = vadd.s32 %v5754, %v5736
      %v5770 = vadd.s32 %v5754, %v5737
      %v5771 = vadd.s32 %v5754, %v5738
      %v5772 = vadd.s32 %v5754, %v5739
      %v5773 = vadd.s32 %v5754, %v5740
      %v5774 = vadd.s32 %v5754, %v5741
      %v5775 = vadd.s32 %v5754, %v5742
      %v5776 = vadd.s32 %v5754, %v5743
      %v5777 = vadd.s32 %v5754, %v5744
      %v5778 = vadd.s32 %v5754, %v5745
      %v5779 = vadd.s32 %v5754, %v5746
      %v5780 = vadd.s32 %v5754, %v5747
      %v5781 = vadd.s32 %v5754, %v5748
      %v5782 = vadd.s32 %v5754, %v5749
      %v5783 = vadd.s32 %v5754, %v5750
      %v5784 = vadd.s32 %v5754, %v5751
      %v5785 = vadd.s32 %v5754, %v5752
      %v5786 = vadd.s32 %v5754, %v5753
      %vm5787 = vcmp.lt.s32.totalorder %v5755, 300
      %vm5788 = vcmp.lt.s32.totalorder %v5756, 300
      %vm5789 = vcmp.lt.s32.totalorder %v5757, 300
      %vm5790 = vcmp.lt.s32.totalorder %v5758, 300
      %vm5791 = vcmp.lt.s32.totalorder %v5759, 300
      %vm5792 = vcmp.lt.s32.totalorder %v5760, 300
      %vm5793 = vcmp.lt.s32.totalorder %v5761, 300
      %vm5794 = vcmp.lt.s32.totalorder %v5762, 300
      %vm5795 = vcmp.lt.s32.totalorder %v5763, 300
      %vm5796 = vcmp.lt.s32.totalorder %v5764, 300
      %vm5797 = vcmp.lt.s32.totalorder %v5765, 300
      %vm5798 = vcmp.lt.s32.totalorder %v5766, 300
      %vm5799 = vcmp.lt.s32.totalorder %v5767, 300
      %vm5800 = vcmp.lt.s32.totalorder %v5768, 300
      %vm5801 = vcmp.lt.s32.totalorder %v5769, 300
      %vm5802 = vcmp.lt.s32.totalorder %v5770, 300
      %vm5803 = vcmp.lt.s32.totalorder %v5771, 300
      %vm5804 = vcmp.lt.s32.totalorder %v5772, 300
      %vm5805 = vcmp.lt.s32.totalorder %v5773, 300
      %vm5806 = vcmp.lt.s32.totalorder %v5774, 300
      %vm5807 = vcmp.lt.s32.totalorder %v5775, 300
      %vm5808 = vcmp.lt.s32.totalorder %v5776, 300
      %vm5809 = vcmp.lt.s32.totalorder %v5777, 300
      %vm5810 = vcmp.lt.s32.totalorder %v5778, 300
      %vm5811 = vcmp.lt.s32.totalorder %v5779, 300
      %vm5812 = vcmp.lt.s32.totalorder %v5780, 300
      %vm5813 = vcmp.lt.s32.totalorder %v5781, 300
      %vm5814 = vcmp.lt.s32.totalorder %v5782, 300
      %vm5815 = vcmp.lt.s32.totalorder %v5783, 300
      %vm5816 = vcmp.lt.s32.totalorder %v5784, 300
      %vm5817 = vcmp.lt.s32.totalorder %v5785, 300
      %vm5818 = vcmp.lt.s32.totalorder %v5786, 300
      %v5819 = vsel %vm5787, 1, 0
      %v5820 = vsel %vm5788, 1, 0
      %v5821 = vsel %vm5789, 1, 0
      %v5822 = vsel %vm5790, 1, 0
      %v5823 = vsel %vm5791, 1, 0
      %v5824 = vsel %vm5792, 1, 0
      %v5825 = vsel %vm5793, 1, 0
      %v5826 = vsel %vm5794, 1, 0
      %v5827 = vsel %vm5795, 1, 0
      %v5828 = vsel %vm5796, 1, 0
      %v5829 = vsel %vm5797, 1, 0
      %v5830 = vsel %vm5798, 1, 0
      %v5831 = vsel %vm5799, 1, 0
      %v5832 = vsel %vm5800, 1, 0
      %v5833 = vsel %vm5801, 1, 0
      %v5834 = vsel %vm5802, 1, 0
      %v5835 = vsel %vm5803, 1, 0
      %v5836 = vsel %vm5804, 1, 0
      %v5837 = vsel %vm5805, 1, 0
      %v5838 = vsel %vm5806, 1, 0
      %v5839 = vsel %vm5807, 1, 0
      %v5840 = vsel %vm5808, 1, 0
      %v5841 = vsel %vm5809, 1, 0
      %v5842 = vsel %vm5810, 1, 0
      %v5843 = vsel %vm5811, 1, 0
      %v5844 = vsel %vm5812, 1, 0
      %v5845 = vsel %vm5813, 1, 0
      %v5846 = vsel %vm5814, 1, 0
      %v5847 = vsel %vm5815, 1, 0
      %v5848 = vsel %vm5816, 1, 0
      %v5849 = vsel %vm5817, 1, 0
      %v5850 = vsel %vm5818, 1, 0
      %vm5851 = vcmp.eq.s32.totalorder %v5819, 1
      %vm5852 = vcmp.eq.s32.totalorder %v5820, 1
      %vm5853 = vcmp.eq.s32.totalorder %v5821, 1
      %vm5854 = vcmp.eq.s32.totalorder %v5822, 1
      %vm5855 = vcmp.eq.s32.totalorder %v5823, 1
      %vm5856 = vcmp.eq.s32.totalorder %v5824, 1
      %vm5857 = vcmp.eq.s32.totalorder %v5825, 1
      %vm5858 = vcmp.eq.s32.totalorder %v5826, 1
      %vm5859 = vcmp.eq.s32.totalorder %v5827, 1
      %vm5860 = vcmp.eq.s32.totalorder %v5828, 1
      %vm5861 = vcmp.eq.s32.totalorder %v5829, 1
      %vm5862 = vcmp.eq.s32.totalorder %v5830, 1
      %vm5863 = vcmp.eq.s32.totalorder %v5831, 1
      %vm5864 = vcmp.eq.s32.totalorder %v5832, 1
      %vm5865 = vcmp.eq.s32.totalorder %v5833, 1
      %vm5866 = vcmp.eq.s32.totalorder %v5834, 1
      %vm5867 = vcmp.eq.s32.totalorder %v5835, 1
      %vm5868 = vcmp.eq.s32.totalorder %v5836, 1
      %vm5869 = vcmp.eq.s32.totalorder %v5837, 1
      %vm5870 = vcmp.eq.s32.totalorder %v5838, 1
      %vm5871 = vcmp.eq.s32.totalorder %v5839, 1
      %vm5872 = vcmp.eq.s32.totalorder %v5840, 1
      %vm5873 = vcmp.eq.s32.totalorder %v5841, 1
      %vm5874 = vcmp.eq.s32.totalorder %v5842, 1
      %vm5875 = vcmp.eq.s32.totalorder %v5843, 1
      %vm5876 = vcmp.eq.s32.totalorder %v5844, 1
      %vm5877 = vcmp.eq.s32.totalorder %v5845, 1
      %vm5878 = vcmp.eq.s32.totalorder %v5846, 1
      %vm5879 = vcmp.eq.s32.totalorder %v5847, 1
      %vm5880 = vcmp.eq.s32.totalorder %v5848, 1
      %vm5881 = vcmp.eq.s32.totalorder %v5849, 1
      %vm5882 = vcmp.eq.s32.totalorder %v5850, 1
      %v5883 = vsel %vm5851, %v5141, inf
      %v5884 = vsel %vm5851, %v5142, inf
      %v5885 = vsel %vm5851, %v5143, inf
      %v5886 = vsel %vm5851, %v5144, inf
      %v5887 = vsel %vm5852, %v5145, inf
      %v5888 = vsel %vm5852, %v5146, inf
      %v5889 = vsel %vm5852, %v5147, inf
      %v5890 = vsel %vm5852, %v5148, inf
      %v5891 = vsel %vm5853, %v5149, inf
      %v5892 = vsel %vm5853, %v5150, inf
      %v5893 = vsel %vm5853, %v5151, inf
      %v5894 = vsel %vm5853, %v5152, inf
      %v5895 = vsel %vm5854, %v5153, inf
      %v5896 = vsel %vm5854, %v5154, inf
      %v5897 = vsel %vm5854, %v5155, inf
      %v5898 = vsel %vm5854, %v5156, inf
      %v5899 = vsel %vm5855, %v5157, inf
      %v5900 = vsel %vm5855, %v5158, inf
      %v5901 = vsel %vm5855, %v5159, inf
      %v5902 = vsel %vm5855, %v5160, inf
      %v5903 = vsel %vm5856, %v5161, inf
      %v5904 = vsel %vm5856, %v5162, inf
      %v5905 = vsel %vm5856, %v5163, inf
      %v5906 = vsel %vm5856, %v5164, inf
      %v5907 = vsel %vm5857, %v5165, inf
      %v5908 = vsel %vm5857, %v5166, inf
      %v5909 = vsel %vm5857, %v5167, inf
      %v5910 = vsel %vm5857, %v5168, inf
      %v5911 = vsel %vm5858, %v5169, inf
      %v5912 = vsel %vm5858, %v5170, inf
      %v5913 = vsel %vm5858, %v5171, inf
      %v5914 = vsel %vm5858, %v5172, inf
      %v5915 = vsel %vm5859, %v5173, inf
      %v5916 = vsel %vm5859, %v5174, inf
      %v5917 = vsel %vm5859, %v5175, inf
      %v5918 = vsel %vm5859, %v5176, inf
      %v5919 = vsel %vm5860, %v5177, inf
      %v5920 = vsel %vm5860, %v5178, inf
      %v5921 = vsel %vm5860, %v5179, inf
      %v5922 = vsel %vm5860, %v5180, inf
      %v5923 = vsel %vm5861, %v5181, inf
      %v5924 = vsel %vm5861, %v5182, inf
      %v5925 = vsel %vm5861, %v5183, inf
      %v5926 = vsel %vm5861, %v5184, inf
      %v5927 = vsel %vm5862, %v5185, inf
      %v5928 = vsel %vm5862, %v5186, inf
      %v5929 = vsel %vm5862, %v5187, inf
      %v5930 = vsel %vm5862, %v5188, inf
      %v5931 = vsel %vm5863, %v5189, inf
      %v5932 = vsel %vm5863, %v5190, inf
      %v5933 = vsel %vm5863, %v5191, inf
      %v5934 = vsel %vm5863, %v5192, inf
      %v5935 = vsel %vm5864, %v5193, inf
      %v5936 = vsel %vm5864, %v5194, inf
      %v5937 = vsel %vm5864, %v5195, inf
      %v5938 = vsel %vm5864, %v5196, inf
      %v5939 = vsel %vm5865, %v5197, inf
      %v5940 = vsel %vm5865, %v5198, inf
      %v5941 = vsel %vm5865, %v5199, inf
      %v5942 = vsel %vm5865, %v5200, inf
      %v5943 = vsel %vm5866, %v5201, inf
      %v5944 = vsel %vm5866, %v5202, inf
      %v5945 = vsel %vm5866, %v5203, inf
      %v5946 = vsel %vm5866, %v5204, inf
      %v5947 = vsel %vm5867, %v5205, inf
      %v5948 = vsel %vm5867, %v5206, inf
      %v5949 = vsel %vm5867, %v5207, inf
      %v5950 = vsel %vm5867, %v5208, inf
      %v5951 = vsel %vm5868, %v5209, inf
      %v5952 = vsel %vm5868, %v5210, inf
      %v5953 = vsel %vm5868, %v5211, inf
      %v5954 = vsel %vm5868, %v5212, inf
      %v5955 = vsel %vm5869, %v5213, inf
      %v5956 = vsel %vm5869, %v5214, inf
      %v5957 = vsel %vm5869, %v5215, inf
      %v5958 = vsel %vm5869, %v5216, inf
      %v5959 = vsel %vm5870, %v5217, inf
      %v5960 = vsel %vm5870, %v5218, inf
      %v5961 = vsel %vm5870, %v5219, inf
      %v5962 = vsel %vm5870, %v5220, inf
      %v5963 = vsel %vm5871, %v5221, inf
      %v5964 = vsel %vm5871, %v5222, inf
      %v5965 = vsel %vm5871, %v5223, inf
      %v5966 = vsel %vm5871, %v5224, inf
      %v5967 = vsel %vm5872, %v5225, inf
      %v5968 = vsel %vm5872, %v5226, inf
      %v5969 = vsel %vm5872, %v5227, inf
      %v5970 = vsel %vm5872, %v5228, inf
      %v5971 = vsel %vm5873, %v5229, inf
      %v5972 = vsel %vm5873, %v5230, inf
      %v5973 = vsel %vm5873, %v5231, inf
      %v5974 = vsel %vm5873, %v5232, inf
      %v5975 = vsel %vm5874, %v5233, inf
      %v5976 = vsel %vm5874, %v5234, inf
      %v5977 = vsel %vm5874, %v5235, inf
      %v5978 = vsel %vm5874, %v5236, inf
      %v5979 = vsel %vm5875, %v5237, inf
      %v5980 = vsel %vm5875, %v5238, inf
      %v5981 = vsel %vm5875, %v5239, inf
      %v5982 = vsel %vm5875, %v5240, inf
      %v5983 = vsel %vm5876, %v5241, inf
      %v5984 = vsel %vm5876, %v5242, inf
      %v5985 = vsel %vm5876, %v5243, inf
      %v5986 = vsel %vm5876, %v5244, inf
      %v5987 = vsel %vm5877, %v5245, inf
      %v5988 = vsel %vm5877, %v5246, inf
      %v5989 = vsel %vm5877, %v5247, inf
      %v5990 = vsel %vm5877, %v5248, inf
      %v5991 = vsel %vm5878, %v5249, inf
      %v5992 = vsel %vm5878, %v5250, inf
      %v5993 = vsel %vm5878, %v5251, inf
      %v5994 = vsel %vm5878, %v5252, inf
      %v5995 = vsel %vm5879, %v5253, inf
      %v5996 = vsel %vm5879, %v5254, inf
      %v5997 = vsel %vm5879, %v5255, inf
      %v5998 = vsel %vm5879, %v5256, inf
      %v5999 = vsel %vm5880, %v5257, inf
      %v6000 = vsel %vm5880, %v5258, inf
      %v6001 = vsel %vm5880, %v5259, inf
      %v6002 = vsel %vm5880, %v5260, inf
      %v6003 = vsel %vm5881, %v5261, inf
      %v6004 = vsel %vm5881, %v5262, inf
      %v6005 = vsel %vm5881, %v5263, inf
      %v6006 = vsel %vm5881, %v5264, inf
      %v6007 = vsel %vm5882, %v5265, inf
      %v6008 = vsel %vm5882, %v5266, inf
      %v6009 = vsel %vm5882, %v5267, inf
      %v6010 = vsel %vm5882, %v5268, inf
      %v6011 = vmin.f32 %v5883, %v5887
      %v6012 = vmin.f32 %v6011, %v5891
      %v6013 = vmin.f32 %v6012, %v5895
      %v6014 = vmin.f32 %v6013, %v5899
      %v6015 = vmin.f32 %v6014, %v5903
      %v6016 = vmin.f32 %v6015, %v5907
      %v6017 = vmin.f32 %v6016, %v5911
      %v6018 = vmin.f32 %v6017, %v5915
      %v6019 = vmin.f32 %v6018, %v5919
      %v6020 = vmin.f32 %v6019, %v5923
      %v6021 = vmin.f32 %v6020, %v5927
      %v6022 = vmin.f32 %v6021, %v5931
      %v6023 = vmin.f32 %v6022, %v5935
      %v6024 = vmin.f32 %v6023, %v5939
      %v6025 = vmin.f32 %v6024, %v5943
      %v6026 = vmin.f32 %v6025, %v5947
      %v6027 = vmin.f32 %v6026, %v5951
      %v6028 = vmin.f32 %v6027, %v5955
      %v6029 = vmin.f32 %v6028, %v5959
      %v6030 = vmin.f32 %v6029, %v5963
      %v6031 = vmin.f32 %v6030, %v5967
      %v6032 = vmin.f32 %v6031, %v5971
      %v6033 = vmin.f32 %v6032, %v5975
      %v6034 = vmin.f32 %v6033, %v5979
      %v6035 = vmin.f32 %v6034, %v5983
      %v6036 = vmin.f32 %v6035, %v5987
      %v6037 = vmin.f32 %v6036, %v5991
      %v6038 = vmin.f32 %v6037, %v5995
      %v6039 = vmin.f32 %v6038, %v5999
      %v6040 = vmin.f32 %v6039, %v6003
      %v6041 = vmin.f32 %v6040, %v6007
      %v6042 = vrot.slane %v6041, 4
      %v6043 = vmin.f32 %v6041, %v6042
      %v6044 = vrot.slane %v6043, 2
      %v6045 = vmin.f32 %v6043, %v6044
      %v6046 = vrot.slane %v6045, 1
      %v6047 = vmin.f32 %v6045, %v6046
      %v6048 = vmin.f32 %v5884, %v5888
      %v6049 = vmin.f32 %v6048, %v5892
      %v6050 = vmin.f32 %v6049, %v5896
      %v6051 = vmin.f32 %v6050, %v5900
      %v6052 = vmin.f32 %v6051, %v5904
      %v6053 = vmin.f32 %v6052, %v5908
      %v6054 = vmin.f32 %v6053, %v5912
      %v6055 = vmin.f32 %v6054, %v5916
      %v6056 = vmin.f32 %v6055, %v5920
      %v6057 = vmin.f32 %v6056, %v5924
      %v6058 = vmin.f32 %v6057, %v5928
      %v6059 = vmin.f32 %v6058, %v5932
      %v6060 = vmin.f32 %v6059, %v5936
      %v6061 = vmin.f32 %v6060, %v5940
      %v6062 = vmin.f32 %v6061, %v5944
      %v6063 = vmin.f32 %v6062, %v5948
      %v6064 = vmin.f32 %v6063, %v5952
      %v6065 = vmin.f32 %v6064, %v5956
      %v6066 = vmin.f32 %v6065, %v5960
      %v6067 = vmin.f32 %v6066, %v5964
      %v6068 = vmin.f32 %v6067, %v5968
      %v6069 = vmin.f32 %v6068, %v5972
      %v6070 = vmin.f32 %v6069, %v5976
      %v6071 = vmin.f32 %v6070, %v5980
      %v6072 = vmin.f32 %v6071, %v5984
      %v6073 = vmin.f32 %v6072, %v5988
      %v6074 = vmin.f32 %v6073, %v5992
      %v6075 = vmin.f32 %v6074, %v5996
      %v6076 = vmin.f32 %v6075, %v6000
      %v6077 = vmin.f32 %v6076, %v6004
      %v6078 = vmin.f32 %v6077, %v6008
      %v6079 = vrot.slane %v6078, 4
      %v6080 = vmin.f32 %v6078, %v6079
      %v6081 = vrot.slane %v6080, 2
      %v6082 = vmin.f32 %v6080, %v6081
      %v6083 = vrot.slane %v6082, 1
      %v6084 = vmin.f32 %v6082, %v6083
      %v6085 = vmin.f32 %v5885, %v5889
      %v6086 = vmin.f32 %v6085, %v5893
      %v6087 = vmin.f32 %v6086, %v5897
      %v6088 = vmin.f32 %v6087, %v5901
      %v6089 = vmin.f32 %v6088, %v5905
      %v6090 = vmin.f32 %v6089, %v5909
      %v6091 = vmin.f32 %v6090, %v5913
      %v6092 = vmin.f32 %v6091, %v5917
      %v6093 = vmin.f32 %v6092, %v5921
      %v6094 = vmin.f32 %v6093, %v5925
      %v6095 = vmin.f32 %v6094, %v5929
      %v6096 = vmin.f32 %v6095, %v5933
      %v6097 = vmin.f32 %v6096, %v5937
      %v6098 = vmin.f32 %v6097, %v5941
      %v6099 = vmin.f32 %v6098, %v5945
      %v6100 = vmin.f32 %v6099, %v5949
      %v6101 = vmin.f32 %v6100, %v5953
      %v6102 = vmin.f32 %v6101, %v5957
      %v6103 = vmin.f32 %v6102, %v5961
      %v6104 = vmin.f32 %v6103, %v5965
      %v6105 = vmin.f32 %v6104, %v5969
      %v6106 = vmin.f32 %v6105, %v5973
      %v6107 = vmin.f32 %v6106, %v5977
      %v6108 = vmin.f32 %v6107, %v5981
      %v6109 = vmin.f32 %v6108, %v5985
      %v6110 = vmin.f32 %v6109, %v5989
      %v6111 = vmin.f32 %v6110, %v5993
      %v6112 = vmin.f32 %v6111, %v5997
      %v6113 = vmin.f32 %v6112, %v6001
      %v6114 = vmin.f32 %v6113, %v6005
      %v6115 = vmin.f32 %v6114, %v6009
      %v6116 = vrot.slane %v6115, 4
      %v6117 = vmin.f32 %v6115, %v6116
      %v6118 = vrot.slane %v6117, 2
      %v6119 = vmin.f32 %v6117, %v6118
      %v6120 = vrot.slane %v6119, 1
      %v6121 = vmin.f32 %v6119, %v6120
      %v6122 = vmin.f32 %v5886, %v5890
      %v6123 = vmin.f32 %v6122, %v5894
      %v6124 = vmin.f32 %v6123, %v5898
      %v6125 = vmin.f32 %v6124, %v5902
      %v6126 = vmin.f32 %v6125, %v5906
      %v6127 = vmin.f32 %v6126, %v5910
      %v6128 = vmin.f32 %v6127, %v5914
      %v6129 = vmin.f32 %v6128, %v5918
      %v6130 = vmin.f32 %v6129, %v5922
      %v6131 = vmin.f32 %v6130, %v5926
      %v6132 = vmin.f32 %v6131, %v5930
      %v6133 = vmin.f32 %v6132, %v5934
      %v6134 = vmin.f32 %v6133, %v5938
      %v6135 = vmin.f32 %v6134, %v5942
      %v6136 = vmin.f32 %v6135, %v5946
      %v6137 = vmin.f32 %v6136, %v5950
      %v6138 = vmin.f32 %v6137, %v5954
      %v6139 = vmin.f32 %v6138, %v5958
      %v6140 = vmin.f32 %v6139, %v5962
      %v6141 = vmin.f32 %v6140, %v5966
      %v6142 = vmin.f32 %v6141, %v5970
      %v6143 = vmin.f32 %v6142, %v5974
      %v6144 = vmin.f32 %v6143, %v5978
      %v6145 = vmin.f32 %v6144, %v5982
      %v6146 = vmin.f32 %v6145, %v5986
      %v6147 = vmin.f32 %v6146, %v5990
      %v6148 = vmin.f32 %v6147, %v5994
      %v6149 = vmin.f32 %v6148, %v5998
      %v6150 = vmin.f32 %v6149, %v6002
      %v6151 = vmin.f32 %v6150, %v6006
      %v6152 = vmin.f32 %v6151, %v6010
      %v6153 = vrot.slane %v6152, 4
      %v6154 = vmin.f32 %v6152, %v6153
      %v6155 = vrot.slane %v6154, 2
      %v6156 = vmin.f32 %v6154, %v6155
      %v6157 = vrot.slane %v6156, 1
      %v6158 = vmin.f32 %v6156, %v6157
      %s6159 = sshra.s32 %s5312, 7
      %s6160 = sand.u32 %s5312, 127
      %s6161 = scalar_lea.vmem [#allocation3], %s6159
      %v6162 = vld [vmem:[%s6161] sm:$0xf]
      %v6167 = vrot.slane %v6084, 7
      %v6168 = vrot.slane %v6121, 6
      %v6169 = vrot.slane %v6158, 5
      %vm6170 = vcmask 1040384
      %v6171 = vsel %vm6170, %v6047, %v6167
      %vm6172 = vcmask 1042434
      %v6173 = vsel %vm6172, %v6168, %v6169
      %vm6174 = vcmask 1041408
      %v6175 = vsel %vm6174, %v6171, %v6173
      %v6177 = vmin.f32 %v6162, %v6175
      %v6178 = vlaneseq
      %vm6179 = vcmp.ge.s32.totalorder %v6178, 0
      %vm6180 = vcmp.lt.s32.totalorder %v6178, 512
      %vm6181 = vmand %vm6179, %vm6180
      %6182 = vst.msk [vmem:[%s6161] sm:$0xf] %vm6181, %v6177
      %p6183 = scmp.eq.s32.totalorder %s22, 1
      // Predicated region
      $region37: #{chamfer_distance_l2.1} parent=27 // pred_check
        %p6184 = pneg %p6183
      $region38: #{chamfer_distance_l2.1} parent=27 // pred_check_branch
        %6186 = sbr.rel (%p6184) target = $region40
      $region39: #{chamfer_distance_l2.1} parent=27 // pred_region
        %v6187 = vld [vmem:[#allocation2] sm:$0xff]
        %v6188 = vld [vmem:[#allocation2 + $0x8] sm:$0xff]
        %v6189 = vld [vmem:[#allocation2 + $0x10] sm:$0xff]
        %v6190 = vld [vmem:[#allocation2 + $0x18] sm:$0xff]
        %v6191 = vld [vmem:[#allocation2 + $0x20] sm:$0xff]
        %v6192 = vld [vmem:[#allocation2 + $0x28] sm:$0xff]
        %v6193 = vld [vmem:[#allocation2 + $0x30] sm:$0xff]
        %v6194 = vld [vmem:[#allocation2 + $0x38] sm:$0xff]
        %v6195 = vld [vmem:[#allocation2 + $0x40] sm:$0xff]
        %v6196 = vld [vmem:[#allocation2 + $0x48] sm:$0xff]
        %v6197 = vld [vmem:[#allocation2 + $0x50] sm:$0xff]
        %v6198 = vld [vmem:[#allocation2 + $0x58] sm:$0xff]
        %v6199 = vld [vmem:[#allocation2 + $0x60] sm:$0xff]
        %v6200 = vld [vmem:[#allocation2 + $0x68] sm:$0xff]
        %v6201 = vld [vmem:[#allocation2 + $0x70] sm:$0xff]
        %v6202 = vld [vmem:[#allocation2 + $0x78] sm:$0xff]
        %v6203 = vld [vmem:[#allocation2 + $0x80] sm:$0xff]
        %v6204 = vld [vmem:[#allocation2 + $0x88] sm:$0xff]
        %v6205 = vld [vmem:[#allocation2 + $0x90] sm:$0xff]
        %v6206 = vld [vmem:[#allocation2 + $0x98] sm:$0xff]
        %v6207 = vld [vmem:[#allocation2 + $0xa0] sm:$0xff]
        %v6208 = vld [vmem:[#allocation2 + $0xa8] sm:$0xff]
        %v6209 = vld [vmem:[#allocation2 + $0xb0] sm:$0xff]
        %v6210 = vld [vmem:[#allocation2 + $0xb8] sm:$0xff]
        %v6211 = vld [vmem:[#allocation2 + $0xc0] sm:$0xff]
        %v6212 = vld [vmem:[#allocation2 + $0xc8] sm:$0xff]
        %v6213 = vld [vmem:[#allocation2 + $0xd0] sm:$0xff]
        %v6214 = vld [vmem:[#allocation2 + $0xd8] sm:$0xff]
        %v6215 = vld [vmem:[#allocation2 + $0xe0] sm:$0xff]
        %v6216 = vld [vmem:[#allocation2 + $0xe8] sm:$0xff]
        %v6217 = vld [vmem:[#allocation2 + $0xf0] sm:$0xff]
        %v6218 = vld [vmem:[#allocation2 + $0xf8] sm:$0xff]
        %6219 = vst.msk [vmem:[%s258] sm:$0xff] %vm5687, %v6187
        %6220 = vst.msk [vmem:[%s258 + $0x8] sm:$0xff] %vm5687, %v6188
        %6221 = vst.msk [vmem:[%s258 + $0x10] sm:$0xff] %vm5687, %v6189
        %6222 = vst.msk [vmem:[%s258 + $0x18] sm:$0xff] %vm5687, %v6190
        %6223 = vst.msk [vmem:[%s258 + $0x20] sm:$0xff] %vm5687, %v6191
        %6224 = vst.msk [vmem:[%s258 + $0x28] sm:$0xff] %vm5687, %v6192
        %6225 = vst.msk [vmem:[%s258 + $0x30] sm:$0xff] %vm5687, %v6193
        %6226 = vst.msk [vmem:[%s258 + $0x38] sm:$0xff] %vm5687, %v6194
        %6227 = vst.msk [vmem:[%s258 + $0x40] sm:$0xff] %vm5687, %v6195
        %6228 = vst.msk [vmem:[%s258 + $0x48] sm:$0xff] %vm5687, %v6196
        %6229 = vst.msk [vmem:[%s258 + $0x50] sm:$0xff] %vm5687, %v6197
        %6230 = vst.msk [vmem:[%s258 + $0x58] sm:$0xff] %vm5687, %v6198
        %6231 = vst.msk [vmem:[%s258 + $0x60] sm:$0xff] %vm5687, %v6199
        %6232 = vst.msk [vmem:[%s258 + $0x68] sm:$0xff] %vm5687, %v6200
        %6233 = vst.msk [vmem:[%s258 + $0x70] sm:$0xff] %vm5687, %v6201
        %6234 = vst.msk [vmem:[%s258 + $0x78] sm:$0xff] %vm5687, %v6202
        %6235 = vst.msk [vmem:[%s258 + $0x80] sm:$0xff] %vm5687, %v6203
        %6236 = vst.msk [vmem:[%s258 + $0x88] sm:$0xff] %vm5687, %v6204
        %6237 = vst.msk [vmem:[%s258 + $0x90] sm:$0xff] %vm5687, %v6205
        %6238 = vst.msk [vmem:[%s258 + $0x98] sm:$0xff] %vm5687, %v6206
        %6239 = vst.msk [vmem:[%s258 + $0xa0] sm:$0xff] %vm5687, %v6207
        %6240 = vst.msk [vmem:[%s258 + $0xa8] sm:$0xff] %vm5687, %v6208
        %6241 = vst.msk [vmem:[%s258 + $0xb0] sm:$0xff] %vm5687, %v6209
        %6242 = vst.msk [vmem:[%s258 + $0xb8] sm:$0xff] %vm5687, %v6210
        %6243 = vst.msk [vmem:[%s258 + $0xc0] sm:$0xff] %vm5687, %v6211
        %6244 = vst.msk [vmem:[%s258 + $0xc8] sm:$0xff] %vm5687, %v6212
        %6245 = vst.msk [vmem:[%s258 + $0xd0] sm:$0xff] %vm5687, %v6213
        %6246 = vst.msk [vmem:[%s258 + $0xd8] sm:$0xff] %vm5687, %v6214
        %6247 = vst.msk [vmem:[%s258 + $0xe0] sm:$0xff] %vm5687, %v6215
        %6248 = vst.msk [vmem:[%s258 + $0xe8] sm:$0xff] %vm5687, %v6216
        %6249 = vst.msk [vmem:[%s258 + $0xf0] sm:$0xff] %vm5687, %v6217
        %6250 = vst.msk [vmem:[%s258 + $0xf8] sm:$0xff] %vm5687, %v6218
      $region40: #{chamfer_distance_l2.1} parent=27 // pred_fallthru
        _
      %p6251 = scmp.eq.s32.totalorder %s21, 1
      %p6252 = pnand %p6251, %p6183
      %p6253 = pneg %p6252
      // Predicated region
      $region41: #{chamfer_distance_l2.1} parent=27 // pred_check
        _
      $region42: #{chamfer_distance_l2.1} parent=27 // pred_check_branch
        %6255 = sbr.rel (%p6252) target = $region44
      $region43: #{chamfer_distance_l2.1} parent=27 // pred_region
        %v6256 = vld [vmem:[#allocation3] sm:$0xff]
        %6257 = vst [vmem:[%s263] sm:$0xff] %v6256
      $region44: #{chamfer_distance_l2.1} parent=27 // pred_fallthru
        _
      %s6258 = smul.u32 32, %s21
      %p6259 = scmp.lt.s32.totalorder %s20, 1
      %s6260 = scalar_select %p6259, %s20, 1
      %p6261 = scmp.lt.s32.totalorder %s6258, 63
      %s6262 = scalar_select %p6261, %s6258, 63
      %s6263 = smul.addr %s6260, 64
      %s6264 = sadd.s32 %s6262, %s6263
      %s6265 = smul.addr %s6264, 8
      %s6266 = scalar_lea.vmem %s2, %s6265
      %p6267 = scmp.lt.s32.totalorder %s20, 1
      %s6268 = scalar_select %p6267, %s20, 1
      %s6269 = smul.addr %s6268, 8
      %s6270 = scalar_lea.vmem %s3, %s6269
      // Predicated region
      $region45: #{chamfer_distance_l2.1} parent=27 // pred_check
        %p6271 = pneg %p110
      $region46: #{chamfer_distance_l2.1} parent=27 // pred_check_branch
        %6273 = sbr.rel (%p6271) target = $region48
      $region47: #{chamfer_distance_l2.1} parent=27 // pred_region
        %s6274 = smul.u32 32, %s21
      $region48: #{chamfer_distance_l2.1} parent=27 // pred_fallthru
        _
      // Predicated region
      $region49: #{chamfer_distance_l2.1} parent=27 // pred_check
        %p6275 = pneg %p136
      $region50: #{chamfer_distance_l2.1} parent=27 // pred_check_branch
        %6277 = sbr.rel (%p6275) target = $region52
      $region51: #{chamfer_distance_l2.1} parent=27 // pred_region
        _
      $region52: #{chamfer_distance_l2.1} parent=27 // pred_fallthru
        _
    $region28: #{chamfer_distance_l2.1} parent=5 // pred_fallthru
      _
    %p6278 = scmp.le.s32.totalorder 2, %s10
    // Predicated region
    $region53: #{chamfer_distance_l2.1} parent=5 // pred_check
      %p6279 = pneg %p6278
    $region54: #{chamfer_distance_l2.1} parent=5 // pred_check_branch
      %6281 = sbr.rel (%p6279) target = $region56
    $region55: #{chamfer_distance_l2.1} parent=5 // pred_region
      %s6282 = ssub.s32 %s10, 2
      // Predicated region
      $region57: #{chamfer_distance_l2.1} parent=55 // pred_check
        %p6283 = pneg %p116
      $region58: #{chamfer_distance_l2.1} parent=55 // pred_check_branch
        %6285 = sbr.rel (%p6283) target = $region60
      $region59: #{chamfer_distance_l2.1} parent=55 // pred_region
        %s6286 = smul.u32 32, %s24
        %p6287 = scmp.lt.s32.totalorder %s23, 1
        %s6288 = scalar_select %p6287, %s23, 1
        %p6289 = scmp.lt.s32.totalorder %s6286, 63
        %s6290 = scalar_select %p6289, %s6286, 63
        %s6291 = smul.addr %s6288, 64
        %s6292 = sadd.s32 %s6290, %s6291
        %s6293 = smul.addr %s6292, 8
        %s6294 = scalar_lea.vmem %s2, %s6293
      $region60: #{chamfer_distance_l2.1} parent=55 // pred_fallthru
        _
      // Predicated region
      $region61: #{chamfer_distance_l2.1} parent=55 // pred_check
        %p6295 = pneg %p142
      $region62: #{chamfer_distance_l2.1} parent=55 // pred_check_branch
        %6297 = sbr.rel (%p6295) target = $region64
      $region63: #{chamfer_distance_l2.1} parent=55 // pred_region
        %p6298 = scmp.lt.s32.totalorder %s23, 1
        %s6299 = scalar_select %p6298, %s23, 1
        %s6300 = smul.addr %s6299, 8
        %s6301 = scalar_lea.vmem %s3, %s6300
      $region64: #{chamfer_distance_l2.1} parent=55 // pred_fallthru
        _
    $region56: #{chamfer_distance_l2.1} parent=5 // pred_fallthru
      _
  $region6: #{chamfer_distance_l2.1} parent=0 // loop_footer
    %s14 = sadd.s32 1, %s10
  $region7: #{chamfer_distance_l2.1} parent=0 // loop_footer_branch
    %9 = sbr.rel target = $region3
  $region8: #{chamfer_distance_l2.1} parent=0 // loop_exit
    _

</llo_original>
